<compile_context>
chip_gen: v5e
topology: v5e:2x2
jax: 0.10.0
libtpu: 0.0.40
codegen_flags: <defaults>
</compile_context>

<pallas_src>
import functools

import jax
import jax.numpy as jnp
from jax import lax
from jax.experimental import pallas as pl
from jax.experimental.pallas import tpu as pltpu


def _round_up(x, m):
    return ((x + m - 1) // m) * m


def _geometry(H, W):
    """Wide flat pixel geometry shared by all layers.

    Real pixel (h, w) lives at flat lane  o0 + h*Wp + w  inside every padded
    activation buffer; the Wp-W margin columns between rows plus the halo lane
    strips before/after the data band carry the conv zero padding.
    """
    Wp = W + 4                          # row stride (= conv1's pad-2 padded width)
    HWp = H * Wp                        # wide pixel-axis length (GEMM lane/N dim)
    o0 = _round_up(Wp + 1, 128)         # 128-aligned data origin, >= 3x3 tap reach
    buf_len = _round_up(o0 + HWp + Wp + 1, 128)
    return Wp, HWp, o0, buf_len


# ----------------------------------------------------------------------------
# Fused kernel: one batch element per grid step, everything resident in VMEM.
# ----------------------------------------------------------------------------
def _superres_kernel(col1_ref, w1_ref, b1_ref, w2_ref, b2_ref, w3_ref, b3_ref,
                     w4_ref, b4_ref, o_ref, buf_a, buf_b, *, W, Wp, HWp, o0):
    # Zero the two halo lane-strips outside the written data band (cheap: about
    # one vreg column per side).  Done every step (not pl.when(pid==0)) so it
    # remains correct when the parallel batch axis is split across TensorCores,
    # each with its own persistent scratch.
    def zero_halo(buf):
        rows, lanes = buf.shape
        buf[:, 0:o0] = jnp.zeros((rows, o0), buf.dtype)
        buf[:, o0 + HWp:lanes] = jnp.zeros((rows, lanes - o0 - HWp), buf.dtype)

    zero_halo(buf_a)
    zero_halo(buf_b)

    # 0/1 mask keeping the W real columns of every Wp-wide row of the wide
    # pixel axis; the zeroed margin columns double as the conv padding between
    # rows of the next layer.
    lane = lax.broadcasted_iota(jnp.int32, (1, HWp), 1)
    keep = ((lane % Wp) < W).astype(jnp.float32)

    def stage(dst_ref, act):
        cout = act.shape[0]
        dst_ref[0:cout, o0:o0 + HWp] = (act * keep).astype(dst_ref.dtype)

    def conv3x3(src_ref, w_ref, b_ref, relu):
        cout, cin = w_ref.shape[1], w_ref.shape[2]
        acc = jnp.zeros((cout, HWp), jnp.float32)
        # 9 accumulating MXU matmuls; each RHS is a shifted lane-slice of the
        # padded plane (lane realignment on the XLU overlaps the MXU pushes).
        for kh in range(3):
            for kw in range(3):
                d = o0 + (kh - 1) * Wp + (kw - 1)
                rhs = src_ref[0:cin, d:d + HWp]                 # (cin, HWp) bf16
                acc = acc + jnp.dot(w_ref[kh * 3 + kw], rhs,
                                    preferred_element_type=jnp.float32)
        acc = acc + b_ref[...]                                  # f32 bias
        return jnp.maximum(acc, 0.0) if relu else acc

    # conv1: a single (64, 32) x (32, HWp) matmul.  The im2col of the single
    # input channel is pure layout plumbing done once in the wrapper.
    a1 = jnp.dot(w1_ref[...], col1_ref[0], preferred_element_type=jnp.float32)
    a1 = jnp.maximum(a1 + b1_ref[...], 0.0)
    stage(buf_a, a1)                                            # (64, HWp)

    stage(buf_b, conv3x3(buf_a, w2_ref, b2_ref, relu=True))     # (64, HWp)
    stage(buf_a, conv3x3(buf_b, w3_ref, b3_ref, relu=True))     # (32, HWp)
    a4 = conv3x3(buf_a, w4_ref, b4_ref, relu=False)             # (r*r, HWp)

    # Final store is lane-dense (pixels on lanes).  Margin columns are sliced
    # away by the wrapper, so no mask is needed here.
    o_ref[0] = a4.astype(o_ref.dtype)


# ----------------------------------------------------------------------------
# Forward pass wrapper.  Accepts / returns NCHW to mirror the PyTorch module.
# ----------------------------------------------------------------------------
def super_resolution_forward(x_nchw, packed_params, upscale):
    N, C, H, W = x_nchw.shape
    assert C == 1
    r = upscale
    Wp, HWp, o0, buf_len = _geometry(H, W)

    w1, b1 = packed_params["conv1"]
    w2, b2 = packed_params["conv2"]
    w3, b3 = packed_params["conv3"]
    w4, b4 = packed_params["conv4"]
    t1 = w1.shape[1]                                 # 32 (25 conv1 taps, padded)
    max_ch = max(w1.shape[0], w2.shape[2], w3.shape[2], w4.shape[2])   # 64

    # ---- conv1 im2col in the wrapper (layout only; Cin == 1 so it's tiny). ----
    x_pad = jnp.pad(x_nchw[:, 0].astype(jnp.float32), ((0, 0), (2, 2), (2, 2)))
    x_flat = jnp.pad(x_pad.reshape(N, (H + 4) * Wp), ((0, 0), (0, Wp)))
    taps = [x_flat[:, kh * Wp + kw: kh * Wp + kw + HWp]
            for kh in range(5) for kw in range(5)]
    col1 = jnp.stack(taps, axis=1)                                  # (N, 25, HWp)
    col1 = jnp.pad(col1, ((0, 0), (0, t1 - 25), (0, 0))).astype(jnp.bfloat16)

    kernel = functools.partial(_superres_kernel, W=W, Wp=Wp, HWp=HWp, o0=o0)

    out_wide = pl.pallas_call(
        kernel,
        out_shape=jax.ShapeDtypeStruct((N, r * r, HWp), jnp.float32),
        grid=(N,),
        in_specs=[
            pl.BlockSpec((1, t1, HWp), lambda n: (n, 0, 0)),        # conv1 patches
            pl.BlockSpec(w1.shape, lambda n: (0, 0)),               # w1 (64, 32)
            pl.BlockSpec(b1.shape, lambda n: (0, 0)),               # b1 (64, 1)
            pl.BlockSpec(w2.shape, lambda n: (0, 0, 0)),            # w2 (9, 64, 64)
            pl.BlockSpec(b2.shape, lambda n: (0, 0)),               # b2 (64, 1)
            pl.BlockSpec(w3.shape, lambda n: (0, 0, 0)),            # w3 (9, 32, 64)
            pl.BlockSpec(b3.shape, lambda n: (0, 0)),               # b3 (32, 1)
            pl.BlockSpec(w4.shape, lambda n: (0, 0, 0)),            # w4 (9, 9, 32)
            pl.BlockSpec(b4.shape, lambda n: (0, 0)),               # b4 (9, 1)
        ],
        out_specs=pl.BlockSpec((1, r * r, HWp), lambda n: (n, 0, 0)),
        scratch_shapes=[
            pltpu.VMEM((max_ch, buf_len), jnp.bfloat16),            # ping plane
            pltpu.VMEM((max_ch, buf_len), jnp.bfloat16),            # pong plane
        ],
        compiler_params=pltpu.CompilerParams(
            dimension_semantics=("parallel",)),
    )(col1, w1, b1, w2, b2, w3, b3, w4, b4)

    # Drop the margin columns of the wide geometry, then pixel-shuffle
    # (all free XLA layout ops in the wrapper).
    conv4_out = out_wide.reshape(N, r * r, H, Wp)[:, :, :, :W]      # (N, r*r, H, W)
    y = conv4_out.reshape(N, r, r, H, W).transpose(0, 3, 1, 4, 2)
    return y.reshape(N, 1, H * r, W * r)


# ----------------------------------------------------------------------------
# Parameters (deterministic, synthetic — not a checkpoint load).
# PyTorch conv weight layout is (Cout, Cin, KH, KW).
# TODO(synk): torch.nn.init.orthogonal_ is approximated with scaled normal init.
# ----------------------------------------------------------------------------
def make_params(upscale, key):
    def conv_params(k, cin, cout, ksz):
        kw_, kb_ = jax.random.split(k)
        w = jax.random.normal(kw_, (cout, cin, ksz, ksz), jnp.float32)
        w = w * (1.0 / jnp.sqrt(cin * ksz * ksz))
        b = 0.01 * jax.random.normal(kb_, (cout,), jnp.float32)
        return w, b

    k1, k2, k3, k4 = jax.random.split(key, 4)
    return {
        "conv1": conv_params(k1, 1, 64, 5),
        "conv2": conv_params(k2, 64, 64, 3),
        "conv3": conv_params(k3, 64, 32, 3),
        "conv4": conv_params(k4, 32, upscale * upscale, 3),
    }


def pack_params(raw_params):
    """PyTorch (Cout,Cin,KH,KW) -> per-tap MXU layouts.

    conv1: (Cout, 25 taps) padded to (Cout, 32), bf16.
    conv2/3/4: (9 taps, Cout, Cin), bf16.  Biases: (Cout, 1) f32.
    """
    def taps3(w):
        cout, cin = w.shape[0], w.shape[1]
        return (jnp.transpose(w, (2, 3, 0, 1))
                .reshape(9, cout, cin).astype(jnp.bfloat16))

    def bias(b):
        return b.reshape(-1, 1).astype(jnp.float32)

    w1, b1 = raw_params["conv1"]
    w2, b2 = raw_params["conv2"]
    w3, b3 = raw_params["conv3"]
    w4, b4 = raw_params["conv4"]

    w1_2d = w1.reshape(w1.shape[0], -1)                     # (64, 25), Cin == 1
    w1_2d = jnp.pad(w1_2d, ((0, 0), (0, 32 - w1_2d.shape[1]))).astype(jnp.bfloat16)

    return {
        "conv1": (w1_2d, bias(b1)),
        "conv2": (taps3(w2), bias(b2)),
        "conv3": (taps3(w3), bias(b3)),
        "conv4": (taps3(w4), bias(b4)),
    }


# ----------------------------------------------------------------------------
# Pure-JAX reference (XLA convs) for a numerical sanity check.
# ----------------------------------------------------------------------------
def _reference_forward(x_nchw, raw_params, upscale):
    def conv(x, w, b, pad):
        y = lax.conv_general_dilated(
            x, w, window_strides=(1, 1), padding=((pad, pad), (pad, pad)),
            dimension_numbers=("NCHW", "OIHW", "NCHW"))
        return y + b.reshape(1, -1, 1, 1)

    w1, b1 = raw_params["conv1"]
    w2, b2 = raw_params["conv2"]
    w3, b3 = raw_params["conv3"]
    w4, b4 = raw_params["conv4"]

    x = jax.nn.relu(conv(x_nchw, w1, b1, 2))
    x = jax.nn.relu(conv(x, w2, b2, 1))
    x = jax.nn.relu(conv(x, w3, b3, 1))
    x = conv(x, w4, b4, 1)

    N, _, H, W = x.shape
    r = upscale
    x = x.reshape(N, r, r, H, W).transpose(0, 3, 1, 4, 2)
    return x.reshape(N, 1, H * r, W * r)


if __name__ == "__main__":
    upscale_factor = 3
    N, C, H, W = 2, 1, 16, 16

    key = jax.random.PRNGKey(0)
    k_in, k_par = jax.random.split(key)
    x = jax.random.normal(k_in, (N, C, H, W), jnp.float32)

    raw_params = make_params(upscale_factor, k_par)
    params = pack_params(raw_params)

    fwd = jax.jit(functools.partial(super_resolution_forward,
                                    upscale=upscale_factor))
    out = jax.block_until_ready(fwd(x, params))

    expected = (N, 1, H * upscale_factor, W * upscale_factor)
    assert out.shape == expected, (out.shape, expected)
    assert bool(jnp.all(jnp.isfinite(out)))

    # Numerical check vs. XLA reference (bf16 matmul operands -> loose tol).
    ref = _reference_forward(x, raw_params, upscale_factor)
    max_err = float(jnp.max(jnp.abs(out - ref)))
    assert max_err < 0.15, f"max abs error vs reference: {max_err}"

    print("KERNEL_OK")
</pallas_src>

<mosaic_0001>
module attributes {stable_mosaic.version = 11 : i64} {
  func.func @_superres_kernel(%arg0: i32, %arg1: memref<1x32x320xbf16, #tpu.memory_space<vmem>>, %arg2: memref<64x32xbf16, #tpu.memory_space<vmem>>, %arg3: memref<64x1xf32, #tpu.memory_space<vmem>>, %arg4: memref<9x64x64xbf16, #tpu.memory_space<vmem>>, %arg5: memref<64x1xf32, #tpu.memory_space<vmem>>, %arg6: memref<9x32x64xbf16, #tpu.memory_space<vmem>>, %arg7: memref<32x1xf32, #tpu.memory_space<vmem>>, %arg8: memref<9x9x32xbf16, #tpu.memory_space<vmem>>, %arg9: memref<9x1xf32, #tpu.memory_space<vmem>>, %arg10: memref<1x9x320xf32, #tpu.memory_space<vmem>>, %arg11: memref<64x512xbf16, #tpu.memory_space<vmem>>, %arg12: memref<64x512xbf16, #tpu.memory_space<vmem>>) attributes {dimension_semantics = [#tpu.dimension_semantics<parallel>], iteration_bounds = array<i64: 2>, scalar_prefetch = 0 : i64, scratch_operands = 2 : i64, tpu.core_type = #tpu.core_type<tc>, window_params = [{transform_indices = @transform_0, window_bounds = array<i64: 1, 32, 320>}, {pipeline_mode = #tpu.pipeline_mode<synchronous>, transform_indices = @transform_1, window_bounds = array<i64: 64, 32>}, {pipeline_mode = #tpu.pipeline_mode<synchronous>, transform_indices = @transform_2, window_bounds = array<i64: 64, 1>}, {pipeline_mode = #tpu.pipeline_mode<synchronous>, transform_indices = @transform_3, window_bounds = array<i64: 9, 64, 64>}, {pipeline_mode = #tpu.pipeline_mode<synchronous>, transform_indices = @transform_4, window_bounds = array<i64: 64, 1>}, {pipeline_mode = #tpu.pipeline_mode<synchronous>, transform_indices = @transform_5, window_bounds = array<i64: 9, 32, 64>}, {pipeline_mode = #tpu.pipeline_mode<synchronous>, transform_indices = @transform_6, window_bounds = array<i64: 32, 1>}, {pipeline_mode = #tpu.pipeline_mode<synchronous>, transform_indices = @transform_7, window_bounds = array<i64: 9, 9, 32>}, {pipeline_mode = #tpu.pipeline_mode<synchronous>, transform_indices = @transform_8, window_bounds = array<i64: 9, 1>}, {transform_indices = @transform_9, window_bounds = array<i64: 1, 9, 320>}]} {
    %cst = arith.constant 0.000000e+00 : bf16
    %0 = vector.broadcast %cst : bf16 to vector<64x128xbf16>
    %c0 = arith.constant 0 : index
    %c0_0 = arith.constant 0 : index
    %1 = vector.load %arg11[%c0, %c0_0] : memref<64x512xbf16, #tpu.memory_space<vmem>>, vector<64x128xbf16>
    tpu.vector_store %arg11[%c0, %c0_0], %0 {strides = array<i32>} : memref<64x512xbf16, #tpu.memory_space<vmem>>, vector<64x128xbf16>,
    %cst_1 = arith.constant 0.000000e+00 : bf16
    %2 = vector.broadcast %cst_1 : bf16 to vector<64x64xbf16>
    %c0_2 = arith.constant 0 : index
    %c448 = arith.constant 448 : index
    %3 = vector.load %arg11[%c0_2, %c448] : memref<64x512xbf16, #tpu.memory_space<vmem>>, vector<64x64xbf16>
    tpu.vector_store %arg11[%c0_2, %c448], %2 {strides = array<i32>} : memref<64x512xbf16, #tpu.memory_space<vmem>>, vector<64x64xbf16>,
    %cst_3 = arith.constant 0.000000e+00 : bf16
    %4 = vector.broadcast %cst_3 : bf16 to vector<64x128xbf16>
    %c0_4 = arith.constant 0 : index
    %c0_5 = arith.constant 0 : index
    %5 = vector.load %arg12[%c0_4, %c0_5] : memref<64x512xbf16, #tpu.memory_space<vmem>>, vector<64x128xbf16>
    tpu.vector_store %arg12[%c0_4, %c0_5], %4 {strides = array<i32>} : memref<64x512xbf16, #tpu.memory_space<vmem>>, vector<64x128xbf16>,
    %cst_6 = arith.constant 0.000000e+00 : bf16
    %6 = vector.broadcast %cst_6 : bf16 to vector<64x64xbf16>
    %c0_7 = arith.constant 0 : index
    %c448_8 = arith.constant 448 : index
    %7 = vector.load %arg12[%c0_7, %c448_8] : memref<64x512xbf16, #tpu.memory_space<vmem>>, vector<64x64xbf16>
    tpu.vector_store %arg12[%c0_7, %c448_8], %6 {strides = array<i32>} : memref<64x512xbf16, #tpu.memory_space<vmem>>, vector<64x64xbf16>,
    %8 = tpu.iota {dimensions = array<i32: 1>} : vector<1x320xi32>
    %c20_i32 = arith.constant 20 : i32
    %c0_i32 = arith.constant 0 : i32
    %9 = arith.cmpi eq, %c20_i32, %c0_i32 : i32
    %c1_i32 = arith.constant 1 : i32
    %10 = arith.select %9, %c1_i32, %c20_i32 : i32
    %11 = vector.broadcast %10 : i32 to vector<1x320xi32>
    %12 = arith.remsi %8, %11 : vector<1x320xi32>
    %c0_i32_9 = arith.constant 0 : i32
    %13 = vector.broadcast %c0_i32_9 : i32 to vector<1x320xi32>
    %14 = arith.cmpi ne, %12, %13 : vector<1x320xi32>
    %c0_i32_10 = arith.constant 0 : i32
    %15 = vector.broadcast %c0_i32_10 : i32 to vector<1x320xi32>
    %16 = arith.cmpi slt, %12, %15 : vector<1x320xi32>
    %c0_i32_11 = arith.constant 0 : i32
    %17 = arith.cmpi slt, %10, %c0_i32_11 : i32
    %18 = vector.broadcast %17 : i1 to vector<1x320xi1>
    %19 = vector.broadcast %18 : vector<1x320xi1> to vector<1x320xi1>
    %20 = arith.xori %16, %19 : vector<1x320xi1>
    %21 = arith.andi %20, %14 : vector<1x320xi1>
    %22 = vector.broadcast %10 : i32 to vector<1x320xi32>
    %23 = arith.addi %12, %22 : vector<1x320xi32>
    %24 = arith.select %21, %23, %12 : vector<1x320xi1>, vector<1x320xi32>
    %c16_i32 = arith.constant 16 : i32
    %25 = vector.broadcast %c16_i32 : i32 to vector<1x320xi32>
    %26 = arith.cmpi slt, %24, %25 : vector<1x320xi32>
    %27 = arith.extui %26 : vector<1x320xi1> to vector<1x320xi32>
    %28 = arith.sitofp %27 : vector<1x320xi32> to vector<1x320xf32>
    %c0_12 = arith.constant 0 : index
    %c0_13 = arith.constant 0 : index
    %29 = vector.load %arg2[%c0_12, %c0_13] : memref<64x32xbf16, #tpu.memory_space<vmem>>, vector<64x32xbf16>
    %c0_14 = arith.constant 0 : index
    %c0_15 = arith.constant 0 : index
    %c0_16 = arith.constant 0 : index
    %30 = vector.load %arg1[%c0_14, %c0_15, %c0_16] : memref<1x32x320xbf16, #tpu.memory_space<vmem>>, vector<1x32x320xbf16>
    %31 = vector.shape_cast %30 : vector<1x32x320xbf16> to vector<32x320xbf16>
    %cst_17 = arith.constant dense<0.000000e+00> : vector<64x320xf32>
    %32 = tpu.matmul %29, %31, %cst_17 {dimension_numbers = #tpu.dot_dimension_numbers<[1], [0], [0], [1], [0, 0, 1, 1], [], []>} : vector<64x32xbf16>, vector<32x320xbf16>, vector<64x320xf32> -> vector<64x320xf32>
    %c0_18 = arith.constant 0 : index
    %c0_19 = arith.constant 0 : index
    %33 = vector.load %arg3[%c0_18, %c0_19] : memref<64x1xf32, #tpu.memory_space<vmem>>, vector<64x1xf32>
    %34 = vector.broadcast %33 : vector<64x1xf32> to vector<64x320xf32>
    %35 = arith.addf %32, %34 : vector<64x320xf32>
    %cst_20 = arith.constant 0.000000e+00 : f32
    %36 = vector.broadcast %cst_20 : f32 to vector<64x320xf32>
    %37 = arith.maximumf %35, %36 : vector<64x320xf32>
    %38 = vector.broadcast %28 : vector<1x320xf32> to vector<64x320xf32>
    %39 = arith.mulf %37, %38 : vector<64x320xf32>
    %40 = arith.truncf %39 : vector<64x320xf32> to vector<64x320xbf16>
    %c0_21 = arith.constant 0 : index
    %c128 = arith.constant 128 : index
    %41 = vector.load %arg11[%c0_21, %c128] : memref<64x512xbf16, #tpu.memory_space<vmem>>, vector<64x320xbf16>
    tpu.vector_store %arg11[%c0_21, %c128], %40 {strides = array<i32>} : memref<64x512xbf16, #tpu.memory_space<vmem>>, vector<64x320xbf16>,
    %cst_22 = arith.constant 0.000000e+00 : f32
    %42 = vector.broadcast %cst_22 : f32 to vector<64x320xf32>
    %c0_23 = arith.constant 0 : index
    %c107 = arith.constant 107 : index
    %43 = vector.load %arg11[%c0_23, %c107] : memref<64x512xbf16, #tpu.memory_space<vmem>>, vector<64x320xbf16>
    %c0_24 = arith.constant 0 : index
    %c0_25 = arith.constant 0 : index
    %c0_26 = arith.constant 0 : index
    %44 = vector.load %arg4[%c0_24, %c0_25, %c0_26] : memref<9x64x64xbf16, #tpu.memory_space<vmem>>, vector<1x64x64xbf16>
    %45 = vector.shape_cast %44 : vector<1x64x64xbf16> to vector<64x64xbf16>
    %cst_27 = arith.constant dense<0.000000e+00> : vector<64x320xf32>
    %46 = tpu.matmul %45, %43, %cst_27 {dimension_numbers = #tpu.dot_dimension_numbers<[1], [0], [0], [1], [0, 0, 1, 1], [], []>} : vector<64x64xbf16>, vector<64x320xbf16>, vector<64x320xf32> -> vector<64x320xf32>
    %47 = arith.addf %42, %46 : vector<64x320xf32>
    %c0_28 = arith.constant 0 : index
    %c108 = arith.constant 108 : index
    %48 = vector.load %arg11[%c0_28, %c108] : memref<64x512xbf16, #tpu.memory_space<vmem>>, vector<64x320xbf16>
    %c1 = arith.constant 1 : index
    %c0_29 = arith.constant 0 : index
    %c0_30 = arith.constant 0 : index
    %49 = vector.load %arg4[%c1, %c0_29, %c0_30] : memref<9x64x64xbf16, #tpu.memory_space<vmem>>, vector<1x64x64xbf16>
    %50 = vector.shape_cast %49 : vector<1x64x64xbf16> to vector<64x64xbf16>
    %cst_31 = arith.constant dense<0.000000e+00> : vector<64x320xf32>
    %51 = tpu.matmul %50, %48, %cst_31 {dimension_numbers = #tpu.dot_dimension_numbers<[1], [0], [0], [1], [0, 0, 1, 1], [], []>} : vector<64x64xbf16>, vector<64x320xbf16>, vector<64x320xf32> -> vector<64x320xf32>
    %52 = arith.addf %47, %51 : vector<64x320xf32>
    %c0_32 = arith.constant 0 : index
    %c109 = arith.constant 109 : index
    %53 = vector.load %arg11[%c0_32, %c109] : memref<64x512xbf16, #tpu.memory_space<vmem>>, vector<64x320xbf16>
    %c2 = arith.constant 2 : index
    %c0_33 = arith.constant 0 : index
    %c0_34 = arith.constant 0 : index
    %54 = vector.load %arg4[%c2, %c0_33, %c0_34] : memref<9x64x64xbf16, #tpu.memory_space<vmem>>, vector<1x64x64xbf16>
    %55 = vector.shape_cast %54 : vector<1x64x64xbf16> to vector<64x64xbf16>
    %cst_35 = arith.constant dense<0.000000e+00> : vector<64x320xf32>
    %56 = tpu.matmul %55, %53, %cst_35 {dimension_numbers = #tpu.dot_dimension_numbers<[1], [0], [0], [1], [0, 0, 1, 1], [], []>} : vector<64x64xbf16>, vector<64x320xbf16>, vector<64x320xf32> -> vector<64x320xf32>
    %57 = arith.addf %52, %56 : vector<64x320xf32>
    %c0_36 = arith.constant 0 : index
    %c127 = arith.constant 127 : index
    %58 = vector.load %arg11[%c0_36, %c127] : memref<64x512xbf16, #tpu.memory_space<vmem>>, vector<64x320xbf16>
    %c3 = arith.constant 3 : index
    %c0_37 = arith.constant 0 : index
    %c0_38 = arith.constant 0 : index
    %59 = vector.load %arg4[%c3, %c0_37, %c0_38] : memref<9x64x64xbf16, #tpu.memory_space<vmem>>, vector<1x64x64xbf16>
    %60 = vector.shape_cast %59 : vector<1x64x64xbf16> to vector<64x64xbf16>
    %cst_39 = arith.constant dense<0.000000e+00> : vector<64x320xf32>
    %61 = tpu.matmul %60, %58, %cst_39 {dimension_numbers = #tpu.dot_dimension_numbers<[1], [0], [0], [1], [0, 0, 1, 1], [], []>} : vector<64x64xbf16>, vector<64x320xbf16>, vector<64x320xf32> -> vector<64x320xf32>
    %62 = arith.addf %57, %61 : vector<64x320xf32>
    %c0_40 = arith.constant 0 : index
    %c128_41 = arith.constant 128 : index
    %63 = vector.load %arg11[%c0_40, %c128_41] : memref<64x512xbf16, #tpu.memory_space<vmem>>, vector<64x320xbf16>
    %c4 = arith.constant 4 : index
    %c0_42 = arith.constant 0 : index
    %c0_43 = arith.constant 0 : index
    %64 = vector.load %arg4[%c4, %c0_42, %c0_43] : memref<9x64x64xbf16, #tpu.memory_space<vmem>>, vector<1x64x64xbf16>
    %65 = vector.shape_cast %64 : vector<1x64x64xbf16> to vector<64x64xbf16>
    %cst_44 = arith.constant dense<0.000000e+00> : vector<64x320xf32>
    %66 = tpu.matmul %65, %63, %cst_44 {dimension_numbers = #tpu.dot_dimension_numbers<[1], [0], [0], [1], [0, 0, 1, 1], [], []>} : vector<64x64xbf16>, vector<64x320xbf16>, vector<64x320xf32> -> vector<64x320xf32>
    %67 = arith.addf %62, %66 : vector<64x320xf32>
    %c0_45 = arith.constant 0 : index
    %c129 = arith.constant 129 : index
    %68 = vector.load %arg11[%c0_45, %c129] : memref<64x512xbf16, #tpu.memory_space<vmem>>, vector<64x320xbf16>
    %c5 = arith.constant 5 : index
    %c0_46 = arith.constant 0 : index
    %c0_47 = arith.constant 0 : index
    %69 = vector.load %arg4[%c5, %c0_46, %c0_47] : memref<9x64x64xbf16, #tpu.memory_space<vmem>>, vector<1x64x64xbf16>
    %70 = vector.shape_cast %69 : vector<1x64x64xbf16> to vector<64x64xbf16>
    %cst_48 = arith.constant dense<0.000000e+00> : vector<64x320xf32>
    %71 = tpu.matmul %70, %68, %cst_48 {dimension_numbers = #tpu.dot_dimension_numbers<[1], [0], [0], [1], [0, 0, 1, 1], [], []>} : vector<64x64xbf16>, vector<64x320xbf16>, vector<64x320xf32> -> vector<64x320xf32>
    %72 = arith.addf %67, %71 : vector<64x320xf32>
    %c0_49 = arith.constant 0 : index
    %c147 = arith.constant 147 : index
    %73 = vector.load %arg11[%c0_49, %c147] : memref<64x512xbf16, #tpu.memory_space<vmem>>, vector<64x320xbf16>
    %c6 = arith.constant 6 : index
    %c0_50 = arith.constant 0 : index
    %c0_51 = arith.constant 0 : index
    %74 = vector.load %arg4[%c6, %c0_50, %c0_51] : memref<9x64x64xbf16, #tpu.memory_space<vmem>>, vector<1x64x64xbf16>
    %75 = vector.shape_cast %74 : vector<1x64x64xbf16> to vector<64x64xbf16>
    %cst_52 = arith.constant dense<0.000000e+00> : vector<64x320xf32>
    %76 = tpu.matmul %75, %73, %cst_52 {dimension_numbers = #tpu.dot_dimension_numbers<[1], [0], [0], [1], [0, 0, 1, 1], [], []>} : vector<64x64xbf16>, vector<64x320xbf16>, vector<64x320xf32> -> vector<64x320xf32>
    %77 = arith.addf %72, %76 : vector<64x320xf32>
    %c0_53 = arith.constant 0 : index
    %c148 = arith.constant 148 : index
    %78 = vector.load %arg11[%c0_53, %c148] : memref<64x512xbf16, #tpu.memory_space<vmem>>, vector<64x320xbf16>
    %c7 = arith.constant 7 : index
    %c0_54 = arith.constant 0 : index
    %c0_55 = arith.constant 0 : index
    %79 = vector.load %arg4[%c7, %c0_54, %c0_55] : memref<9x64x64xbf16, #tpu.memory_space<vmem>>, vector<1x64x64xbf16>
    %80 = vector.shape_cast %79 : vector<1x64x64xbf16> to vector<64x64xbf16>
    %cst_56 = arith.constant dense<0.000000e+00> : vector<64x320xf32>
    %81 = tpu.matmul %80, %78, %cst_56 {dimension_numbers = #tpu.dot_dimension_numbers<[1], [0], [0], [1], [0, 0, 1, 1], [], []>} : vector<64x64xbf16>, vector<64x320xbf16>, vector<64x320xf32> -> vector<64x320xf32>
    %82 = arith.addf %77, %81 : vector<64x320xf32>
    %c0_57 = arith.constant 0 : index
    %c149 = arith.constant 149 : index
    %83 = vector.load %arg11[%c0_57, %c149] : memref<64x512xbf16, #tpu.memory_space<vmem>>, vector<64x320xbf16>
    %c8 = arith.constant 8 : index
    %c0_58 = arith.constant 0 : index
    %c0_59 = arith.constant 0 : index
    %84 = vector.load %arg4[%c8, %c0_58, %c0_59] : memref<9x64x64xbf16, #tpu.memory_space<vmem>>, vector<1x64x64xbf16>
    %85 = vector.shape_cast %84 : vector<1x64x64xbf16> to vector<64x64xbf16>
    %cst_60 = arith.constant dense<0.000000e+00> : vector<64x320xf32>
    %86 = tpu.matmul %85, %83, %cst_60 {dimension_numbers = #tpu.dot_dimension_numbers<[1], [0], [0], [1], [0, 0, 1, 1], [], []>} : vector<64x64xbf16>, vector<64x320xbf16>, vector<64x320xf32> -> vector<64x320xf32>
    %87 = arith.addf %82, %86 : vector<64x320xf32>
    %c0_61 = arith.constant 0 : index
    %c0_62 = arith.constant 0 : index
    %88 = vector.load %arg5[%c0_61, %c0_62] : memref<64x1xf32, #tpu.memory_space<vmem>>, vector<64x1xf32>
    %89 = vector.broadcast %88 : vector<64x1xf32> to vector<64x320xf32>
    %90 = arith.addf %87, %89 : vector<64x320xf32>
    %cst_63 = arith.constant 0.000000e+00 : f32
    %91 = vector.broadcast %cst_63 : f32 to vector<64x320xf32>
    %92 = arith.maximumf %90, %91 : vector<64x320xf32>
    %93 = vector.broadcast %28 : vector<1x320xf32> to vector<64x320xf32>
    %94 = arith.mulf %92, %93 : vector<64x320xf32>
    %95 = arith.truncf %94 : vector<64x320xf32> to vector<64x320xbf16>
    %c0_64 = arith.constant 0 : index
    %c128_65 = arith.constant 128 : index
    %96 = vector.load %arg12[%c0_64, %c128_65] : memref<64x512xbf16, #tpu.memory_space<vmem>>, vector<64x320xbf16>
    tpu.vector_store %arg12[%c0_64, %c128_65], %95 {strides = array<i32>} : memref<64x512xbf16, #tpu.memory_space<vmem>>, vector<64x320xbf16>,
    %cst_66 = arith.constant 0.000000e+00 : f32
    %97 = vector.broadcast %cst_66 : f32 to vector<32x320xf32>
    %c0_67 = arith.constant 0 : index
    %c107_68 = arith.constant 107 : index
    %98 = vector.load %arg12[%c0_67, %c107_68] : memref<64x512xbf16, #tpu.memory_space<vmem>>, vector<64x320xbf16>
    %c0_69 = arith.constant 0 : index
    %c0_70 = arith.constant 0 : index
    %c0_71 = arith.constant 0 : index
    %99 = vector.load %arg6[%c0_69, %c0_70, %c0_71] : memref<9x32x64xbf16, #tpu.memory_space<vmem>>, vector<1x32x64xbf16>
    %100 = vector.shape_cast %99 : vector<1x32x64xbf16> to vector<32x64xbf16>
    %cst_72 = arith.constant dense<0.000000e+00> : vector<32x320xf32>
    %101 = tpu.matmul %100, %98, %cst_72 {dimension_numbers = #tpu.dot_dimension_numbers<[1], [0], [0], [1], [0, 0, 1, 1], [], []>} : vector<32x64xbf16>, vector<64x320xbf16>, vector<32x320xf32> -> vector<32x320xf32>
    %102 = arith.addf %97, %101 : vector<32x320xf32>
    %c0_73 = arith.constant 0 : index
    %c108_74 = arith.constant 108 : index
    %103 = vector.load %arg12[%c0_73, %c108_74] : memref<64x512xbf16, #tpu.memory_space<vmem>>, vector<64x320xbf16>
    %c1_75 = arith.constant 1 : index
    %c0_76 = arith.constant 0 : index
    %c0_77 = arith.constant 0 : index
    %104 = vector.load %arg6[%c1_75, %c0_76, %c0_77] : memref<9x32x64xbf16, #tpu.memory_space<vmem>>, vector<1x32x64xbf16>
    %105 = vector.shape_cast %104 : vector<1x32x64xbf16> to vector<32x64xbf16>
    %cst_78 = arith.constant dense<0.000000e+00> : vector<32x320xf32>
    %106 = tpu.matmul %105, %103, %cst_78 {dimension_numbers = #tpu.dot_dimension_numbers<[1], [0], [0], [1], [0, 0, 1, 1], [], []>} : vector<32x64xbf16>, vector<64x320xbf16>, vector<32x320xf32> -> vector<32x320xf32>
    %107 = arith.addf %102, %106 : vector<32x320xf32>
    %c0_79 = arith.constant 0 : index
    %c109_80 = arith.constant 109 : index
    %108 = vector.load %arg12[%c0_79, %c109_80] : memref<64x512xbf16, #tpu.memory_space<vmem>>, vector<64x320xbf16>
    %c2_81 = arith.constant 2 : index
    %c0_82 = arith.constant 0 : index
    %c0_83 = arith.constant 0 : index
    %109 = vector.load %arg6[%c2_81, %c0_82, %c0_83] : memref<9x32x64xbf16, #tpu.memory_space<vmem>>, vector<1x32x64xbf16>
    %110 = vector.shape_cast %109 : vector<1x32x64xbf16> to vector<32x64xbf16>
    %cst_84 = arith.constant dense<0.000000e+00> : vector<32x320xf32>
    %111 = tpu.matmul %110, %108, %cst_84 {dimension_numbers = #tpu.dot_dimension_numbers<[1], [0], [0], [1], [0, 0, 1, 1], [], []>} : vector<32x64xbf16>, vector<64x320xbf16>, vector<32x320xf32> -> vector<32x320xf32>
    %112 = arith.addf %107, %111 : vector<32x320xf32>
    %c0_85 = arith.constant 0 : index
    %c127_86 = arith.constant 127 : index
    %113 = vector.load %arg12[%c0_85, %c127_86] : memref<64x512xbf16, #tpu.memory_space<vmem>>, vector<64x320xbf16>
    %c3_87 = arith.constant 3 : index
    %c0_88 = arith.constant 0 : index
    %c0_89 = arith.constant 0 : index
    %114 = vector.load %arg6[%c3_87, %c0_88, %c0_89] : memref<9x32x64xbf16, #tpu.memory_space<vmem>>, vector<1x32x64xbf16>
    %115 = vector.shape_cast %114 : vector<1x32x64xbf16> to vector<32x64xbf16>
    %cst_90 = arith.constant dense<0.000000e+00> : vector<32x320xf32>
    %116 = tpu.matmul %115, %113, %cst_90 {dimension_numbers = #tpu.dot_dimension_numbers<[1], [0], [0], [1], [0, 0, 1, 1], [], []>} : vector<32x64xbf16>, vector<64x320xbf16>, vector<32x320xf32> -> vector<32x320xf32>
    %117 = arith.addf %112, %116 : vector<32x320xf32>
    %c0_91 = arith.constant 0 : index
    %c128_92 = arith.constant 128 : index
    %118 = vector.load %arg12[%c0_91, %c128_92] : memref<64x512xbf16, #tpu.memory_space<vmem>>, vector<64x320xbf16>
    %c4_93 = arith.constant 4 : index
    %c0_94 = arith.constant 0 : index
    %c0_95 = arith.constant 0 : index
    %119 = vector.load %arg6[%c4_93, %c0_94, %c0_95] : memref<9x32x64xbf16, #tpu.memory_space<vmem>>, vector<1x32x64xbf16>
    %120 = vector.shape_cast %119 : vector<1x32x64xbf16> to vector<32x64xbf16>
    %cst_96 = arith.constant dense<0.000000e+00> : vector<32x320xf32>
    %121 = tpu.matmul %120, %118, %cst_96 {dimension_numbers = #tpu.dot_dimension_numbers<[1], [0], [0], [1], [0, 0, 1, 1], [], []>} : vector<32x64xbf16>, vector<64x320xbf16>, vector<32x320xf32> -> vector<32x320xf32>
    %122 = arith.addf %117, %121 : vector<32x320xf32>
    %c0_97 = arith.constant 0 : index
    %c129_98 = arith.constant 129 : index
    %123 = vector.load %arg12[%c0_97, %c129_98] : memref<64x512xbf16, #tpu.memory_space<vmem>>, vector<64x320xbf16>
    %c5_99 = arith.constant 5 : index
    %c0_100 = arith.constant 0 : index
    %c0_101 = arith.constant 0 : index
    %124 = vector.load %arg6[%c5_99, %c0_100, %c0_101] : memref<9x32x64xbf16, #tpu.memory_space<vmem>>, vector<1x32x64xbf16>
    %125 = vector.shape_cast %124 : vector<1x32x64xbf16> to vector<32x64xbf16>
    %cst_102 = arith.constant dense<0.000000e+00> : vector<32x320xf32>
    %126 = tpu.matmul %125, %123, %cst_102 {dimension_numbers = #tpu.dot_dimension_numbers<[1], [0], [0], [1], [0, 0, 1, 1], [], []>} : vector<32x64xbf16>, vector<64x320xbf16>, vector<32x320xf32> -> vector<32x320xf32>
    %127 = arith.addf %122, %126 : vector<32x320xf32>
    %c0_103 = arith.constant 0 : index
    %c147_104 = arith.constant 147 : index
    %128 = vector.load %arg12[%c0_103, %c147_104] : memref<64x512xbf16, #tpu.memory_space<vmem>>, vector<64x320xbf16>
    %c6_105 = arith.constant 6 : index
    %c0_106 = arith.constant 0 : index
    %c0_107 = arith.constant 0 : index
    %129 = vector.load %arg6[%c6_105, %c0_106, %c0_107] : memref<9x32x64xbf16, #tpu.memory_space<vmem>>, vector<1x32x64xbf16>
    %130 = vector.shape_cast %129 : vector<1x32x64xbf16> to vector<32x64xbf16>
    %cst_108 = arith.constant dense<0.000000e+00> : vector<32x320xf32>
    %131 = tpu.matmul %130, %128, %cst_108 {dimension_numbers = #tpu.dot_dimension_numbers<[1], [0], [0], [1], [0, 0, 1, 1], [], []>} : vector<32x64xbf16>, vector<64x320xbf16>, vector<32x320xf32> -> vector<32x320xf32>
    %132 = arith.addf %127, %131 : vector<32x320xf32>
    %c0_109 = arith.constant 0 : index
    %c148_110 = arith.constant 148 : index
    %133 = vector.load %arg12[%c0_109, %c148_110] : memref<64x512xbf16, #tpu.memory_space<vmem>>, vector<64x320xbf16>
    %c7_111 = arith.constant 7 : index
    %c0_112 = arith.constant 0 : index
    %c0_113 = arith.constant 0 : index
    %134 = vector.load %arg6[%c7_111, %c0_112, %c0_113] : memref<9x32x64xbf16, #tpu.memory_space<vmem>>, vector<1x32x64xbf16>
    %135 = vector.shape_cast %134 : vector<1x32x64xbf16> to vector<32x64xbf16>
    %cst_114 = arith.constant dense<0.000000e+00> : vector<32x320xf32>
    %136 = tpu.matmul %135, %133, %cst_114 {dimension_numbers = #tpu.dot_dimension_numbers<[1], [0], [0], [1], [0, 0, 1, 1], [], []>} : vector<32x64xbf16>, vector<64x320xbf16>, vector<32x320xf32> -> vector<32x320xf32>
    %137 = arith.addf %132, %136 : vector<32x320xf32>
    %c0_115 = arith.constant 0 : index
    %c149_116 = arith.constant 149 : index
    %138 = vector.load %arg12[%c0_115, %c149_116] : memref<64x512xbf16, #tpu.memory_space<vmem>>, vector<64x320xbf16>
    %c8_117 = arith.constant 8 : index
    %c0_118 = arith.constant 0 : index
    %c0_119 = arith.constant 0 : index
    %139 = vector.load %arg6[%c8_117, %c0_118, %c0_119] : memref<9x32x64xbf16, #tpu.memory_space<vmem>>, vector<1x32x64xbf16>
    %140 = vector.shape_cast %139 : vector<1x32x64xbf16> to vector<32x64xbf16>
    %cst_120 = arith.constant dense<0.000000e+00> : vector<32x320xf32>
    %141 = tpu.matmul %140, %138, %cst_120 {dimension_numbers = #tpu.dot_dimension_numbers<[1], [0], [0], [1], [0, 0, 1, 1], [], []>} : vector<32x64xbf16>, vector<64x320xbf16>, vector<32x320xf32> -> vector<32x320xf32>
    %142 = arith.addf %137, %141 : vector<32x320xf32>
    %c0_121 = arith.constant 0 : index
    %c0_122 = arith.constant 0 : index
    %143 = vector.load %arg7[%c0_121, %c0_122] : memref<32x1xf32, #tpu.memory_space<vmem>>, vector<32x1xf32>
    %144 = vector.broadcast %143 : vector<32x1xf32> to vector<32x320xf32>
    %145 = arith.addf %142, %144 : vector<32x320xf32>
    %cst_123 = arith.constant 0.000000e+00 : f32
    %146 = vector.broadcast %cst_123 : f32 to vector<32x320xf32>
    %147 = arith.maximumf %145, %146 : vector<32x320xf32>
    %148 = vector.broadcast %28 : vector<1x320xf32> to vector<32x320xf32>
    %149 = arith.mulf %147, %148 : vector<32x320xf32>
    %150 = arith.truncf %149 : vector<32x320xf32> to vector<32x320xbf16>
    %c0_124 = arith.constant 0 : index
    %c128_125 = arith.constant 128 : index
    %151 = vector.load %arg11[%c0_124, %c128_125] : memref<64x512xbf16, #tpu.memory_space<vmem>>, vector<32x320xbf16>
    tpu.vector_store %arg11[%c0_124, %c128_125], %150 {strides = array<i32>} : memref<64x512xbf16, #tpu.memory_space<vmem>>, vector<32x320xbf16>,
    %cst_126 = arith.constant 0.000000e+00 : f32
    %152 = vector.broadcast %cst_126 : f32 to vector<9x320xf32>
    %c0_127 = arith.constant 0 : index
    %c107_128 = arith.constant 107 : index
    %153 = vector.load %arg11[%c0_127, %c107_128] : memref<64x512xbf16, #tpu.memory_space<vmem>>, vector<32x320xbf16>
    %c0_129 = arith.constant 0 : index
    %c0_130 = arith.constant 0 : index
    %c0_131 = arith.constant 0 : index
    %154 = vector.load %arg8[%c0_129, %c0_130, %c0_131] : memref<9x9x32xbf16, #tpu.memory_space<vmem>>, vector<1x9x32xbf16>
    %155 = vector.shape_cast %154 : vector<1x9x32xbf16> to vector<9x32xbf16>
    %cst_132 = arith.constant dense<0.000000e+00> : vector<9x320xf32>
    %156 = tpu.matmul %155, %153, %cst_132 {dimension_numbers = #tpu.dot_dimension_numbers<[1], [0], [0], [1], [0, 0, 1, 1], [], []>} : vector<9x32xbf16>, vector<32x320xbf16>, vector<9x320xf32> -> vector<9x320xf32>
    %157 = arith.addf %152, %156 : vector<9x320xf32>
    %c0_133 = arith.constant 0 : index
    %c108_134 = arith.constant 108 : index
    %158 = vector.load %arg11[%c0_133, %c108_134] : memref<64x512xbf16, #tpu.memory_space<vmem>>, vector<32x320xbf16>
    %c1_135 = arith.constant 1 : index
    %c0_136 = arith.constant 0 : index
    %c0_137 = arith.constant 0 : index
    %159 = vector.load %arg8[%c1_135, %c0_136, %c0_137] : memref<9x9x32xbf16, #tpu.memory_space<vmem>>, vector<1x9x32xbf16>
    %160 = vector.shape_cast %159 : vector<1x9x32xbf16> to vector<9x32xbf16>
    %cst_138 = arith.constant dense<0.000000e+00> : vector<9x320xf32>
    %161 = tpu.matmul %160, %158, %cst_138 {dimension_numbers = #tpu.dot_dimension_numbers<[1], [0], [0], [1], [0, 0, 1, 1], [], []>} : vector<9x32xbf16>, vector<32x320xbf16>, vector<9x320xf32> -> vector<9x320xf32>
    %162 = arith.addf %157, %161 : vector<9x320xf32>
    %c0_139 = arith.constant 0 : index
    %c109_140 = arith.constant 109 : index
    %163 = vector.load %arg11[%c0_139, %c109_140] : memref<64x512xbf16, #tpu.memory_space<vmem>>, vector<32x320xbf16>
    %c2_141 = arith.constant 2 : index
    %c0_142 = arith.constant 0 : index
    %c0_143 = arith.constant 0 : index
    %164 = vector.load %arg8[%c2_141, %c0_142, %c0_143] : memref<9x9x32xbf16, #tpu.memory_space<vmem>>, vector<1x9x32xbf16>
    %165 = vector.shape_cast %164 : vector<1x9x32xbf16> to vector<9x32xbf16>
    %cst_144 = arith.constant dense<0.000000e+00> : vector<9x320xf32>
    %166 = tpu.matmul %165, %163, %cst_144 {dimension_numbers = #tpu.dot_dimension_numbers<[1], [0], [0], [1], [0, 0, 1, 1], [], []>} : vector<9x32xbf16>, vector<32x320xbf16>, vector<9x320xf32> -> vector<9x320xf32>
    %167 = arith.addf %162, %166 : vector<9x320xf32>
    %c0_145 = arith.constant 0 : index
    %c127_146 = arith.constant 127 : index
    %168 = vector.load %arg11[%c0_145, %c127_146] : memref<64x512xbf16, #tpu.memory_space<vmem>>, vector<32x320xbf16>
    %c3_147 = arith.constant 3 : index
    %c0_148 = arith.constant 0 : index
    %c0_149 = arith.constant 0 : index
    %169 = vector.load %arg8[%c3_147, %c0_148, %c0_149] : memref<9x9x32xbf16, #tpu.memory_space<vmem>>, vector<1x9x32xbf16>
    %170 = vector.shape_cast %169 : vector<1x9x32xbf16> to vector<9x32xbf16>
    %cst_150 = arith.constant dense<0.000000e+00> : vector<9x320xf32>
    %171 = tpu.matmul %170, %168, %cst_150 {dimension_numbers = #tpu.dot_dimension_numbers<[1], [0], [0], [1], [0, 0, 1, 1], [], []>} : vector<9x32xbf16>, vector<32x320xbf16>, vector<9x320xf32> -> vector<9x320xf32>
    %172 = arith.addf %167, %171 : vector<9x320xf32>
    %c0_151 = arith.constant 0 : index
    %c128_152 = arith.constant 128 : index
    %173 = vector.load %arg11[%c0_151, %c128_152] : memref<64x512xbf16, #tpu.memory_space<vmem>>, vector<32x320xbf16>
    %c4_153 = arith.constant 4 : index
    %c0_154 = arith.constant 0 : index
    %c0_155 = arith.constant 0 : index
    %174 = vector.load %arg8[%c4_153, %c0_154, %c0_155] : memref<9x9x32xbf16, #tpu.memory_space<vmem>>, vector<1x9x32xbf16>
    %175 = vector.shape_cast %174 : vector<1x9x32xbf16> to vector<9x32xbf16>
    %cst_156 = arith.constant dense<0.000000e+00> : vector<9x320xf32>
    %176 = tpu.matmul %175, %173, %cst_156 {dimension_numbers = #tpu.dot_dimension_numbers<[1], [0], [0], [1], [0, 0, 1, 1], [], []>} : vector<9x32xbf16>, vector<32x320xbf16>, vector<9x320xf32> -> vector<9x320xf32>
    %177 = arith.addf %172, %176 : vector<9x320xf32>
    %c0_157 = arith.constant 0 : index
    %c129_158 = arith.constant 129 : index
    %178 = vector.load %arg11[%c0_157, %c129_158] : memref<64x512xbf16, #tpu.memory_space<vmem>>, vector<32x320xbf16>
    %c5_159 = arith.constant 5 : index
    %c0_160 = arith.constant 0 : index
    %c0_161 = arith.constant 0 : index
    %179 = vector.load %arg8[%c5_159, %c0_160, %c0_161] : memref<9x9x32xbf16, #tpu.memory_space<vmem>>, vector<1x9x32xbf16>
    %180 = vector.shape_cast %179 : vector<1x9x32xbf16> to vector<9x32xbf16>
    %cst_162 = arith.constant dense<0.000000e+00> : vector<9x320xf32>
    %181 = tpu.matmul %180, %178, %cst_162 {dimension_numbers = #tpu.dot_dimension_numbers<[1], [0], [0], [1], [0, 0, 1, 1], [], []>} : vector<9x32xbf16>, vector<32x320xbf16>, vector<9x320xf32> -> vector<9x320xf32>
    %182 = arith.addf %177, %181 : vector<9x320xf32>
    %c0_163 = arith.constant 0 : index
    %c147_164 = arith.constant 147 : index
    %183 = vector.load %arg11[%c0_163, %c147_164] : memref<64x512xbf16, #tpu.memory_space<vmem>>, vector<32x320xbf16>
    %c6_165 = arith.constant 6 : index
    %c0_166 = arith.constant 0 : index
    %c0_167 = arith.constant 0 : index
    %184 = vector.load %arg8[%c6_165, %c0_166, %c0_167] : memref<9x9x32xbf16, #tpu.memory_space<vmem>>, vector<1x9x32xbf16>
    %185 = vector.shape_cast %184 : vector<1x9x32xbf16> to vector<9x32xbf16>
    %cst_168 = arith.constant dense<0.000000e+00> : vector<9x320xf32>
    %186 = tpu.matmul %185, %183, %cst_168 {dimension_numbers = #tpu.dot_dimension_numbers<[1], [0], [0], [1], [0, 0, 1, 1], [], []>} : vector<9x32xbf16>, vector<32x320xbf16>, vector<9x320xf32> -> vector<9x320xf32>
    %187 = arith.addf %182, %186 : vector<9x320xf32>
    %c0_169 = arith.constant 0 : index
    %c148_170 = arith.constant 148 : index
    %188 = vector.load %arg11[%c0_169, %c148_170] : memref<64x512xbf16, #tpu.memory_space<vmem>>, vector<32x320xbf16>
    %c7_171 = arith.constant 7 : index
    %c0_172 = arith.constant 0 : index
    %c0_173 = arith.constant 0 : index
    %189 = vector.load %arg8[%c7_171, %c0_172, %c0_173] : memref<9x9x32xbf16, #tpu.memory_space<vmem>>, vector<1x9x32xbf16>
    %190 = vector.shape_cast %189 : vector<1x9x32xbf16> to vector<9x32xbf16>
    %cst_174 = arith.constant dense<0.000000e+00> : vector<9x320xf32>
    %191 = tpu.matmul %190, %188, %cst_174 {dimension_numbers = #tpu.dot_dimension_numbers<[1], [0], [0], [1], [0, 0, 1, 1], [], []>} : vector<9x32xbf16>, vector<32x320xbf16>, vector<9x320xf32> -> vector<9x320xf32>
    %192 = arith.addf %187, %191 : vector<9x320xf32>
    %c0_175 = arith.constant 0 : index
    %c149_176 = arith.constant 149 : index
    %193 = vector.load %arg11[%c0_175, %c149_176] : memref<64x512xbf16, #tpu.memory_space<vmem>>, vector<32x320xbf16>
    %c8_177 = arith.constant 8 : index
    %c0_178 = arith.constant 0 : index
    %c0_179 = arith.constant 0 : index
    %194 = vector.load %arg8[%c8_177, %c0_178, %c0_179] : memref<9x9x32xbf16, #tpu.memory_space<vmem>>, vector<1x9x32xbf16>
    %195 = vector.shape_cast %194 : vector<1x9x32xbf16> to vector<9x32xbf16>
    %cst_180 = arith.constant dense<0.000000e+00> : vector<9x320xf32>
    %196 = tpu.matmul %195, %193, %cst_180 {dimension_numbers = #tpu.dot_dimension_numbers<[1], [0], [0], [1], [0, 0, 1, 1], [], []>} : vector<9x32xbf16>, vector<32x320xbf16>, vector<9x320xf32> -> vector<9x320xf32>
    %197 = arith.addf %192, %196 : vector<9x320xf32>
    %c0_181 = arith.constant 0 : index
    %c0_182 = arith.constant 0 : index
    %198 = vector.load %arg9[%c0_181, %c0_182] : memref<9x1xf32, #tpu.memory_space<vmem>>, vector<9x1xf32>
    %199 = vector.broadcast %198 : vector<9x1xf32> to vector<9x320xf32>
    %200 = arith.addf %197, %199 : vector<9x320xf32>
    %c0_183 = arith.constant 0 : index
    %c0_184 = arith.constant 0 : index
    %c0_185 = arith.constant 0 : index
    %201 = vector.load %arg10[%c0_183, %c0_184, %c0_185] : memref<1x9x320xf32, #tpu.memory_space<vmem>>, vector<1x9x320xf32>
    %202 = vector.shape_cast %201 : vector<1x9x320xf32> to vector<9x320xf32>
    %203 = vector.shape_cast %200 : vector<9x320xf32> to vector<1x9x320xf32>
    tpu.vector_store %arg10[%c0_183, %c0_184, %c0_185], %203 {strides = array<i32>} : memref<1x9x320xf32, #tpu.memory_space<vmem>>, vector<1x9x320xf32>,
    return
  }
  func.func @transform_0(%arg0: i32) -> (i32, i32, i32) {
    %c0_i32 = arith.constant 0 : i32
    %c0_i32_0 = arith.constant 0 : i32
    %c0_i32_1 = arith.constant 0 : i32
    return %arg0, %c0_i32, %c0_i32_0 : i32, i32, i32
  }
  func.func @transform_1(%arg0: i32) -> (i32, i32) {
    %c0_i32 = arith.constant 0 : i32
    %c0_i32_0 = arith.constant 0 : i32
    %c0_i32_1 = arith.constant 0 : i32
    return %c0_i32, %c0_i32_0 : i32, i32
  }
  func.func @transform_2(%arg0: i32) -> (i32, i32) {
    %c0_i32 = arith.constant 0 : i32
    %c0_i32_0 = arith.constant 0 : i32
    %c0_i32_1 = arith.constant 0 : i32
    return %c0_i32, %c0_i32_0 : i32, i32
  }
  func.func @transform_3(%arg0: i32) -> (i32, i32, i32) {
    %c0_i32 = arith.constant 0 : i32
    %c0_i32_0 = arith.constant 0 : i32
    %c0_i32_1 = arith.constant 0 : i32
    %c0_i32_2 = arith.constant 0 : i32
    return %c0_i32, %c0_i32_0, %c0_i32_1 : i32, i32, i32
  }
  func.func @transform_4(%arg0: i32) -> (i32, i32) {
    %c0_i32 = arith.constant 0 : i32
    %c0_i32_0 = arith.constant 0 : i32
    %c0_i32_1 = arith.constant 0 : i32
    return %c0_i32, %c0_i32_0 : i32, i32
  }
  func.func @transform_5(%arg0: i32) -> (i32, i32, i32) {
    %c0_i32 = arith.constant 0 : i32
    %c0_i32_0 = arith.constant 0 : i32
    %c0_i32_1 = arith.constant 0 : i32
    %c0_i32_2 = arith.constant 0 : i32
    return %c0_i32, %c0_i32_0, %c0_i32_1 : i32, i32, i32
  }
  func.func @transform_6(%arg0: i32) -> (i32, i32) {
    %c0_i32 = arith.constant 0 : i32
    %c0_i32_0 = arith.constant 0 : i32
    %c0_i32_1 = arith.constant 0 : i32
    return %c0_i32, %c0_i32_0 : i32, i32
  }
  func.func @transform_7(%arg0: i32) -> (i32, i32, i32) {
    %c0_i32 = arith.constant 0 : i32
    %c0_i32_0 = arith.constant 0 : i32
    %c0_i32_1 = arith.constant 0 : i32
    %c0_i32_2 = arith.constant 0 : i32
    return %c0_i32, %c0_i32_0, %c0_i32_1 : i32, i32, i32
  }
  func.func @transform_8(%arg0: i32) -> (i32, i32) {
    %c0_i32 = arith.constant 0 : i32
    %c0_i32_0 = arith.constant 0 : i32
    %c0_i32_1 = arith.constant 0 : i32
    return %c0_i32, %c0_i32_0 : i32, i32
  }
  func.func @transform_9(%arg0: i32) -> (i32, i32, i32) {
    %c0_i32 = arith.constant 0 : i32
    %c0_i32_0 = arith.constant 0 : i32
    %c0_i32_1 = arith.constant 0 : i32
    return %arg0, %c0_i32, %c0_i32_0 : i32, i32, i32
  }
}

</mosaic_0001>

<llo_original>
// kernel: super_resolution_forward.1
$region0: #{super_resolution_forward.1}
  #allocation0 [shape = 'u32[]', space=smem, size = 0x4, offset = 0x4, fixed_abs, tag = 'smem constant byte address 0x4 - core index']
  #allocation1 [shape = 'u32[72,128]{1,0:T(1,128)}', space=vmem, size = 0x9000, scoped, tag = 'internal scratch']
  #allocation2 [shape = 'bf16[64,512]{1,0:T(8,128)(2,1)}', space=vmem, size = 0x10000, scoped, tag = 'scratch operand']
  #allocation3 [shape = 'bf16[64,512]{1,0:T(8,128)(2,1)}', space=vmem, size = 0x10000, scoped, tag = 'scratch operand']
  %s0 = inlined_call_operand.vmem [shape: bf16[2,32,320], index: 0, kind: input, shape index: {}]
  %s1 = inlined_call_operand.vmem [shape: bf16[64,32], index: 1, kind: input, shape index: {}]
  %s2 = inlined_call_operand.vmem [shape: f32[64,1], index: 2, kind: input, shape index: {}]
  %s3 = inlined_call_operand.vmem [shape: bf16[9,64,64], index: 3, kind: input, shape index: {}]
  %s4 = inlined_call_operand.vmem [shape: f32[64,1], index: 4, kind: input, shape index: {}]
  %s5 = inlined_call_operand.vmem [shape: bf16[9,32,64], index: 5, kind: input, shape index: {}]
  %s6 = inlined_call_operand.vmem [shape: f32[32,1], index: 6, kind: input, shape index: {}]
  %s7 = inlined_call_operand.vmem [shape: bf16[9,9,32], index: 7, kind: input, shape index: {}]
  %s8 = inlined_call_operand.vmem [shape: f32[9,1], index: 8, kind: input, shape index: {}]
  %s9 = inlined_call_operand.vmem [shape: f32[2,9,320], index: 9, kind: output, shape index: {}]
  %s10 = sld [smem:[#allocation0]]
  $region69: #{super_resolution_forward.1} parent=0
    _
  %s12 = ssub.s32 1, %s10
  %s13 = scalar_select 0, %s12, %s10
  loop: start=0, step=1, limit=4
  $region2: #{super_resolution_forward.1} parent=0 // loop_pre_header
    _
  $region3: #{super_resolution_forward.1} parent=0 // loop_header
    %s15 = sphi 0, %s19
    %p16 = scmp.ge.s32.totalorder %s15, 4
    %s25 = sphi 0, %s27
    %s28 = sphi 0, %s25
    %s29 = sphi 0, %s28
    %s45 = sphi 0, %s29
    %s49 = sphi 0, %s49
    %s51 = sphi 0, %s49
    %s52 = sphi 0, %s51
    %s66 = sphi 0, %s52
    %s70 = sphi 0, %s70
    %s72 = sphi 0, %s70
    %s73 = sphi 0, %s72
    %s87 = sphi 0, %s73
    %s91 = sphi 0, %s91
    %s93 = sphi 0, %s91
    %s94 = sphi 0, %s93
    %s108 = sphi 0, %s94
    %s112 = sphi 0, %s112
    %s114 = sphi 0, %s112
    %s115 = sphi 0, %s114
    %s129 = sphi 0, %s115
    %s133 = sphi 0, %s133
    %s135 = sphi 0, %s133
    %s136 = sphi 0, %s135
    %s150 = sphi 0, %s136
    %s154 = sphi 0, %s154
    %s156 = sphi 0, %s154
    %s157 = sphi 0, %s156
    %s171 = sphi 0, %s157
    %s175 = sphi 0, %s175
    %s177 = sphi 0, %s175
    %s178 = sphi 0, %s177
    %s192 = sphi 0, %s178
    %s196 = sphi 0, %s196
    %s198 = sphi 0, %s196
    %s199 = sphi 0, %s198
    %s213 = sphi 0, %s199
    %s219 = sphi 0, %s221
    %s222 = sphi 0, %s219
    %s223 = sphi 0, %s222
    %s239 = sphi 0, %s223
  $region4: #{super_resolution_forward.1} parent=0 // loop_header_branch
    %18 = sbr.rel (%p16) target = $region8
  $region5: #{super_resolution_forward.1} parent=0 // loop_body
    %s20 = ssub.s32 %s15, 1
    %s21 = ssub.s32 %s15, 2
    %s22 = sadd.s32 %s15, 1
    %s23 = ssub.s32 %s15, %s22
    %p24 = scmp.eq.s32.totalorder %s23, 0
    %s26 = sadd.s32 %s25, 1
    %s27 = scalar_select %p24, %s25, %s26
    %p30 = pneg %p24
    %p31 = scmp.eq.s32.totalorder %s15, 1
    %p32 = por %p30, %p31
    %p33 = scmp.ne.s32.totalorder %s25, %s28
    %p34 = scmp.eq.s32.totalorder %s15, 0
    %p35 = por %p33, %p34
    %p36 = scmp.ne.s32.totalorder %s25, %s28
    %p37 = scmp.eq.s32.totalorder %s20, 1
    %p38 = por %p36, %p37
    %p39 = scmp.ne.s32.totalorder %s28, %s29
    %p40 = scmp.eq.s32.totalorder %s20, 0
    %p41 = por %p39, %p40
    %p42 = scmp.ne.s32.totalorder %s28, %s29
    %p43 = scmp.eq.s32.totalorder %s21, 1
    %p44 = por %p42, %p43
    %p46 = scmp.ne.s32.totalorder %s29, %s45
    %p47 = scmp.eq.s32.totalorder %s21, 0
    %p48 = por %p46, %p47
    %s50 = sadd.s32 %s49, 1
    %p53 = scmp.eq.s32.totalorder %s15, 1
    %p54 = scmp.ne.s32.totalorder %s49, %s51
    %p55 = scmp.eq.s32.totalorder %s15, 0
    %p56 = por %p54, %p55
    %p57 = scmp.ne.s32.totalorder %s49, %s51
    %p58 = scmp.eq.s32.totalorder %s20, 1
    %p59 = por %p57, %p58
    %p60 = scmp.ne.s32.totalorder %s51, %s52
    %p61 = scmp.eq.s32.totalorder %s20, 0
    %p62 = por %p60, %p61
    %p63 = scmp.ne.s32.totalorder %s51, %s52
    %p64 = scmp.eq.s32.totalorder %s21, 1
    %p65 = por %p63, %p64
    %p67 = scmp.ne.s32.totalorder %s52, %s66
    %p68 = scmp.eq.s32.totalorder %s21, 0
    %p69 = por %p67, %p68
    %s71 = sadd.s32 %s70, 1
    %p74 = scmp.eq.s32.totalorder %s15, 1
    %p75 = scmp.ne.s32.totalorder %s70, %s72
    %p76 = scmp.eq.s32.totalorder %s15, 0
    %p77 = por %p75, %p76
    %p78 = scmp.ne.s32.totalorder %s70, %s72
    %p79 = scmp.eq.s32.totalorder %s20, 1
    %p80 = por %p78, %p79
    %p81 = scmp.ne.s32.totalorder %s72, %s73
    %p82 = scmp.eq.s32.totalorder %s20, 0
    %p83 = por %p81, %p82
    %p84 = scmp.ne.s32.totalorder %s72, %s73
    %p85 = scmp.eq.s32.totalorder %s21, 1
    %p86 = por %p84, %p85
    %p88 = scmp.ne.s32.totalorder %s73, %s87
    %p89 = scmp.eq.s32.totalorder %s21, 0
    %p90 = por %p88, %p89
    %s92 = sadd.s32 %s91, 1
    %p95 = scmp.eq.s32.totalorder %s15, 1
    %p96 = scmp.ne.s32.totalorder %s91, %s93
    %p97 = scmp.eq.s32.totalorder %s15, 0
    %p98 = por %p96, %p97
    %p99 = scmp.ne.s32.totalorder %s91, %s93
    %p100 = scmp.eq.s32.totalorder %s20, 1
    %p101 = por %p99, %p100
    %p102 = scmp.ne.s32.totalorder %s93, %s94
    %p103 = scmp.eq.s32.totalorder %s20, 0
    %p104 = por %p102, %p103
    %p105 = scmp.ne.s32.totalorder %s93, %s94
    %p106 = scmp.eq.s32.totalorder %s21, 1
    %p107 = por %p105, %p106
    %p109 = scmp.ne.s32.totalorder %s94, %s108
    %p110 = scmp.eq.s32.totalorder %s21, 0
    %p111 = por %p109, %p110
    %s113 = sadd.s32 %s112, 1
    %p116 = scmp.eq.s32.totalorder %s15, 1
    %p117 = scmp.ne.s32.totalorder %s112, %s114
    %p118 = scmp.eq.s32.totalorder %s15, 0
    %p119 = por %p117, %p118
    %p120 = scmp.ne.s32.totalorder %s112, %s114
    %p121 = scmp.eq.s32.totalorder %s20, 1
    %p122 = por %p120, %p121
    %p123 = scmp.ne.s32.totalorder %s114, %s115
    %p124 = scmp.eq.s32.totalorder %s20, 0
    %p125 = por %p123, %p124
    %p126 = scmp.ne.s32.totalorder %s114, %s115
    %p127 = scmp.eq.s32.totalorder %s21, 1
    %p128 = por %p126, %p127
    %p130 = scmp.ne.s32.totalorder %s115, %s129
    %p131 = scmp.eq.s32.totalorder %s21, 0
    %p132 = por %p130, %p131
    %s134 = sadd.s32 %s133, 1
    %p137 = scmp.eq.s32.totalorder %s15, 1
    %p138 = scmp.ne.s32.totalorder %s133, %s135
    %p139 = scmp.eq.s32.totalorder %s15, 0
    %p140 = por %p138, %p139
    %p141 = scmp.ne.s32.totalorder %s133, %s135
    %p142 = scmp.eq.s32.totalorder %s20, 1
    %p143 = por %p141, %p142
    %p144 = scmp.ne.s32.totalorder %s135, %s136
    %p145 = scmp.eq.s32.totalorder %s20, 0
    %p146 = por %p144, %p145
    %p147 = scmp.ne.s32.totalorder %s135, %s136
    %p148 = scmp.eq.s32.totalorder %s21, 1
    %p149 = por %p147, %p148
    %p151 = scmp.ne.s32.totalorder %s136, %s150
    %p152 = scmp.eq.s32.totalorder %s21, 0
    %p153 = por %p151, %p152
    %s155 = sadd.s32 %s154, 1
    %p158 = scmp.eq.s32.totalorder %s15, 1
    %p159 = scmp.ne.s32.totalorder %s154, %s156
    %p160 = scmp.eq.s32.totalorder %s15, 0
    %p161 = por %p159, %p160
    %p162 = scmp.ne.s32.totalorder %s154, %s156
    %p163 = scmp.eq.s32.totalorder %s20, 1
    %p164 = por %p162, %p163
    %p165 = scmp.ne.s32.totalorder %s156, %s157
    %p166 = scmp.eq.s32.totalorder %s20, 0
    %p167 = por %p165, %p166
    %p168 = scmp.ne.s32.totalorder %s156, %s157
    %p169 = scmp.eq.s32.totalorder %s21, 1
    %p170 = por %p168, %p169
    %p172 = scmp.ne.s32.totalorder %s157, %s171
    %p173 = scmp.eq.s32.totalorder %s21, 0
    %p174 = por %p172, %p173
    %s176 = sadd.s32 %s175, 1
    %p179 = scmp.eq.s32.totalorder %s15, 1
    %p180 = scmp.ne.s32.totalorder %s175, %s177
    %p181 = scmp.eq.s32.totalorder %s15, 0
    %p182 = por %p180, %p181
    %p183 = scmp.ne.s32.totalorder %s175, %s177
    %p184 = scmp.eq.s32.totalorder %s20, 1
    %p185 = por %p183, %p184
    %p186 = scmp.ne.s32.totalorder %s177, %s178
    %p187 = scmp.eq.s32.totalorder %s20, 0
    %p188 = por %p186, %p187
    %p189 = scmp.ne.s32.totalorder %s177, %s178
    %p190 = scmp.eq.s32.totalorder %s21, 1
    %p191 = por %p189, %p190
    %p193 = scmp.ne.s32.totalorder %s178, %s192
    %p194 = scmp.eq.s32.totalorder %s21, 0
    %p195 = por %p193, %p194
    %s197 = sadd.s32 %s196, 1
    %p200 = scmp.eq.s32.totalorder %s15, 1
    %p201 = scmp.ne.s32.totalorder %s196, %s198
    %p202 = scmp.eq.s32.totalorder %s15, 0
    %p203 = por %p201, %p202
    %p204 = scmp.ne.s32.totalorder %s196, %s198
    %p205 = scmp.eq.s32.totalorder %s20, 1
    %p206 = por %p204, %p205
    %p207 = scmp.ne.s32.totalorder %s198, %s199
    %p208 = scmp.eq.s32.totalorder %s20, 0
    %p209 = por %p207, %p208
    %p210 = scmp.ne.s32.totalorder %s198, %s199
    %p211 = scmp.eq.s32.totalorder %s21, 1
    %p212 = por %p210, %p211
    %p214 = scmp.ne.s32.totalorder %s199, %s213
    %p215 = scmp.eq.s32.totalorder %s21, 0
    %p216 = por %p214, %p215
    %s217 = ssub.s32 %s15, %s22
    %p218 = scmp.eq.s32.totalorder %s217, 0
    %s220 = sadd.s32 %s219, 1
    %s221 = scalar_select %p218, %s219, %s220
    %p224 = pneg %p218
    %p225 = scmp.eq.s32.totalorder %s15, 1
    %p226 = por %p224, %p225
    %p227 = scmp.ne.s32.totalorder %s219, %s222
    %p228 = scmp.eq.s32.totalorder %s15, 0
    %p229 = por %p227, %p228
    %p230 = scmp.ne.s32.totalorder %s219, %s222
    %p231 = scmp.eq.s32.totalorder %s20, 1
    %p232 = por %p230, %p231
    %p233 = scmp.ne.s32.totalorder %s222, %s223
    %p234 = scmp.eq.s32.totalorder %s20, 0
    %p235 = por %p233, %p234
    %p236 = scmp.ne.s32.totalorder %s222, %s223
    %p237 = scmp.eq.s32.totalorder %s21, 1
    %p238 = por %p236, %p237
    %p240 = scmp.ne.s32.totalorder %s223, %s239
    %p241 = scmp.eq.s32.totalorder %s21, 0
    %p242 = por %p240, %p241
    %p243 = scmp.le.s32.totalorder 1, %s15
    %p244 = scmp.lt.s32.totalorder %s15, 3
    %p245 = pnand %p243, %p244
    %p246 = pneg %p245
    // Predicated region
    $region9: #{super_resolution_forward.1} parent=5 // pred_check
      _
    $region10: #{super_resolution_forward.1} parent=5 // pred_check_branch
      %248 = sbr.rel (%p245) target = $region12
    $region11: #{super_resolution_forward.1} parent=5 // pred_region
      %s249 = ssub.s32 %s15, 1
      // Predicated region
      $region13: #{super_resolution_forward.1} parent=11 // pred_check
        %p250 = pneg %p62
      $region14: #{super_resolution_forward.1} parent=11 // pred_check_branch
        %252 = sbr.rel (%p250) target = $region16
      $region15: #{super_resolution_forward.1} parent=11 // pred_region
        _
      $region16: #{super_resolution_forward.1} parent=11 // pred_fallthru
        _
      // Predicated region
      $region17: #{super_resolution_forward.1} parent=11 // pred_check
        %p253 = pneg %p83
      $region18: #{super_resolution_forward.1} parent=11 // pred_check_branch
        %255 = sbr.rel (%p253) target = $region20
      $region19: #{super_resolution_forward.1} parent=11 // pred_region
        _
      $region20: #{super_resolution_forward.1} parent=11 // pred_fallthru
        _
      // Predicated region
      $region21: #{super_resolution_forward.1} parent=11 // pred_check
        %p256 = pneg %p104
      $region22: #{super_resolution_forward.1} parent=11 // pred_check_branch
        %258 = sbr.rel (%p256) target = $region24
      $region23: #{super_resolution_forward.1} parent=11 // pred_region
        _
      $region24: #{super_resolution_forward.1} parent=11 // pred_fallthru
        _
      // Predicated region
      $region25: #{super_resolution_forward.1} parent=11 // pred_check
        %p259 = pneg %p125
      $region26: #{super_resolution_forward.1} parent=11 // pred_check_branch
        %261 = sbr.rel (%p259) target = $region28
      $region27: #{super_resolution_forward.1} parent=11 // pred_region
        _
      $region28: #{super_resolution_forward.1} parent=11 // pred_fallthru
        _
      // Predicated region
      $region29: #{super_resolution_forward.1} parent=11 // pred_check
        %p262 = pneg %p146
      $region30: #{super_resolution_forward.1} parent=11 // pred_check_branch
        %264 = sbr.rel (%p262) target = $region32
      $region31: #{super_resolution_forward.1} parent=11 // pred_region
        _
      $region32: #{super_resolution_forward.1} parent=11 // pred_fallthru
        _
      // Predicated region
      $region33: #{super_resolution_forward.1} parent=11 // pred_check
        %p265 = pneg %p167
      $region34: #{super_resolution_forward.1} parent=11 // pred_check_branch
        %267 = sbr.rel (%p265) target = $region36
      $region35: #{super_resolution_forward.1} parent=11 // pred_region
        _
      $region36: #{super_resolution_forward.1} parent=11 // pred_fallthru
        _
      // Predicated region
      $region37: #{super_resolution_forward.1} parent=11 // pred_check
        %p268 = pneg %p188
      $region38: #{super_resolution_forward.1} parent=11 // pred_check_branch
        %270 = sbr.rel (%p268) target = $region40
      $region39: #{super_resolution_forward.1} parent=11 // pred_region
        _
      $region40: #{super_resolution_forward.1} parent=11 // pred_fallthru
        _
      // Predicated region
      $region41: #{super_resolution_forward.1} parent=11 // pred_check
        %p271 = pneg %p209
      $region42: #{super_resolution_forward.1} parent=11 // pred_check_branch
        %273 = sbr.rel (%p271) target = $region44
      $region43: #{super_resolution_forward.1} parent=11 // pred_region
        _
      $region44: #{super_resolution_forward.1} parent=11 // pred_fallthru
        _
    $region12: #{super_resolution_forward.1} parent=5 // pred_fallthru
      _
    %p274 = scmp.lt.s32.totalorder %s15, 2
    // Predicated region
    $region45: #{super_resolution_forward.1} parent=5 // pred_check
      %p275 = pneg %p274
    $region46: #{super_resolution_forward.1} parent=5 // pred_check_branch
      %277 = sbr.rel (%p275) target = $region48
    $region47: #{super_resolution_forward.1} parent=5 // pred_region
      // Predicated region
      $region49: #{super_resolution_forward.1} parent=47 // pred_check
        %p278 = pneg %p35
      $region50: #{super_resolution_forward.1} parent=47 // pred_check_branch
        %280 = sbr.rel (%p278) target = $region52
      $region51: #{super_resolution_forward.1} parent=47 // pred_region
        %p281 = scmp.lt.s32.totalorder %s15, 1
        %s282 = scalar_select %p281, %s15, 1
        %s283 = smul.addr %s282, 12
        %s284 = smul.addr %s283, 4
        %s285 = scalar_lea.vmem %s0, %s284
      $region52: #{super_resolution_forward.1} parent=47 // pred_fallthru
        _
    $region48: #{super_resolution_forward.1} parent=5 // pred_fallthru
      _
    %p286 = scmp.le.s32.totalorder 1, %s15
    %p287 = scmp.lt.s32.totalorder %s15, 3
    %p288 = pnand %p286, %p287
    %p289 = pneg %p288
    // Predicated region
    $region53: #{super_resolution_forward.1} parent=5 // pred_check
      _
    $region54: #{super_resolution_forward.1} parent=5 // pred_check_branch
      %291 = sbr.rel (%p288) target = $region56
    $region55: #{super_resolution_forward.1} parent=5 // pred_region
      %s292 = ssub.s32 %s15, 1
      %p293 = scmp.lt.s32.totalorder %s20, 1
      %s294 = scalar_select %p293, %s20, 1
      %s295 = smul.addr %s294, 12
      %s296 = smul.addr %s295, 4
      %s297 = scalar_lea.vmem %s0, %s296
      %p298 = pneg %p41
      %p299 = pneg %p38
      %p300 = pneg %p62
      %p301 = pneg %p59
      %p302 = pneg %p83
      %p303 = pneg %p80
      %p304 = pneg %p104
      %p305 = pneg %p101
      %p306 = pneg %p125
      %p307 = pneg %p122
      %p308 = pneg %p146
      %p309 = pneg %p143
      %p310 = pneg %p167
      %p311 = pneg %p164
      %p312 = pneg %p188
      %p313 = pneg %p185
      %p314 = pneg %p209
      %p315 = pneg %p206
      %p316 = pneg %p235
      %p317 = pneg %p232
      %p318 = scmp.lt.s32.totalorder %s20, 1
      %s319 = scalar_select %p318, %s20, 1
      %s320 = smul.addr %s319, 6
      %s321 = smul.addr %s320, 8
      %s322 = scalar_lea.vmem %s9, %s321
      %p323 = scmp.lt.s32.totalorder %s20, 1
      %s324 = scalar_select %p323, %s20, 1
      %s325 = smul.addr %s324, 12
      %s326 = smul.addr %s325, 4
      %s327 = scalar_lea.vmem %s0, %s326
      %p328 = scmp.lt.s32.totalorder %s20, 1
      %s329 = scalar_select %p328, %s20, 1
      %s330 = smul.addr %s329, 6
      %s331 = smul.addr %s330, 8
      %s332 = scalar_lea.vmem %s9, %s331
      %334 = vst [vmem:[#allocation2] sm:$0xf] 0
      %335 = vst [vmem:[#allocation2 + $0x10] sm:$0xf] 0
      %336 = vst [vmem:[#allocation2 + $0x20] sm:$0xf] 0
      %337 = vst [vmem:[#allocation2 + $0x30] sm:$0xf] 0
      %338 = vst [vmem:[#allocation2 + $0x40] sm:$0xf] 0
      %339 = vst [vmem:[#allocation2 + $0x50] sm:$0xf] 0
      %340 = vst [vmem:[#allocation2 + $0x60] sm:$0xf] 0
      %341 = vst [vmem:[#allocation2 + $0x70] sm:$0xf] 0
      %vm342 = vcmask 1043968
      %343 = vst.msk [vmem:[#allocation2 + $0xc] sm:$0xf] %vm342, 0
      %344 = vst.msk [vmem:[#allocation2 + $0x1c] sm:$0xf] %vm342, 0
      %345 = vst.msk [vmem:[#allocation2 + $0x2c] sm:$0xf] %vm342, 0
      %346 = vst.msk [vmem:[#allocation2 + $0x3c] sm:$0xf] %vm342, 0
      %347 = vst.msk [vmem:[#allocation2 + $0x4c] sm:$0xf] %vm342, 0
      %348 = vst.msk [vmem:[#allocation2 + $0x5c] sm:$0xf] %vm342, 0
      %349 = vst.msk [vmem:[#allocation2 + $0x6c] sm:$0xf] %vm342, 0
      %350 = vst.msk [vmem:[#allocation2 + $0x7c] sm:$0xf] %vm342, 0
      %351 = vst [vmem:[#allocation3] sm:$0xf] 0
      %352 = vst [vmem:[#allocation3 + $0x10] sm:$0xf] 0
      %353 = vst [vmem:[#allocation3 + $0x20] sm:$0xf] 0
      %354 = vst [vmem:[#allocation3 + $0x30] sm:$0xf] 0
      %355 = vst [vmem:[#allocation3 + $0x40] sm:$0xf] 0
      %356 = vst [vmem:[#allocation3 + $0x50] sm:$0xf] 0
      %357 = vst [vmem:[#allocation3 + $0x60] sm:$0xf] 0
      %358 = vst [vmem:[#allocation3 + $0x70] sm:$0xf] 0
      %359 = vst.msk [vmem:[#allocation3 + $0xc] sm:$0xf] %vm342, 0
      %360 = vst.msk [vmem:[#allocation3 + $0x1c] sm:$0xf] %vm342, 0
      %361 = vst.msk [vmem:[#allocation3 + $0x2c] sm:$0xf] %vm342, 0
      %362 = vst.msk [vmem:[#allocation3 + $0x3c] sm:$0xf] %vm342, 0
      %363 = vst.msk [vmem:[#allocation3 + $0x4c] sm:$0xf] %vm342, 0
      %364 = vst.msk [vmem:[#allocation3 + $0x5c] sm:$0xf] %vm342, 0
      %365 = vst.msk [vmem:[#allocation3 + $0x6c] sm:$0xf] %vm342, 0
      %366 = vst.msk [vmem:[#allocation3 + $0x7c] sm:$0xf] %vm342, 0
      %v367 = vlaneseq
      %v368 = vand.u32 %v367, 127
      %v369 = vadd.s32 %v368, 128
      %v370 = vadd.s32 %v368, 256
      %vm371 = vcmp.lt.s32.totalorder %v368, 0
      %v372 = vsub.s32 0, %v368
      %v373 = vsel %vm371, %v372, %v368
      %v374 = vand.u32 %v373, 65535
      %v375 = vshrl.u32 %v373, 16
      %v377 = vmul.u32 %v374, 52429
      %v378 = vmul.u32 %v374, 52428
      %v379 = vmul.u32 %v375, 52429
      %v380 = vmul.u32 %v375, 52428
      %v381 = vshll.u32 %v378, 16
      %v382 = vshrl.u32 %v378, 16
      %v383 = vshll.u32 %v379, 16
      %v384 = vshrl.u32 %v379, 16
      %vm385 = vc.u32 %v377, %v381
      %v386 = vsel %vm385, 1, 0
      %v387 = vadd.s32 %v377, %v381
      %v388 = vadd.s32 %v380, %v386
      %vm389 = vc.u32 %v387, %v383
      %v390 = vsel %vm389, 1, 0
      %v391 = vadd.s32 %v387, %v383
      %v392 = vadd.s32 %v388, %v390
      %v393 = vadd.s32 %v392, %v382
      %v394 = vadd.s32 %v393, %v384
      %v395 = vshrl.u32 %v394, 4
      %v396 = vmul.u32 %v395, 20
      %v397 = vsub.s32 %v373, %v396
      %v398 = vsub.s32 0, %v397
      %v399 = vsel %vm371, %v398, %v397
      %vm400 = vcmp.lt.s32.totalorder %v369, 0
      %v401 = vsub.s32 0, %v369
      %v402 = vsel %vm400, %v401, %v369
      %v403 = vand.u32 %v402, 65535
      %v404 = vshrl.u32 %v402, 16
      %v406 = vmul.u32 %v403, 52429
      %v407 = vmul.u32 %v403, 52428
      %v408 = vmul.u32 %v404, 52429
      %v409 = vmul.u32 %v404, 52428
      %v410 = vshll.u32 %v407, 16
      %v411 = vshrl.u32 %v407, 16
      %v412 = vshll.u32 %v408, 16
      %v413 = vshrl.u32 %v408, 16
      %vm414 = vc.u32 %v406, %v410
      %v415 = vsel %vm414, 1, 0
      %v416 = vadd.s32 %v406, %v410
      %v417 = vadd.s32 %v409, %v415
      %vm418 = vc.u32 %v416, %v412
      %v419 = vsel %vm418, 1, 0
      %v420 = vadd.s32 %v416, %v412
      %v421 = vadd.s32 %v417, %v419
      %v422 = vadd.s32 %v421, %v411
      %v423 = vadd.s32 %v422, %v413
      %v424 = vshrl.u32 %v423, 4
      %v425 = vmul.u32 %v424, 20
      %v426 = vsub.s32 %v402, %v425
      %v427 = vsub.s32 0, %v426
      %v428 = vsel %vm400, %v427, %v426
      %vm429 = vcmp.lt.s32.totalorder %v370, 0
      %v430 = vsub.s32 0, %v370
      %v431 = vsel %vm429, %v430, %v370
      %v432 = vand.u32 %v431, 65535
      %v433 = vshrl.u32 %v431, 16
      %v435 = vmul.u32 %v432, 52429
      %v436 = vmul.u32 %v432, 52428
      %v437 = vmul.u32 %v433, 52429
      %v438 = vmul.u32 %v433, 52428
      %v439 = vshll.u32 %v436, 16
      %v440 = vshrl.u32 %v436, 16
      %v441 = vshll.u32 %v437, 16
      %v442 = vshrl.u32 %v437, 16
      %vm443 = vc.u32 %v435, %v439
      %v444 = vsel %vm443, 1, 0
      %v445 = vadd.s32 %v435, %v439
      %v446 = vadd.s32 %v438, %v444
      %vm447 = vc.u32 %v445, %v441
      %v448 = vsel %vm447, 1, 0
      %v449 = vadd.s32 %v445, %v441
      %v450 = vadd.s32 %v446, %v448
      %v451 = vadd.s32 %v450, %v440
      %v452 = vadd.s32 %v451, %v442
      %v453 = vshrl.u32 %v452, 4
      %v454 = vmul.u32 %v453, 20
      %v455 = vsub.s32 %v431, %v454
      %v456 = vsub.s32 0, %v455
      %v457 = vsel %vm429, %v456, %v455
      %vm458 = vcmp.ne.s32.totalorder %v399, 0
      %vm459 = vcmp.ne.s32.totalorder %v428, 0
      %vm460 = vcmp.ne.s32.totalorder %v457, 0
      %vm461 = vcmp.lt.s32.totalorder %v399, 0
      %vm462 = vcmp.lt.s32.totalorder %v428, 0
      %vm463 = vcmp.lt.s32.totalorder %v457, 0
      %vm464 = vmand %vm461, %vm458
      %vm465 = vmand %vm462, %vm459
      %vm466 = vmand %vm463, %vm460
      %v467 = vadd.s32 %v399, 20
      %v468 = vadd.s32 %v428, 20
      %v469 = vadd.s32 %v457, 20
      %v470 = vsel %vm464, %v467, %v399
      %v471 = vsel %vm465, %v468, %v428
      %v472 = vsel %vm466, %v469, %v457
      %vm473 = vcmp.lt.s32.totalorder %v470, 16
      %vm474 = vcmp.lt.s32.totalorder %v471, 16
      %vm475 = vcmp.lt.s32.totalorder %v472, 16
      %v476 = vsel %vm473, 1, 0
      %v477 = vsel %vm474, 1, 0
      %v478 = vsel %vm475, 1, 0
      %v479 = vcvt.s32.f32 %v476
      %v480 = vcvt.s32.f32 %v477
      %v481 = vcvt.s32.f32 %v478
      %v482 = vld [vmem:[%s1] sm:$0xf]
      %v483 = vld [vmem:[%s1 + $0x4] sm:$0xf]
      %v484 = vld [vmem:[%s1 + $0x8] sm:$0xf]
      %v485 = vld [vmem:[%s1 + $0xc] sm:$0xf]
      %v486 = vld [vmem:[%s1 + $0x10] sm:$0xf]
      %v487 = vld [vmem:[%s1 + $0x14] sm:$0xf]
      %v488 = vld [vmem:[%s1 + $0x18] sm:$0xf]
      %v489 = vld [vmem:[%s1 + $0x1c] sm:$0xf]
      %v490 = vld [vmem:[%s327] sm:$0xff]
      %v491 = vld [vmem:[%s327 + $0x8] sm:$0xf]
      %v492 = vld [vmem:[%s327 + $0xc] sm:$0xff]
      %v493 = vld [vmem:[%s327 + $0x14] sm:$0xf]
      %v494 = vld [vmem:[%s327 + $0x18] sm:$0xff]
      %v495 = vld [vmem:[%s327 + $0x20] sm:$0xf]
      %v496 = vld [vmem:[%s327 + $0x24] sm:$0xff]
      %v497 = vld [vmem:[%s327 + $0x2c] sm:$0xf]
      %v498 = vld [vmem:[%s2] sm:$0xff]
      %v499 = vld [vmem:[%s2 + $0x8] sm:$0xff]
      %v500 = vld [vmem:[%s2 + $0x10] sm:$0xff]
      %v501 = vld [vmem:[%s2 + $0x18] sm:$0xff]
      %v502 = vld [vmem:[%s2 + $0x20] sm:$0xff]
      %v503 = vld [vmem:[%s2 + $0x28] sm:$0xff]
      %v504 = vld [vmem:[%s2 + $0x30] sm:$0xff]
      %v505 = vld [vmem:[%s2 + $0x38] sm:$0xff]
      %507 = vset.pattern.permute.xlu0 0
      %508 = vperm.xlu0 %507, %v498
      %v509 = vpop.permute.xlu0 %508
      %512 = vset.pattern.permute.xlu0 0
      %513 = vperm.xlu0 %512, %v499
      %v514 = vpop.permute.xlu0 %513
      %517 = vset.pattern.permute.xlu0 0
      %518 = vperm.xlu0 %517, %v500
      %v519 = vpop.permute.xlu0 %518
      %522 = vset.pattern.permute.xlu0 0
      %523 = vperm.xlu0 %522, %v501
      %v524 = vpop.permute.xlu0 %523
      %527 = vset.pattern.permute.xlu0 0
      %528 = vperm.xlu0 %527, %v502
      %v529 = vpop.permute.xlu0 %528
      %532 = vset.pattern.permute.xlu0 0
      %533 = vperm.xlu0 %532, %v503
      %v534 = vpop.permute.xlu0 %533
      %537 = vset.pattern.permute.xlu0 0
      %538 = vperm.xlu0 %537, %v504
      %v539 = vpop.permute.xlu0 %538
      %542 = vset.pattern.permute.xlu0 0
      %543 = vperm.xlu0 %542, %v505
      %v544 = vpop.permute.xlu0 %543
      %v554 = vunpack.c.l.b16 %v482
      %v555 = vunpack.c.l.b16 %v483
      %v556 = vunpack.c.l.b16 %v484
      %v557 = vunpack.c.l.b16 %v485
      %v558 = vunpack.c.l.b16 %v486
      %v559 = vunpack.c.l.b16 %v487
      %v560 = vunpack.c.l.b16 %v488
      %v561 = vunpack.c.l.b16 %v489
      %v562 = vpack.c.b16 %v555, %v554
      %v563 = vpack.c.b16 %v557, %v556
      %v564 = vpack.c.b16 %v559, %v558
      %v565 = vpack.c.b16 %v561, %v560
      %v574 = vunpack.c.l.b16 %v490
      %v575 = vunpack.c.h.b16 %v490
      %v576 = vunpack.c.l.b16 %v491
      %v577 = vunpack.c.l.b16 %v492
      %v578 = vunpack.c.h.b16 %v492
      %v579 = vunpack.c.l.b16 %v493
      %v580 = vunpack.c.l.b16 %v494
      %v581 = vunpack.c.h.b16 %v494
      %v582 = vunpack.c.l.b16 %v495
      %v583 = vunpack.c.l.b16 %v496
      %v584 = vunpack.c.h.b16 %v496
      %v585 = vunpack.c.l.b16 %v497
      %v586 = vpack.c.b16 %v577, %v574
      %v587 = vpack.c.b16 %v578, %v575
      %v588 = vpack.c.b16 %v579, %v576
      %v589 = vpack.c.b16 %v583, %v580
      %v590 = vpack.c.b16 %v584, %v581
      %v591 = vpack.c.b16 %v585, %v582
      %vm598 = vcmask 261120
      %v600 = vsel %vm598, %v562, 0
      %v603 = vsel %vm598, %v563, 0
      %v606 = vsel %vm598, %v564, 0
      %v609 = vsel %vm598, %v565, 0
      %611 = vmatpush.bf16.msra.mxu0 0
      %612 = vmatpush.bf16.msra.mxu0 0
      %613 = vmatpush.bf16.msra.mxu0 0
      %614 = vmatpush.bf16.msra.mxu0 0
      %615 = vmatpush.bf16.msra.mxu0 0
      %616 = vmatpush.bf16.msra.mxu0 0
      %617 = vmatpush.bf16.msra.mxu0 %v589
      %618 = vmatpush.bf16.msra.mxu0 %v586
      %619 = vmatmul.bf16.gmra.mxu0 %v600
      %v620 = vpop.f32.mrf.mxu0
      %v621 = vadd.f32 %v509, %v620
      %v622 = vpop.f32.mrf.mxu0
      %v623 = vadd.f32 %v514, %v622
      %624 = vmatmul.bf16.gmra.mxu0 %v603
      %v625 = vpop.f32.mrf.mxu0
      %v626 = vadd.f32 %v519, %v625
      %v627 = vpop.f32.mrf.mxu0
      %v628 = vadd.f32 %v524, %v627
      %629 = vmatmul.bf16.gmra.mxu0 %v606
      %v630 = vpop.f32.mrf.mxu0
      %v631 = vadd.f32 %v529, %v630
      %v632 = vpop.f32.mrf.mxu0
      %v633 = vadd.f32 %v534, %v632
      %634 = vmatmul.bf16.gmra.mxu0 %v609
      %v635 = vpop.f32.mrf.mxu0
      %v636 = vadd.f32 %v539, %v635
      %v637 = vpop.f32.mrf.mxu0
      %v638 = vadd.f32 %v544, %v637
      %639 = vdwg.mxu0
      %640 = vmatpush.bf16.msra.mxu0 0
      %641 = vmatpush.bf16.msra.mxu0 0
      %642 = vmatpush.bf16.msra.mxu0 0
      %643 = vmatpush.bf16.msra.mxu0 0
      %644 = vmatpush.bf16.msra.mxu0 0
      %645 = vmatpush.bf16.msra.mxu0 0
      %646 = vmatpush.bf16.msra.mxu0 %v590
      %647 = vmatpush.bf16.msra.mxu0 %v587
      %648 = vmatmul.bf16.gmra.mxu0 %v600
      %v649 = vpop.f32.mrf.mxu0
      %v650 = vadd.f32 %v509, %v649
      %v651 = vpop.f32.mrf.mxu0
      %v652 = vadd.f32 %v514, %v651
      %653 = vmatmul.bf16.gmra.mxu0 %v603
      %v654 = vpop.f32.mrf.mxu0
      %v655 = vadd.f32 %v519, %v654
      %v656 = vpop.f32.mrf.mxu0
      %v657 = vadd.f32 %v524, %v656
      %658 = vmatmul.bf16.gmra.mxu0 %v606
      %v659 = vpop.f32.mrf.mxu0
      %v660 = vadd.f32 %v529, %v659
      %v661 = vpop.f32.mrf.mxu0
      %v662 = vadd.f32 %v534, %v661
      %663 = vmatmul.bf16.gmra.mxu0 %v609
      %v664 = vpop.f32.mrf.mxu0
      %v665 = vadd.f32 %v539, %v664
      %v666 = vpop.f32.mrf.mxu0
      %v667 = vadd.f32 %v544, %v666
      %668 = vdwg.mxu0
      %669 = vmatpush.bf16.msra.mxu0 0
      %670 = vmatpush.bf16.msra.mxu0 0
      %671 = vmatpush.bf16.msra.mxu0 0
      %672 = vmatpush.bf16.msra.mxu0 0
      %673 = vmatpush.bf16.msra.mxu0 0
      %674 = vmatpush.bf16.msra.mxu0 0
      %675 = vmatpush.bf16.msra.mxu0 %v591
      %676 = vmatpush.bf16.msra.mxu0 %v588
      %677 = vmatmul.bf16.gmra.mxu0 %v600
      %v678 = vpop.f32.mrf.mxu0
      %v679 = vadd.f32 %v509, %v678
      %v680 = vpop.f32.mrf.mxu0
      %v681 = vadd.f32 %v514, %v680
      %682 = vmatmul.bf16.gmra.mxu0 %v603
      %v683 = vpop.f32.mrf.mxu0
      %v684 = vadd.f32 %v519, %v683
      %v685 = vpop.f32.mrf.mxu0
      %v686 = vadd.f32 %v524, %v685
      %687 = vmatmul.bf16.gmra.mxu0 %v606
      %v688 = vpop.f32.mrf.mxu0
      %v689 = vadd.f32 %v529, %v688
      %v690 = vpop.f32.mrf.mxu0
      %v691 = vadd.f32 %v534, %v690
      %692 = vmatmul.bf16.gmra.mxu0 %v609
      %v693 = vpop.f32.mrf.mxu0
      %v694 = vadd.f32 %v539, %v693
      %v695 = vpop.f32.mrf.mxu0
      %v696 = vadd.f32 %v544, %v695
      %697 = vdwg.mxu0
      %v698 = vmax.f32 %v621, 0.0
      %v699 = vmax.f32 %v650, 0.0
      %v700 = vmax.f32 %v679, 0.0
      %v701 = vmax.f32 %v623, 0.0
      %v702 = vmax.f32 %v652, 0.0
      %v703 = vmax.f32 %v681, 0.0
      %v704 = vmax.f32 %v626, 0.0
      %v705 = vmax.f32 %v655, 0.0
      %v706 = vmax.f32 %v684, 0.0
      %v707 = vmax.f32 %v628, 0.0
      %v708 = vmax.f32 %v657, 0.0
      %v709 = vmax.f32 %v686, 0.0
      %v710 = vmax.f32 %v631, 0.0
      %v711 = vmax.f32 %v660, 0.0
      %v712 = vmax.f32 %v689, 0.0
      %v713 = vmax.f32 %v633, 0.0
      %v714 = vmax.f32 %v662, 0.0
      %v715 = vmax.f32 %v691, 0.0
      %v716 = vmax.f32 %v636, 0.0
      %v717 = vmax.f32 %v665, 0.0
      %v718 = vmax.f32 %v694, 0.0
      %v719 = vmax.f32 %v638, 0.0
      %v720 = vmax.f32 %v667, 0.0
      %v721 = vmax.f32 %v696, 0.0
      %v722 = vmul.f32 %v698, %v479
      %v723 = vmul.f32 %v699, %v480
      %v724 = vmul.f32 %v700, %v481
      %v725 = vmul.f32 %v701, %v479
      %v726 = vmul.f32 %v702, %v480
      %v727 = vmul.f32 %v703, %v481
      %v728 = vmul.f32 %v704, %v479
      %v729 = vmul.f32 %v705, %v480
      %v730 = vmul.f32 %v706, %v481
      %v731 = vmul.f32 %v707, %v479
      %v732 = vmul.f32 %v708, %v480
      %v733 = vmul.f32 %v709, %v481
      %v734 = vmul.f32 %v710, %v479
      %v735 = vmul.f32 %v711, %v480
      %v736 = vmul.f32 %v712, %v481
      %v737 = vmul.f32 %v713, %v479
      %v738 = vmul.f32 %v714, %v480
      %v739 = vmul.f32 %v715, %v481
      %v740 = vmul.f32 %v716, %v479
      %v741 = vmul.f32 %v717, %v480
      %v742 = vmul.f32 %v718, %v481
      %v743 = vmul.f32 %v719, %v479
      %v744 = vmul.f32 %v720, %v480
      %v745 = vmul.f32 %v721, %v481
      %v746 = vpack.c.bf16 %v723, %v722
      %v747 = vpack.c.bf16 %v724, %v724
      %v748 = vpack.c.bf16 %v726, %v725
      %v749 = vpack.c.bf16 %v727, %v727
      %v750 = vpack.c.bf16 %v729, %v728
      %v751 = vpack.c.bf16 %v730, %v730
      %v752 = vpack.c.bf16 %v732, %v731
      %v753 = vpack.c.bf16 %v733, %v733
      %v754 = vpack.c.bf16 %v735, %v734
      %v755 = vpack.c.bf16 %v736, %v736
      %v756 = vpack.c.bf16 %v738, %v737
      %v757 = vpack.c.bf16 %v739, %v739
      %v758 = vpack.c.bf16 %v741, %v740
      %v759 = vpack.c.bf16 %v742, %v742
      %v760 = vpack.c.bf16 %v744, %v743
      %v761 = vpack.c.bf16 %v745, %v745
      %762 = vst [vmem:[#allocation2 + $0x4] sm:$0xff] %v746
      %vm763 = vcmask 519168
      %764 = vst.msk [vmem:[#allocation2 + $0xc] sm:$0xf] %vm763, %v747
      %765 = vst [vmem:[#allocation2 + $0x14] sm:$0xff] %v748
      %766 = vst.msk [vmem:[#allocation2 + $0x1c] sm:$0xf] %vm763, %v749
      %767 = vst [vmem:[#allocation2 + $0x24] sm:$0xff] %v750
      %768 = vst.msk [vmem:[#allocation2 + $0x2c] sm:$0xf] %vm763, %v751
      %769 = vst [vmem:[#allocation2 + $0x34] sm:$0xff] %v752
      %770 = vst.msk [vmem:[#allocation2 + $0x3c] sm:$0xf] %vm763, %v753
      %771 = vst [vmem:[#allocation2 + $0x44] sm:$0xff] %v754
      %772 = vst.msk [vmem:[#allocation2 + $0x4c] sm:$0xf] %vm763, %v755
      %773 = vst [vmem:[#allocation2 + $0x54] sm:$0xff] %v756
      %774 = vst.msk [vmem:[#allocation2 + $0x5c] sm:$0xf] %vm763, %v757
      %775 = vst [vmem:[#allocation2 + $0x64] sm:$0xff] %v758
      %776 = vst.msk [vmem:[#allocation2 + $0x6c] sm:$0xf] %vm763, %v759
      %777 = vst [vmem:[#allocation2 + $0x74] sm:$0xff] %v760
      %778 = vst.msk [vmem:[#allocation2 + $0x7c] sm:$0xf] %vm763, %v761
      %v779 = vld [vmem:[#allocation2] sm:$0xff]
      %v780 = vld [vmem:[#allocation2 + $0x8] sm:$0xff]
      %v781 = vld [vmem:[#allocation2 + $0x10] sm:$0xff]
      %v782 = vld [vmem:[#allocation2 + $0x18] sm:$0xff]
      %v783 = vld [vmem:[#allocation2 + $0x20] sm:$0xff]
      %v784 = vld [vmem:[#allocation2 + $0x28] sm:$0xff]
      %v785 = vld [vmem:[#allocation2 + $0x30] sm:$0xff]
      %v786 = vld [vmem:[#allocation2 + $0x38] sm:$0xff]
      %v787 = vld [vmem:[#allocation2 + $0x40] sm:$0xff]
      %v788 = vld [vmem:[#allocation2 + $0x48] sm:$0xff]
      %v789 = vld [vmem:[#allocation2 + $0x50] sm:$0xff]
      %v790 = vld [vmem:[#allocation2 + $0x58] sm:$0xff]
      %v791 = vld [vmem:[#allocation2 + $0x60] sm:$0xff]
      %v792 = vld [vmem:[#allocation2 + $0x68] sm:$0xff]
      %v793 = vld [vmem:[#allocation2 + $0x70] sm:$0xff]
      %v794 = vld [vmem:[#allocation2 + $0x78] sm:$0xff]
      %v795 = vld [vmem:[%s3] sm:$0xf]
      %v796 = vld [vmem:[%s3 + $0x4] sm:$0xf]
      %v797 = vld [vmem:[%s3 + $0x8] sm:$0xf]
      %v798 = vld [vmem:[%s3 + $0xc] sm:$0xf]
      %v799 = vld [vmem:[%s3 + $0x10] sm:$0xf]
      %v800 = vld [vmem:[%s3 + $0x14] sm:$0xf]
      %v801 = vld [vmem:[%s3 + $0x18] sm:$0xf]
      %v802 = vld [vmem:[%s3 + $0x1c] sm:$0xf]
      %s803 = scalar_lea.vmem %s3, 32
      %v804 = vld [vmem:[%s803] sm:$0xf]
      %v805 = vld [vmem:[%s803 + $0x4] sm:$0xf]
      %v806 = vld [vmem:[%s803 + $0x8] sm:$0xf]
      %v807 = vld [vmem:[%s803 + $0xc] sm:$0xf]
      %v808 = vld [vmem:[%s803 + $0x10] sm:$0xf]
      %v809 = vld [vmem:[%s803 + $0x14] sm:$0xf]
      %v810 = vld [vmem:[%s803 + $0x18] sm:$0xf]
      %v811 = vld [vmem:[%s803 + $0x1c] sm:$0xf]
      %v820 = vunpack.c.l.b16 %v804
      %v821 = vunpack.c.l.b16 %v805
      %v822 = vunpack.c.l.b16 %v806
      %v823 = vunpack.c.l.b16 %v807
      %v824 = vunpack.c.l.b16 %v808
      %v825 = vunpack.c.l.b16 %v809
      %v826 = vunpack.c.l.b16 %v810
      %v827 = vunpack.c.l.b16 %v811
      %v828 = vpack.c.b16 %v821, %v820
      %v829 = vpack.c.b16 %v823, %v822
      %v830 = vpack.c.b16 %v825, %v824
      %v831 = vpack.c.b16 %v827, %v826
      %v848 = vunpack.c.l.b16 %v779
      %v849 = vunpack.c.h.b16 %v779
      %v850 = vunpack.c.l.b16 %v780
      %v851 = vunpack.c.h.b16 %v780
      %v852 = vunpack.c.l.b16 %v781
      %v853 = vunpack.c.h.b16 %v781
      %v854 = vunpack.c.l.b16 %v782
      %v855 = vunpack.c.h.b16 %v782
      %v856 = vunpack.c.l.b16 %v783
      %v857 = vunpack.c.h.b16 %v783
      %v858 = vunpack.c.l.b16 %v784
      %v859 = vunpack.c.h.b16 %v784
      %v860 = vunpack.c.l.b16 %v785
      %v861 = vunpack.c.h.b16 %v785
      %v862 = vunpack.c.l.b16 %v786
      %v863 = vunpack.c.h.b16 %v786
      %v864 = vunpack.c.l.b16 %v787
      %v865 = vunpack.c.h.b16 %v787
      %v866 = vunpack.c.l.b16 %v788
      %v867 = vunpack.c.h.b16 %v788
      %v868 = vunpack.c.l.b16 %v789
      %v869 = vunpack.c.h.b16 %v789
      %v870 = vunpack.c.l.b16 %v790
      %v871 = vunpack.c.h.b16 %v790
      %v872 = vunpack.c.l.b16 %v791
      %v873 = vunpack.c.h.b16 %v791
      %v874 = vunpack.c.l.b16 %v792
      %v875 = vunpack.c.h.b16 %v792
      %v876 = vunpack.c.l.b16 %v793
      %v877 = vunpack.c.h.b16 %v793
      %v878 = vunpack.c.l.b16 %v794
      %v879 = vunpack.c.h.b16 %v794
      %v880 = vpack.c.b16 %v852, %v848
      %v881 = vpack.c.b16 %v853, %v849
      %v882 = vpack.c.b16 %v854, %v850
      %v883 = vpack.c.b16 %v855, %v851
      %v884 = vpack.c.b16 %v860, %v856
      %v885 = vpack.c.b16 %v861, %v857
      %v886 = vpack.c.b16 %v862, %v858
      %v887 = vpack.c.b16 %v863, %v859
      %v888 = vpack.c.b16 %v868, %v864
      %v889 = vpack.c.b16 %v869, %v865
      %v890 = vpack.c.b16 %v870, %v866
      %v891 = vpack.c.b16 %v871, %v867
      %v892 = vpack.c.b16 %v876, %v872
      %v893 = vpack.c.b16 %v877, %v873
      %v894 = vpack.c.b16 %v878, %v874
      %v895 = vpack.c.b16 %v879, %v875
      %896 = vrot.lane.b32.xlu0 %v880, 20
      %v897 = vpop.permute.xlu0 %896
      %898 = vrot.lane.b32.xlu0 %v881, 20
      %v899 = vpop.permute.xlu0 %898
      %900 = vrot.lane.b32.xlu0 %v882, 20
      %v901 = vpop.permute.xlu0 %900
      %902 = vrot.lane.b32.xlu0 %v883, 20
      %v903 = vpop.permute.xlu0 %902
      %904 = vrot.lane.b32.xlu0 %v884, 20
      %v905 = vpop.permute.xlu0 %904
      %906 = vrot.lane.b32.xlu0 %v885, 20
      %v907 = vpop.permute.xlu0 %906
      %908 = vrot.lane.b32.xlu0 %v886, 20
      %v909 = vpop.permute.xlu0 %908
      %910 = vrot.lane.b32.xlu0 %v887, 20
      %v911 = vpop.permute.xlu0 %910
      %912 = vrot.lane.b32.xlu0 %v888, 20
      %v913 = vpop.permute.xlu0 %912
      %914 = vrot.lane.b32.xlu0 %v889, 20
      %v915 = vpop.permute.xlu0 %914
      %916 = vrot.lane.b32.xlu0 %v890, 20
      %v917 = vpop.permute.xlu0 %916
      %918 = vrot.lane.b32.xlu0 %v891, 20
      %v919 = vpop.permute.xlu0 %918
      %920 = vrot.lane.b32.xlu0 %v892, 20
      %v921 = vpop.permute.xlu0 %920
      %922 = vrot.lane.b32.xlu0 %v893, 20
      %v923 = vpop.permute.xlu0 %922
      %924 = vrot.lane.b32.xlu0 %v894, 20
      %v925 = vpop.permute.xlu0 %924
      %926 = vrot.lane.b32.xlu0 %v895, 20
      %v927 = vpop.permute.xlu0 %926
      %vm928 = vcmask 162816
      %v929 = vsel %vm928, %v897, %v899
      %v930 = vsel %vm928, %v899, %v901
      %v931 = vsel %vm928, %v901, %v903
      %v932 = vsel %vm928, %v905, %v907
      %v933 = vsel %vm928, %v907, %v909
      %v934 = vsel %vm928, %v909, %v911
      %v935 = vsel %vm928, %v913, %v915
      %v936 = vsel %vm928, %v915, %v917
      %v937 = vsel %vm928, %v917, %v919
      %v938 = vsel %vm928, %v921, %v923
      %v939 = vsel %vm928, %v923, %v925
      %v940 = vsel %vm928, %v925, %v927
      %vm953 = vcmask 523264
      %v955 = vsel %vm953, %v828, 0
      %v958 = vsel %vm953, %v829, 0
      %v961 = vsel %vm953, %v830, 0
      %v964 = vsel %vm953, %v831, 0
      %966 = vmatpush.bf16.msra.mxu0 0
      %967 = vmatpush.bf16.msra.mxu0 0
      %968 = vmatpush.bf16.msra.mxu0 0
      %969 = vmatpush.bf16.msra.mxu0 0
      %970 = vmatpush.bf16.msra.mxu0 %v938
      %971 = vmatpush.bf16.msra.mxu0 %v935
      %972 = vmatpush.bf16.msra.mxu0 %v932
      %973 = vmatpush.bf16.msra.mxu0 %v929
      %974 = vmatmul.bf16.gmra.mxu0 %v955
      %v975 = vpop.f32.mrf.mxu0
      %v976 = vadd.f32 0.0, %v975
      %v977 = vpop.f32.mrf.mxu0
      %v978 = vadd.f32 0.0, %v977
      %979 = vmatmul.bf16.gmra.mxu0 %v958
      %v980 = vpop.f32.mrf.mxu0
      %v981 = vadd.f32 0.0, %v980
      %v982 = vpop.f32.mrf.mxu0
      %v983 = vadd.f32 0.0, %v982
      %984 = vmatmul.bf16.gmra.mxu0 %v961
      %v985 = vpop.f32.mrf.mxu0
      %v986 = vadd.f32 0.0, %v985
      %v987 = vpop.f32.mrf.mxu0
      %v988 = vadd.f32 0.0, %v987
      %989 = vmatmul.bf16.gmra.mxu0 %v964
      %v990 = vpop.f32.mrf.mxu0
      %v991 = vadd.f32 0.0, %v990
      %v992 = vpop.f32.mrf.mxu0
      %v993 = vadd.f32 0.0, %v992
      %994 = vdwg.mxu0
      %995 = vmatpush.bf16.msra.mxu0 0
      %996 = vmatpush.bf16.msra.mxu0 0
      %997 = vmatpush.bf16.msra.mxu0 0
      %998 = vmatpush.bf16.msra.mxu0 0
      %999 = vmatpush.bf16.msra.mxu0 %v939
      %1000 = vmatpush.bf16.msra.mxu0 %v936
      %1001 = vmatpush.bf16.msra.mxu0 %v933
      %1002 = vmatpush.bf16.msra.mxu0 %v930
      %1003 = vmatmul.bf16.gmra.mxu0 %v955
      %v1004 = vpop.f32.mrf.mxu0
      %v1005 = vadd.f32 0.0, %v1004
      %v1006 = vpop.f32.mrf.mxu0
      %v1007 = vadd.f32 0.0, %v1006
      %1008 = vmatmul.bf16.gmra.mxu0 %v958
      %v1009 = vpop.f32.mrf.mxu0
      %v1010 = vadd.f32 0.0, %v1009
      %v1011 = vpop.f32.mrf.mxu0
      %v1012 = vadd.f32 0.0, %v1011
      %1013 = vmatmul.bf16.gmra.mxu0 %v961
      %v1014 = vpop.f32.mrf.mxu0
      %v1015 = vadd.f32 0.0, %v1014
      %v1016 = vpop.f32.mrf.mxu0
      %v1017 = vadd.f32 0.0, %v1016
      %1018 = vmatmul.bf16.gmra.mxu0 %v964
      %v1019 = vpop.f32.mrf.mxu0
      %v1020 = vadd.f32 0.0, %v1019
      %v1021 = vpop.f32.mrf.mxu0
      %v1022 = vadd.f32 0.0, %v1021
      %1023 = vdwg.mxu0
      %1024 = vmatpush.bf16.msra.mxu0 0
      %1025 = vmatpush.bf16.msra.mxu0 0
      %1026 = vmatpush.bf16.msra.mxu0 0
      %1027 = vmatpush.bf16.msra.mxu0 0
      %1028 = vmatpush.bf16.msra.mxu0 %v940
      %1029 = vmatpush.bf16.msra.mxu0 %v937
      %1030 = vmatpush.bf16.msra.mxu0 %v934
      %1031 = vmatpush.bf16.msra.mxu0 %v931
      %1032 = vmatmul.bf16.gmra.mxu0 %v955
      %v1033 = vpop.f32.mrf.mxu0
      %v1034 = vadd.f32 0.0, %v1033
      %v1035 = vpop.f32.mrf.mxu0
      %v1036 = vadd.f32 0.0, %v1035
      %1037 = vmatmul.bf16.gmra.mxu0 %v958
      %v1038 = vpop.f32.mrf.mxu0
      %v1039 = vadd.f32 0.0, %v1038
      %v1040 = vpop.f32.mrf.mxu0
      %v1041 = vadd.f32 0.0, %v1040
      %1042 = vmatmul.bf16.gmra.mxu0 %v961
      %v1043 = vpop.f32.mrf.mxu0
      %v1044 = vadd.f32 0.0, %v1043
      %v1045 = vpop.f32.mrf.mxu0
      %v1046 = vadd.f32 0.0, %v1045
      %1047 = vmatmul.bf16.gmra.mxu0 %v964
      %v1048 = vpop.f32.mrf.mxu0
      %v1049 = vadd.f32 0.0, %v1048
      %v1050 = vpop.f32.mrf.mxu0
      %v1051 = vadd.f32 0.0, %v1050
      %1052 = vdwg.mxu0
      %v1061 = vunpack.c.l.b16 %v795
      %v1062 = vunpack.c.l.b16 %v796
      %v1063 = vunpack.c.l.b16 %v797
      %v1064 = vunpack.c.l.b16 %v798
      %v1065 = vunpack.c.l.b16 %v799
      %v1066 = vunpack.c.l.b16 %v800
      %v1067 = vunpack.c.l.b16 %v801
      %v1068 = vunpack.c.l.b16 %v802
      %v1069 = vpack.c.b16 %v1062, %v1061
      %v1070 = vpack.c.b16 %v1064, %v1063
      %v1071 = vpack.c.b16 %v1066, %v1065
      %v1072 = vpack.c.b16 %v1068, %v1067
      %1073 = vrot.lane.b32.xlu0 %v880, 21
      %v1074 = vpop.permute.xlu0 %1073
      %1075 = vrot.lane.b32.xlu0 %v881, 21
      %v1076 = vpop.permute.xlu0 %1075
      %1077 = vrot.lane.b32.xlu0 %v882, 21
      %v1078 = vpop.permute.xlu0 %1077
      %1079 = vrot.lane.b32.xlu0 %v883, 21
      %v1080 = vpop.permute.xlu0 %1079
      %1081 = vrot.lane.b32.xlu0 %v884, 21
      %v1082 = vpop.permute.xlu0 %1081
      %1083 = vrot.lane.b32.xlu0 %v885, 21
      %v1084 = vpop.permute.xlu0 %1083
      %1085 = vrot.lane.b32.xlu0 %v886, 21
      %v1086 = vpop.permute.xlu0 %1085
      %1087 = vrot.lane.b32.xlu0 %v887, 21
      %v1088 = vpop.permute.xlu0 %1087
      %1089 = vrot.lane.b32.xlu0 %v888, 21
      %v1090 = vpop.permute.xlu0 %1089
      %1091 = vrot.lane.b32.xlu0 %v889, 21
      %v1092 = vpop.permute.xlu0 %1091
      %1093 = vrot.lane.b32.xlu0 %v890, 21
      %v1094 = vpop.permute.xlu0 %1093
      %1095 = vrot.lane.b32.xlu0 %v891, 21
      %v1096 = vpop.permute.xlu0 %1095
      %1097 = vrot.lane.b32.xlu0 %v892, 21
      %v1098 = vpop.permute.xlu0 %1097
      %1099 = vrot.lane.b32.xlu0 %v893, 21
      %v1100 = vpop.permute.xlu0 %1099
      %1101 = vrot.lane.b32.xlu0 %v894, 21
      %v1102 = vpop.permute.xlu0 %1101
      %1103 = vrot.lane.b32.xlu0 %v895, 21
      %v1104 = vpop.permute.xlu0 %1103
      %vm1105 = vcmask 171008
      %v1106 = vsel %vm1105, %v1074, %v1076
      %v1107 = vsel %vm1105, %v1076, %v1078
      %v1108 = vsel %vm1105, %v1078, %v1080
      %v1109 = vsel %vm1105, %v1082, %v1084
      %v1110 = vsel %vm1105, %v1084, %v1086
      %v1111 = vsel %vm1105, %v1086, %v1088
      %v1112 = vsel %vm1105, %v1090, %v1092
      %v1113 = vsel %vm1105, %v1092, %v1094
      %v1114 = vsel %vm1105, %v1094, %v1096
      %v1115 = vsel %vm1105, %v1098, %v1100
      %v1116 = vsel %vm1105, %v1100, %v1102
      %v1117 = vsel %vm1105, %v1102, %v1104
      %v1131 = vsel %vm953, %v1069, 0
      %v1134 = vsel %vm953, %v1070, 0
      %v1137 = vsel %vm953, %v1071, 0
      %v1140 = vsel %vm953, %v1072, 0
      %1142 = vmatpush.bf16.msra.mxu0 0
      %1143 = vmatpush.bf16.msra.mxu0 0
      %1144 = vmatpush.bf16.msra.mxu0 0
      %1145 = vmatpush.bf16.msra.mxu0 0
      %1146 = vmatpush.bf16.msra.mxu0 %v1115
      %1147 = vmatpush.bf16.msra.mxu0 %v1112
      %1148 = vmatpush.bf16.msra.mxu0 %v1109
      %1149 = vmatpush.bf16.msra.mxu0 %v1106
      %1150 = vmatmul.bf16.gmra.mxu0 %v1131
      %v1151 = vpop.f32.mrf.mxu0
      %v1152 = vadd.f32 %v976, %v1151
      %v1153 = vpop.f32.mrf.mxu0
      %v1154 = vadd.f32 %v978, %v1153
      %1155 = vmatmul.bf16.gmra.mxu0 %v1134
      %v1156 = vpop.f32.mrf.mxu0
      %v1157 = vadd.f32 %v981, %v1156
      %v1158 = vpop.f32.mrf.mxu0
      %v1159 = vadd.f32 %v983, %v1158
      %1160 = vmatmul.bf16.gmra.mxu0 %v1137
      %v1161 = vpop.f32.mrf.mxu0
      %v1162 = vadd.f32 %v986, %v1161
      %v1163 = vpop.f32.mrf.mxu0
      %v1164 = vadd.f32 %v988, %v1163
      %1165 = vmatmul.bf16.gmra.mxu0 %v1140
      %v1166 = vpop.f32.mrf.mxu0
      %v1167 = vadd.f32 %v991, %v1166
      %v1168 = vpop.f32.mrf.mxu0
      %v1169 = vadd.f32 %v993, %v1168
      %1170 = vdwg.mxu0
      %1171 = vmatpush.bf16.msra.mxu0 0
      %1172 = vmatpush.bf16.msra.mxu0 0
      %1173 = vmatpush.bf16.msra.mxu0 0
      %1174 = vmatpush.bf16.msra.mxu0 0
      %1175 = vmatpush.bf16.msra.mxu0 %v1116
      %1176 = vmatpush.bf16.msra.mxu0 %v1113
      %1177 = vmatpush.bf16.msra.mxu0 %v1110
      %1178 = vmatpush.bf16.msra.mxu0 %v1107
      %1179 = vmatmul.bf16.gmra.mxu0 %v1131
      %v1180 = vpop.f32.mrf.mxu0
      %v1181 = vadd.f32 %v1005, %v1180
      %v1182 = vpop.f32.mrf.mxu0
      %v1183 = vadd.f32 %v1007, %v1182
      %1184 = vmatmul.bf16.gmra.mxu0 %v1134
      %v1185 = vpop.f32.mrf.mxu0
      %v1186 = vadd.f32 %v1010, %v1185
      %v1187 = vpop.f32.mrf.mxu0
      %v1188 = vadd.f32 %v1012, %v1187
      %1189 = vmatmul.bf16.gmra.mxu0 %v1137
      %v1190 = vpop.f32.mrf.mxu0
      %v1191 = vadd.f32 %v1015, %v1190
      %v1192 = vpop.f32.mrf.mxu0
      %v1193 = vadd.f32 %v1017, %v1192
      %1194 = vmatmul.bf16.gmra.mxu0 %v1140
      %v1195 = vpop.f32.mrf.mxu0
      %v1196 = vadd.f32 %v1020, %v1195
      %v1197 = vpop.f32.mrf.mxu0
      %v1198 = vadd.f32 %v1022, %v1197
      %1199 = vdwg.mxu0
      %1200 = vmatpush.bf16.msra.mxu0 0
      %1201 = vmatpush.bf16.msra.mxu0 0
      %1202 = vmatpush.bf16.msra.mxu0 0
      %1203 = vmatpush.bf16.msra.mxu0 0
      %1204 = vmatpush.bf16.msra.mxu0 %v1117
      %1205 = vmatpush.bf16.msra.mxu0 %v1114
      %1206 = vmatpush.bf16.msra.mxu0 %v1111
      %1207 = vmatpush.bf16.msra.mxu0 %v1108
      %1208 = vmatmul.bf16.gmra.mxu0 %v1131
      %v1209 = vpop.f32.mrf.mxu0
      %v1210 = vadd.f32 %v1034, %v1209
      %v1211 = vpop.f32.mrf.mxu0
      %v1212 = vadd.f32 %v1036, %v1211
      %1213 = vmatmul.bf16.gmra.mxu0 %v1134
      %v1214 = vpop.f32.mrf.mxu0
      %v1215 = vadd.f32 %v1039, %v1214
      %v1216 = vpop.f32.mrf.mxu0
      %v1217 = vadd.f32 %v1041, %v1216
      %1218 = vmatmul.bf16.gmra.mxu0 %v1137
      %v1219 = vpop.f32.mrf.mxu0
      %v1220 = vadd.f32 %v1044, %v1219
      %v1221 = vpop.f32.mrf.mxu0
      %v1222 = vadd.f32 %v1046, %v1221
      %1223 = vmatmul.bf16.gmra.mxu0 %v1140
      %v1224 = vpop.f32.mrf.mxu0
      %v1225 = vadd.f32 %v1049, %v1224
      %v1226 = vpop.f32.mrf.mxu0
      %v1227 = vadd.f32 %v1051, %v1226
      %1228 = vdwg.mxu0
      %s1229 = scalar_lea.vmem %s3, 64
      %v1230 = vld [vmem:[%s1229] sm:$0xf]
      %v1231 = vld [vmem:[%s1229 + $0x4] sm:$0xf]
      %v1232 = vld [vmem:[%s1229 + $0x8] sm:$0xf]
      %v1233 = vld [vmem:[%s1229 + $0xc] sm:$0xf]
      %v1234 = vld [vmem:[%s1229 + $0x10] sm:$0xf]
      %v1235 = vld [vmem:[%s1229 + $0x14] sm:$0xf]
      %v1236 = vld [vmem:[%s1229 + $0x18] sm:$0xf]
      %v1237 = vld [vmem:[%s1229 + $0x1c] sm:$0xf]
      %v1246 = vunpack.c.l.b16 %v1230
      %v1247 = vunpack.c.l.b16 %v1231
      %v1248 = vunpack.c.l.b16 %v1232
      %v1249 = vunpack.c.l.b16 %v1233
      %v1250 = vunpack.c.l.b16 %v1234
      %v1251 = vunpack.c.l.b16 %v1235
      %v1252 = vunpack.c.l.b16 %v1236
      %v1253 = vunpack.c.l.b16 %v1237
      %v1254 = vpack.c.b16 %v1247, %v1246
      %v1255 = vpack.c.b16 %v1249, %v1248
      %v1256 = vpack.c.b16 %v1251, %v1250
      %v1257 = vpack.c.b16 %v1253, %v1252
      %1258 = vrot.lane.b32.xlu0 %v880, 19
      %v1259 = vpop.permute.xlu0 %1258
      %1260 = vrot.lane.b32.xlu0 %v881, 19
      %v1261 = vpop.permute.xlu0 %1260
      %1262 = vrot.lane.b32.xlu0 %v882, 19
      %v1263 = vpop.permute.xlu0 %1262
      %1264 = vrot.lane.b32.xlu0 %v883, 19
      %v1265 = vpop.permute.xlu0 %1264
      %1266 = vrot.lane.b32.xlu0 %v884, 19
      %v1267 = vpop.permute.xlu0 %1266
      %1268 = vrot.lane.b32.xlu0 %v885, 19
      %v1269 = vpop.permute.xlu0 %1268
      %1270 = vrot.lane.b32.xlu0 %v886, 19
      %v1271 = vpop.permute.xlu0 %1270
      %1272 = vrot.lane.b32.xlu0 %v887, 19
      %v1273 = vpop.permute.xlu0 %1272
      %1274 = vrot.lane.b32.xlu0 %v888, 19
      %v1275 = vpop.permute.xlu0 %1274
      %1276 = vrot.lane.b32.xlu0 %v889, 19
      %v1277 = vpop.permute.xlu0 %1276
      %1278 = vrot.lane.b32.xlu0 %v890, 19
      %v1279 = vpop.permute.xlu0 %1278
      %1280 = vrot.lane.b32.xlu0 %v891, 19
      %v1281 = vpop.permute.xlu0 %1280
      %1282 = vrot.lane.b32.xlu0 %v892, 19
      %v1283 = vpop.permute.xlu0 %1282
      %1284 = vrot.lane.b32.xlu0 %v893, 19
      %v1285 = vpop.permute.xlu0 %1284
      %1286 = vrot.lane.b32.xlu0 %v894, 19
      %v1287 = vpop.permute.xlu0 %1286
      %1288 = vrot.lane.b32.xlu0 %v895, 19
      %v1289 = vpop.permute.xlu0 %1288
      %vm1290 = vcmask 154624
      %v1291 = vsel %vm1290, %v1259, %v1261
      %v1292 = vsel %vm1290, %v1261, %v1263
      %v1293 = vsel %vm1290, %v1263, %v1265
      %v1294 = vsel %vm1290, %v1267, %v1269
      %v1295 = vsel %vm1290, %v1269, %v1271
      %v1296 = vsel %vm1290, %v1271, %v1273
      %v1297 = vsel %vm1290, %v1275, %v1277
      %v1298 = vsel %vm1290, %v1277, %v1279
      %v1299 = vsel %vm1290, %v1279, %v1281
      %v1300 = vsel %vm1290, %v1283, %v1285
      %v1301 = vsel %vm1290, %v1285, %v1287
      %v1302 = vsel %vm1290, %v1287, %v1289
      %v1316 = vsel %vm953, %v1254, 0
      %v1319 = vsel %vm953, %v1255, 0
      %v1322 = vsel %vm953, %v1256, 0
      %v1325 = vsel %vm953, %v1257, 0
      %1327 = vmatpush.bf16.msra.mxu0 0
      %1328 = vmatpush.bf16.msra.mxu0 0
      %1329 = vmatpush.bf16.msra.mxu0 0
      %1330 = vmatpush.bf16.msra.mxu0 0
      %1331 = vmatpush.bf16.msra.mxu0 %v1300
      %1332 = vmatpush.bf16.msra.mxu0 %v1297
      %1333 = vmatpush.bf16.msra.mxu0 %v1294
      %1334 = vmatpush.bf16.msra.mxu0 %v1291
      %1335 = vmatmul.bf16.gmra.mxu0 %v1316
      %v1336 = vpop.f32.mrf.mxu0
      %v1337 = vadd.f32 0.0, %v1336
      %v1338 = vpop.f32.mrf.mxu0
      %v1339 = vadd.f32 0.0, %v1338
      %1340 = vmatmul.bf16.gmra.mxu0 %v1319
      %v1341 = vpop.f32.mrf.mxu0
      %v1342 = vadd.f32 0.0, %v1341
      %v1343 = vpop.f32.mrf.mxu0
      %v1344 = vadd.f32 0.0, %v1343
      %1345 = vmatmul.bf16.gmra.mxu0 %v1322
      %v1346 = vpop.f32.mrf.mxu0
      %v1347 = vadd.f32 0.0, %v1346
      %v1348 = vpop.f32.mrf.mxu0
      %v1349 = vadd.f32 0.0, %v1348
      %1350 = vmatmul.bf16.gmra.mxu0 %v1325
      %v1351 = vpop.f32.mrf.mxu0
      %v1352 = vadd.f32 0.0, %v1351
      %v1353 = vpop.f32.mrf.mxu0
      %v1354 = vadd.f32 0.0, %v1353
      %1355 = vdwg.mxu0
      %1356 = vmatpush.bf16.msra.mxu0 0
      %1357 = vmatpush.bf16.msra.mxu0 0
      %1358 = vmatpush.bf16.msra.mxu0 0
      %1359 = vmatpush.bf16.msra.mxu0 0
      %1360 = vmatpush.bf16.msra.mxu0 %v1301
      %1361 = vmatpush.bf16.msra.mxu0 %v1298
      %1362 = vmatpush.bf16.msra.mxu0 %v1295
      %1363 = vmatpush.bf16.msra.mxu0 %v1292
      %1364 = vmatmul.bf16.gmra.mxu0 %v1316
      %v1365 = vpop.f32.mrf.mxu0
      %v1366 = vadd.f32 0.0, %v1365
      %v1367 = vpop.f32.mrf.mxu0
      %v1368 = vadd.f32 0.0, %v1367
      %1369 = vmatmul.bf16.gmra.mxu0 %v1319
      %v1370 = vpop.f32.mrf.mxu0
      %v1371 = vadd.f32 0.0, %v1370
      %v1372 = vpop.f32.mrf.mxu0
      %v1373 = vadd.f32 0.0, %v1372
      %1374 = vmatmul.bf16.gmra.mxu0 %v1322
      %v1375 = vpop.f32.mrf.mxu0
      %v1376 = vadd.f32 0.0, %v1375
      %v1377 = vpop.f32.mrf.mxu0
      %v1378 = vadd.f32 0.0, %v1377
      %1379 = vmatmul.bf16.gmra.mxu0 %v1325
      %v1380 = vpop.f32.mrf.mxu0
      %v1381 = vadd.f32 0.0, %v1380
      %v1382 = vpop.f32.mrf.mxu0
      %v1383 = vadd.f32 0.0, %v1382
      %1384 = vdwg.mxu0
      %1385 = vmatpush.bf16.msra.mxu0 0
      %1386 = vmatpush.bf16.msra.mxu0 0
      %1387 = vmatpush.bf16.msra.mxu0 0
      %1388 = vmatpush.bf16.msra.mxu0 0
      %1389 = vmatpush.bf16.msra.mxu0 %v1302
      %1390 = vmatpush.bf16.msra.mxu0 %v1299
      %1391 = vmatpush.bf16.msra.mxu0 %v1296
      %1392 = vmatpush.bf16.msra.mxu0 %v1293
      %1393 = vmatmul.bf16.gmra.mxu0 %v1316
      %v1394 = vpop.f32.mrf.mxu0
      %v1395 = vadd.f32 0.0, %v1394
      %v1396 = vpop.f32.mrf.mxu0
      %v1397 = vadd.f32 0.0, %v1396
      %1398 = vmatmul.bf16.gmra.mxu0 %v1319
      %v1399 = vpop.f32.mrf.mxu0
      %v1400 = vadd.f32 0.0, %v1399
      %v1401 = vpop.f32.mrf.mxu0
      %v1402 = vadd.f32 0.0, %v1401
      %1403 = vmatmul.bf16.gmra.mxu0 %v1322
      %v1404 = vpop.f32.mrf.mxu0
      %v1405 = vadd.f32 0.0, %v1404
      %v1406 = vpop.f32.mrf.mxu0
      %v1407 = vadd.f32 0.0, %v1406
      %1408 = vmatmul.bf16.gmra.mxu0 %v1325
      %v1409 = vpop.f32.mrf.mxu0
      %v1410 = vadd.f32 0.0, %v1409
      %v1411 = vpop.f32.mrf.mxu0
      %v1412 = vadd.f32 0.0, %v1411
      %1413 = vdwg.mxu0
      %v1414 = vadd.f32 %v1152, %v1337
      %v1415 = vadd.f32 %v1181, %v1366
      %v1416 = vadd.f32 %v1210, %v1395
      %v1417 = vadd.f32 %v1154, %v1339
      %v1418 = vadd.f32 %v1183, %v1368
      %v1419 = vadd.f32 %v1212, %v1397
      %v1420 = vadd.f32 %v1157, %v1342
      %v1421 = vadd.f32 %v1186, %v1371
      %v1422 = vadd.f32 %v1215, %v1400
      %v1423 = vadd.f32 %v1159, %v1344
      %v1424 = vadd.f32 %v1188, %v1373
      %v1425 = vadd.f32 %v1217, %v1402
      %v1426 = vadd.f32 %v1162, %v1347
      %v1427 = vadd.f32 %v1191, %v1376
      %v1428 = vadd.f32 %v1220, %v1405
      %v1429 = vadd.f32 %v1164, %v1349
      %v1430 = vadd.f32 %v1193, %v1378
      %v1431 = vadd.f32 %v1222, %v1407
      %v1432 = vadd.f32 %v1167, %v1352
      %v1433 = vadd.f32 %v1196, %v1381
      %v1434 = vadd.f32 %v1225, %v1410
      %v1435 = vadd.f32 %v1169, %v1354
      %v1436 = vadd.f32 %v1198, %v1383
      %v1437 = vadd.f32 %v1227, %v1412
      %s1438 = scalar_lea.vmem %s3, 96
      %v1439 = vld [vmem:[%s1438] sm:$0xf]
      %v1440 = vld [vmem:[%s1438 + $0x4] sm:$0xf]
      %v1441 = vld [vmem:[%s1438 + $0x8] sm:$0xf]
      %v1442 = vld [vmem:[%s1438 + $0xc] sm:$0xf]
      %v1443 = vld [vmem:[%s1438 + $0x10] sm:$0xf]
      %v1444 = vld [vmem:[%s1438 + $0x14] sm:$0xf]
      %v1445 = vld [vmem:[%s1438 + $0x18] sm:$0xf]
      %v1446 = vld [vmem:[%s1438 + $0x1c] sm:$0xf]
      %v1455 = vunpack.c.l.b16 %v1439
      %v1456 = vunpack.c.l.b16 %v1440
      %v1457 = vunpack.c.l.b16 %v1441
      %v1458 = vunpack.c.l.b16 %v1442
      %v1459 = vunpack.c.l.b16 %v1443
      %v1460 = vunpack.c.l.b16 %v1444
      %v1461 = vunpack.c.l.b16 %v1445
      %v1462 = vunpack.c.l.b16 %v1446
      %v1463 = vpack.c.b16 %v1456, %v1455
      %v1464 = vpack.c.b16 %v1458, %v1457
      %v1465 = vpack.c.b16 %v1460, %v1459
      %v1466 = vpack.c.b16 %v1462, %v1461
      %1467 = vrot.lane.b32.xlu0 %v880, 1
      %v1468 = vpop.permute.xlu0 %1467
      %1469 = vrot.lane.b32.xlu0 %v881, 1
      %v1470 = vpop.permute.xlu0 %1469
      %1471 = vrot.lane.b32.xlu0 %v882, 1
      %v1472 = vpop.permute.xlu0 %1471
      %1473 = vrot.lane.b32.xlu0 %v883, 1
      %v1474 = vpop.permute.xlu0 %1473
      %1475 = vrot.lane.b32.xlu0 %v884, 1
      %v1476 = vpop.permute.xlu0 %1475
      %1477 = vrot.lane.b32.xlu0 %v885, 1
      %v1478 = vpop.permute.xlu0 %1477
      %1479 = vrot.lane.b32.xlu0 %v886, 1
      %v1480 = vpop.permute.xlu0 %1479
      %1481 = vrot.lane.b32.xlu0 %v887, 1
      %v1482 = vpop.permute.xlu0 %1481
      %1483 = vrot.lane.b32.xlu0 %v888, 1
      %v1484 = vpop.permute.xlu0 %1483
      %1485 = vrot.lane.b32.xlu0 %v889, 1
      %v1486 = vpop.permute.xlu0 %1485
      %1487 = vrot.lane.b32.xlu0 %v890, 1
      %v1488 = vpop.permute.xlu0 %1487
      %1489 = vrot.lane.b32.xlu0 %v891, 1
      %v1490 = vpop.permute.xlu0 %1489
      %1491 = vrot.lane.b32.xlu0 %v892, 1
      %v1492 = vpop.permute.xlu0 %1491
      %1493 = vrot.lane.b32.xlu0 %v893, 1
      %v1494 = vpop.permute.xlu0 %1493
      %1495 = vrot.lane.b32.xlu0 %v894, 1
      %v1496 = vpop.permute.xlu0 %1495
      %1497 = vrot.lane.b32.xlu0 %v895, 1
      %v1498 = vpop.permute.xlu0 %1497
      %vm1499 = vcmask 7168
      %v1500 = vsel %vm1499, %v1468, %v1470
      %v1501 = vsel %vm1499, %v1470, %v1472
      %v1502 = vsel %vm1499, %v1472, %v1474
      %v1503 = vsel %vm1499, %v1476, %v1478
      %v1504 = vsel %vm1499, %v1478, %v1480
      %v1505 = vsel %vm1499, %v1480, %v1482
      %v1506 = vsel %vm1499, %v1484, %v1486
      %v1507 = vsel %vm1499, %v1486, %v1488
      %v1508 = vsel %vm1499, %v1488, %v1490
      %v1509 = vsel %vm1499, %v1492, %v1494
      %v1510 = vsel %vm1499, %v1494, %v1496
      %v1511 = vsel %vm1499, %v1496, %v1498
      %v1525 = vsel %vm953, %v1463, 0
      %v1528 = vsel %vm953, %v1464, 0
      %v1531 = vsel %vm953, %v1465, 0
      %v1534 = vsel %vm953, %v1466, 0
      %1536 = vmatpush.bf16.msra.mxu0 0
      %1537 = vmatpush.bf16.msra.mxu0 0
      %1538 = vmatpush.bf16.msra.mxu0 0
      %1539 = vmatpush.bf16.msra.mxu0 0
      %1540 = vmatpush.bf16.msra.mxu0 %v1509
      %1541 = vmatpush.bf16.msra.mxu0 %v1506
      %1542 = vmatpush.bf16.msra.mxu0 %v1503
      %1543 = vmatpush.bf16.msra.mxu0 %v1500
      %1544 = vmatmul.bf16.gmra.mxu0 %v1525
      %v1545 = vpop.f32.mrf.mxu0
      %v1546 = vadd.f32 0.0, %v1545
      %v1547 = vpop.f32.mrf.mxu0
      %v1548 = vadd.f32 0.0, %v1547
      %1549 = vmatmul.bf16.gmra.mxu0 %v1528
      %v1550 = vpop.f32.mrf.mxu0
      %v1551 = vadd.f32 0.0, %v1550
      %v1552 = vpop.f32.mrf.mxu0
      %v1553 = vadd.f32 0.0, %v1552
      %1554 = vmatmul.bf16.gmra.mxu0 %v1531
      %v1555 = vpop.f32.mrf.mxu0
      %v1556 = vadd.f32 0.0, %v1555
      %v1557 = vpop.f32.mrf.mxu0
      %v1558 = vadd.f32 0.0, %v1557
      %1559 = vmatmul.bf16.gmra.mxu0 %v1534
      %v1560 = vpop.f32.mrf.mxu0
      %v1561 = vadd.f32 0.0, %v1560
      %v1562 = vpop.f32.mrf.mxu0
      %v1563 = vadd.f32 0.0, %v1562
      %1564 = vdwg.mxu0
      %1565 = vmatpush.bf16.msra.mxu0 0
      %1566 = vmatpush.bf16.msra.mxu0 0
      %1567 = vmatpush.bf16.msra.mxu0 0
      %1568 = vmatpush.bf16.msra.mxu0 0
      %1569 = vmatpush.bf16.msra.mxu0 %v1510
      %1570 = vmatpush.bf16.msra.mxu0 %v1507
      %1571 = vmatpush.bf16.msra.mxu0 %v1504
      %1572 = vmatpush.bf16.msra.mxu0 %v1501
      %1573 = vmatmul.bf16.gmra.mxu0 %v1525
      %v1574 = vpop.f32.mrf.mxu0
      %v1575 = vadd.f32 0.0, %v1574
      %v1576 = vpop.f32.mrf.mxu0
      %v1577 = vadd.f32 0.0, %v1576
      %1578 = vmatmul.bf16.gmra.mxu0 %v1528
      %v1579 = vpop.f32.mrf.mxu0
      %v1580 = vadd.f32 0.0, %v1579
      %v1581 = vpop.f32.mrf.mxu0
      %v1582 = vadd.f32 0.0, %v1581
      %1583 = vmatmul.bf16.gmra.mxu0 %v1531
      %v1584 = vpop.f32.mrf.mxu0
      %v1585 = vadd.f32 0.0, %v1584
      %v1586 = vpop.f32.mrf.mxu0
      %v1587 = vadd.f32 0.0, %v1586
      %1588 = vmatmul.bf16.gmra.mxu0 %v1534
      %v1589 = vpop.f32.mrf.mxu0
      %v1590 = vadd.f32 0.0, %v1589
      %v1591 = vpop.f32.mrf.mxu0
      %v1592 = vadd.f32 0.0, %v1591
      %1593 = vdwg.mxu0
      %1594 = vmatpush.bf16.msra.mxu0 0
      %1595 = vmatpush.bf16.msra.mxu0 0
      %1596 = vmatpush.bf16.msra.mxu0 0
      %1597 = vmatpush.bf16.msra.mxu0 0
      %1598 = vmatpush.bf16.msra.mxu0 %v1511
      %1599 = vmatpush.bf16.msra.mxu0 %v1508
      %1600 = vmatpush.bf16.msra.mxu0 %v1505
      %1601 = vmatpush.bf16.msra.mxu0 %v1502
      %1602 = vmatmul.bf16.gmra.mxu0 %v1525
      %v1603 = vpop.f32.mrf.mxu0
      %v1604 = vadd.f32 0.0, %v1603
      %v1605 = vpop.f32.mrf.mxu0
      %v1606 = vadd.f32 0.0, %v1605
      %1607 = vmatmul.bf16.gmra.mxu0 %v1528
      %v1608 = vpop.f32.mrf.mxu0
      %v1609 = vadd.f32 0.0, %v1608
      %v1610 = vpop.f32.mrf.mxu0
      %v1611 = vadd.f32 0.0, %v1610
      %1612 = vmatmul.bf16.gmra.mxu0 %v1531
      %v1613 = vpop.f32.mrf.mxu0
      %v1614 = vadd.f32 0.0, %v1613
      %v1615 = vpop.f32.mrf.mxu0
      %v1616 = vadd.f32 0.0, %v1615
      %1617 = vmatmul.bf16.gmra.mxu0 %v1534
      %v1618 = vpop.f32.mrf.mxu0
      %v1619 = vadd.f32 0.0, %v1618
      %v1620 = vpop.f32.mrf.mxu0
      %v1621 = vadd.f32 0.0, %v1620
      %1622 = vdwg.mxu0
      %v1623 = vadd.f32 %v1414, %v1546
      %v1624 = vadd.f32 %v1415, %v1575
      %v1625 = vadd.f32 %v1416, %v1604
      %v1626 = vadd.f32 %v1417, %v1548
      %v1627 = vadd.f32 %v1418, %v1577
      %v1628 = vadd.f32 %v1419, %v1606
      %v1629 = vadd.f32 %v1420, %v1551
      %v1630 = vadd.f32 %v1421, %v1580
      %v1631 = vadd.f32 %v1422, %v1609
      %v1632 = vadd.f32 %v1423, %v1553
      %v1633 = vadd.f32 %v1424, %v1582
      %v1634 = vadd.f32 %v1425, %v1611
      %v1635 = vadd.f32 %v1426, %v1556
      %v1636 = vadd.f32 %v1427, %v1585
      %v1637 = vadd.f32 %v1428, %v1614
      %v1638 = vadd.f32 %v1429, %v1558
      %v1639 = vadd.f32 %v1430, %v1587
      %v1640 = vadd.f32 %v1431, %v1616
      %v1641 = vadd.f32 %v1432, %v1561
      %v1642 = vadd.f32 %v1433, %v1590
      %v1643 = vadd.f32 %v1434, %v1619
      %v1644 = vadd.f32 %v1435, %v1563
      %v1645 = vadd.f32 %v1436, %v1592
      %v1646 = vadd.f32 %v1437, %v1621
      %v1647 = vld [vmem:[#allocation2 + $0x4] sm:$0xff]
      %v1648 = vld [vmem:[#allocation2 + $0xc] sm:$0xf]
      %v1649 = vld [vmem:[#allocation2 + $0x14] sm:$0xff]
      %v1650 = vld [vmem:[#allocation2 + $0x1c] sm:$0xf]
      %v1651 = vld [vmem:[#allocation2 + $0x24] sm:$0xff]
      %v1652 = vld [vmem:[#allocation2 + $0x2c] sm:$0xf]
      %v1653 = vld [vmem:[#allocation2 + $0x34] sm:$0xff]
      %v1654 = vld [vmem:[#allocation2 + $0x3c] sm:$0xf]
      %v1655 = vld [vmem:[#allocation2 + $0x44] sm:$0xff]
      %v1656 = vld [vmem:[#allocation2 + $0x4c] sm:$0xf]
      %v1657 = vld [vmem:[#allocation2 + $0x54] sm:$0xff]
      %v1658 = vld [vmem:[#allocation2 + $0x5c] sm:$0xf]
      %v1659 = vld [vmem:[#allocation2 + $0x64] sm:$0xff]
      %v1660 = vld [vmem:[#allocation2 + $0x6c] sm:$0xf]
      %v1661 = vld [vmem:[#allocation2 + $0x74] sm:$0xff]
      %v1662 = vld [vmem:[#allocation2 + $0x7c] sm:$0xf]
      %s1663 = scalar_lea.vmem %s3, 128
      %v1664 = vld [vmem:[%s1663] sm:$0xf]
      %v1665 = vld [vmem:[%s1663 + $0x4] sm:$0xf]
      %v1666 = vld [vmem:[%s1663 + $0x8] sm:$0xf]
      %v1667 = vld [vmem:[%s1663 + $0xc] sm:$0xf]
      %v1668 = vld [vmem:[%s1663 + $0x10] sm:$0xf]
      %v1669 = vld [vmem:[%s1663 + $0x14] sm:$0xf]
      %v1670 = vld [vmem:[%s1663 + $0x18] sm:$0xf]
      %v1671 = vld [vmem:[%s1663 + $0x1c] sm:$0xf]
      %v1680 = vunpack.c.l.b16 %v1664
      %v1681 = vunpack.c.l.b16 %v1665
      %v1682 = vunpack.c.l.b16 %v1666
      %v1683 = vunpack.c.l.b16 %v1667
      %v1684 = vunpack.c.l.b16 %v1668
      %v1685 = vunpack.c.l.b16 %v1669
      %v1686 = vunpack.c.l.b16 %v1670
      %v1687 = vunpack.c.l.b16 %v1671
      %v1688 = vpack.c.b16 %v1681, %v1680
      %v1689 = vpack.c.b16 %v1683, %v1682
      %v1690 = vpack.c.b16 %v1685, %v1684
      %v1691 = vpack.c.b16 %v1687, %v1686
      %v1708 = vunpack.c.l.b16 %v1647
      %v1709 = vunpack.c.h.b16 %v1647
      %v1710 = vunpack.c.l.b16 %v1648
      %v1711 = vunpack.c.l.b16 %v1649
      %v1712 = vunpack.c.h.b16 %v1649
      %v1713 = vunpack.c.l.b16 %v1650
      %v1714 = vunpack.c.l.b16 %v1651
      %v1715 = vunpack.c.h.b16 %v1651
      %v1716 = vunpack.c.l.b16 %v1652
      %v1717 = vunpack.c.l.b16 %v1653
      %v1718 = vunpack.c.h.b16 %v1653
      %v1719 = vunpack.c.l.b16 %v1654
      %v1720 = vunpack.c.l.b16 %v1655
      %v1721 = vunpack.c.h.b16 %v1655
      %v1722 = vunpack.c.l.b16 %v1656
      %v1723 = vunpack.c.l.b16 %v1657
      %v1724 = vunpack.c.h.b16 %v1657
      %v1725 = vunpack.c.l.b16 %v1658
      %v1726 = vunpack.c.l.b16 %v1659
      %v1727 = vunpack.c.h.b16 %v1659
      %v1728 = vunpack.c.l.b16 %v1660
      %v1729 = vunpack.c.l.b16 %v1661
      %v1730 = vunpack.c.h.b16 %v1661
      %v1731 = vunpack.c.l.b16 %v1662
      %v1732 = vpack.c.b16 %v1711, %v1708
      %v1733 = vpack.c.b16 %v1712, %v1709
      %v1734 = vpack.c.b16 %v1713, %v1710
      %v1735 = vpack.c.b16 %v1717, %v1714
      %v1736 = vpack.c.b16 %v1718, %v1715
      %v1737 = vpack.c.b16 %v1719, %v1716
      %v1738 = vpack.c.b16 %v1723, %v1720
      %v1739 = vpack.c.b16 %v1724, %v1721
      %v1740 = vpack.c.b16 %v1725, %v1722
      %v1741 = vpack.c.b16 %v1729, %v1726
      %v1742 = vpack.c.b16 %v1730, %v1727
      %v1743 = vpack.c.b16 %v1731, %v1728
      %v1757 = vsel %vm953, %v1688, 0
      %v1760 = vsel %vm953, %v1689, 0
      %v1763 = vsel %vm953, %v1690, 0
      %v1766 = vsel %vm953, %v1691, 0
      %1768 = vmatpush.bf16.msra.mxu0 0
      %1769 = vmatpush.bf16.msra.mxu0 0
      %1770 = vmatpush.bf16.msra.mxu0 0
      %1771 = vmatpush.bf16.msra.mxu0 0
      %1772 = vmatpush.bf16.msra.mxu0 %v1741
      %1773 = vmatpush.bf16.msra.mxu0 %v1738
      %1774 = vmatpush.bf16.msra.mxu0 %v1735
      %1775 = vmatpush.bf16.msra.mxu0 %v1732
      %1776 = vmatmul.bf16.gmra.mxu0 %v1757
      %v1777 = vpop.f32.mrf.mxu0
      %v1778 = vadd.f32 0.0, %v1777
      %v1779 = vpop.f32.mrf.mxu0
      %v1780 = vadd.f32 0.0, %v1779
      %1781 = vmatmul.bf16.gmra.mxu0 %v1760
      %v1782 = vpop.f32.mrf.mxu0
      %v1783 = vadd.f32 0.0, %v1782
      %v1784 = vpop.f32.mrf.mxu0
      %v1785 = vadd.f32 0.0, %v1784
      %1786 = vmatmul.bf16.gmra.mxu0 %v1763
      %v1787 = vpop.f32.mrf.mxu0
      %v1788 = vadd.f32 0.0, %v1787
      %v1789 = vpop.f32.mrf.mxu0
      %v1790 = vadd.f32 0.0, %v1789
      %1791 = vmatmul.bf16.gmra.mxu0 %v1766
      %v1792 = vpop.f32.mrf.mxu0
      %v1793 = vadd.f32 0.0, %v1792
      %v1794 = vpop.f32.mrf.mxu0
      %v1795 = vadd.f32 0.0, %v1794
      %1796 = vdwg.mxu0
      %1797 = vmatpush.bf16.msra.mxu0 0
      %1798 = vmatpush.bf16.msra.mxu0 0
      %1799 = vmatpush.bf16.msra.mxu0 0
      %1800 = vmatpush.bf16.msra.mxu0 0
      %1801 = vmatpush.bf16.msra.mxu0 %v1742
      %1802 = vmatpush.bf16.msra.mxu0 %v1739
      %1803 = vmatpush.bf16.msra.mxu0 %v1736
      %1804 = vmatpush.bf16.msra.mxu0 %v1733
      %1805 = vmatmul.bf16.gmra.mxu0 %v1757
      %v1806 = vpop.f32.mrf.mxu0
      %v1807 = vadd.f32 0.0, %v1806
      %v1808 = vpop.f32.mrf.mxu0
      %v1809 = vadd.f32 0.0, %v1808
      %1810 = vmatmul.bf16.gmra.mxu0 %v1760
      %v1811 = vpop.f32.mrf.mxu0
      %v1812 = vadd.f32 0.0, %v1811
      %v1813 = vpop.f32.mrf.mxu0
      %v1814 = vadd.f32 0.0, %v1813
      %1815 = vmatmul.bf16.gmra.mxu0 %v1763
      %v1816 = vpop.f32.mrf.mxu0
      %v1817 = vadd.f32 0.0, %v1816
      %v1818 = vpop.f32.mrf.mxu0
      %v1819 = vadd.f32 0.0, %v1818
      %1820 = vmatmul.bf16.gmra.mxu0 %v1766
      %v1821 = vpop.f32.mrf.mxu0
      %v1822 = vadd.f32 0.0, %v1821
      %v1823 = vpop.f32.mrf.mxu0
      %v1824 = vadd.f32 0.0, %v1823
      %1825 = vdwg.mxu0
      %1826 = vmatpush.bf16.msra.mxu0 0
      %1827 = vmatpush.bf16.msra.mxu0 0
      %1828 = vmatpush.bf16.msra.mxu0 0
      %1829 = vmatpush.bf16.msra.mxu0 0
      %1830 = vmatpush.bf16.msra.mxu0 %v1743
      %1831 = vmatpush.bf16.msra.mxu0 %v1740
      %1832 = vmatpush.bf16.msra.mxu0 %v1737
      %1833 = vmatpush.bf16.msra.mxu0 %v1734
      %1834 = vmatmul.bf16.gmra.mxu0 %v1757
      %v1835 = vpop.f32.mrf.mxu0
      %v1836 = vadd.f32 0.0, %v1835
      %v1837 = vpop.f32.mrf.mxu0
      %v1838 = vadd.f32 0.0, %v1837
      %1839 = vmatmul.bf16.gmra.mxu0 %v1760
      %v1840 = vpop.f32.mrf.mxu0
      %v1841 = vadd.f32 0.0, %v1840
      %v1842 = vpop.f32.mrf.mxu0
      %v1843 = vadd.f32 0.0, %v1842
      %1844 = vmatmul.bf16.gmra.mxu0 %v1763
      %v1845 = vpop.f32.mrf.mxu0
      %v1846 = vadd.f32 0.0, %v1845
      %v1847 = vpop.f32.mrf.mxu0
      %v1848 = vadd.f32 0.0, %v1847
      %1849 = vmatmul.bf16.gmra.mxu0 %v1766
      %v1850 = vpop.f32.mrf.mxu0
      %v1851 = vadd.f32 0.0, %v1850
      %v1852 = vpop.f32.mrf.mxu0
      %v1853 = vadd.f32 0.0, %v1852
      %1854 = vdwg.mxu0
      %v1855 = vadd.f32 %v1623, %v1778
      %v1856 = vadd.f32 %v1624, %v1807
      %v1857 = vadd.f32 %v1625, %v1836
      %v1858 = vadd.f32 %v1626, %v1780
      %v1859 = vadd.f32 %v1627, %v1809
      %v1860 = vadd.f32 %v1628, %v1838
      %v1861 = vadd.f32 %v1629, %v1783
      %v1862 = vadd.f32 %v1630, %v1812
      %v1863 = vadd.f32 %v1631, %v1841
      %v1864 = vadd.f32 %v1632, %v1785
      %v1865 = vadd.f32 %v1633, %v1814
      %v1866 = vadd.f32 %v1634, %v1843
      %v1867 = vadd.f32 %v1635, %v1788
      %v1868 = vadd.f32 %v1636, %v1817
      %v1869 = vadd.f32 %v1637, %v1846
      %v1870 = vadd.f32 %v1638, %v1790
      %v1871 = vadd.f32 %v1639, %v1819
      %v1872 = vadd.f32 %v1640, %v1848
      %v1873 = vadd.f32 %v1641, %v1793
      %v1874 = vadd.f32 %v1642, %v1822
      %v1875 = vadd.f32 %v1643, %v1851
      %v1876 = vadd.f32 %v1644, %v1795
      %v1877 = vadd.f32 %v1645, %v1824
      %v1878 = vadd.f32 %v1646, %v1853
      %s1879 = scalar_lea.vmem %s3, 160
      %v1880 = vld [vmem:[%s1879] sm:$0xf]
      %v1881 = vld [vmem:[%s1879 + $0x4] sm:$0xf]
      %v1882 = vld [vmem:[%s1879 + $0x8] sm:$0xf]
      %v1883 = vld [vmem:[%s1879 + $0xc] sm:$0xf]
      %v1884 = vld [vmem:[%s1879 + $0x10] sm:$0xf]
      %v1885 = vld [vmem:[%s1879 + $0x14] sm:$0xf]
      %v1886 = vld [vmem:[%s1879 + $0x18] sm:$0xf]
      %v1887 = vld [vmem:[%s1879 + $0x1c] sm:$0xf]
      %v1896 = vunpack.c.l.b16 %v1880
      %v1897 = vunpack.c.l.b16 %v1881
      %v1898 = vunpack.c.l.b16 %v1882
      %v1899 = vunpack.c.l.b16 %v1883
      %v1900 = vunpack.c.l.b16 %v1884
      %v1901 = vunpack.c.l.b16 %v1885
      %v1902 = vunpack.c.l.b16 %v1886
      %v1903 = vunpack.c.l.b16 %v1887
      %v1904 = vpack.c.b16 %v1897, %v1896
      %v1905 = vpack.c.b16 %v1899, %v1898
      %v1906 = vpack.c.b16 %v1901, %v1900
      %v1907 = vpack.c.b16 %v1903, %v1902
      %1908 = vrot.lane.b32.xlu0 %v1732, 127
      %v1909 = vpop.permute.xlu0 %1908
      %1910 = vrot.lane.b32.xlu0 %v1733, 127
      %v1911 = vpop.permute.xlu0 %1910
      %1912 = vrot.lane.b32.xlu0 %v1734, 127
      %v1913 = vpop.permute.xlu0 %1912
      %1914 = vrot.lane.b32.xlu0 %v1735, 127
      %v1915 = vpop.permute.xlu0 %1914
      %1916 = vrot.lane.b32.xlu0 %v1736, 127
      %v1917 = vpop.permute.xlu0 %1916
      %1918 = vrot.lane.b32.xlu0 %v1737, 127
      %v1919 = vpop.permute.xlu0 %1918
      %1920 = vrot.lane.b32.xlu0 %v1738, 127
      %v1921 = vpop.permute.xlu0 %1920
      %1922 = vrot.lane.b32.xlu0 %v1739, 127
      %v1923 = vpop.permute.xlu0 %1922
      %1924 = vrot.lane.b32.xlu0 %v1740, 127
      %v1925 = vpop.permute.xlu0 %1924
      %1926 = vrot.lane.b32.xlu0 %v1741, 127
      %v1927 = vpop.permute.xlu0 %1926
      %1928 = vrot.lane.b32.xlu0 %v1742, 127
      %v1929 = vpop.permute.xlu0 %1928
      %1930 = vrot.lane.b32.xlu0 %v1743, 127
      %v1931 = vpop.permute.xlu0 %1930
      %vm1932 = vcmask 1039360
      %v1933 = vsel %vm1932, %v1909, %v1911
      %v1934 = vsel %vm1932, %v1911, %v1913
      %v1935 = vsel %vm1932, %v1915, %v1917
      %v1936 = vsel %vm1932, %v1917, %v1919
      %v1937 = vsel %vm1932, %v1921, %v1923
      %v1938 = vsel %vm1932, %v1923, %v1925
      %v1939 = vsel %vm1932, %v1927, %v1929
      %v1940 = vsel %vm1932, %v1929, %v1931
      %v1954 = vsel %vm953, %v1904, 0
      %v1957 = vsel %vm953, %v1905, 0
      %v1960 = vsel %vm953, %v1906, 0
      %v1963 = vsel %vm953, %v1907, 0
      %1965 = vmatpush.bf16.msra.mxu0 0
      %1966 = vmatpush.bf16.msra.mxu0 0
      %1967 = vmatpush.bf16.msra.mxu0 0
      %1968 = vmatpush.bf16.msra.mxu0 0
      %1969 = vmatpush.bf16.msra.mxu0 %v1939
      %1970 = vmatpush.bf16.msra.mxu0 %v1937
      %1971 = vmatpush.bf16.msra.mxu0 %v1935
      %1972 = vmatpush.bf16.msra.mxu0 %v1933
      %1973 = vmatmul.bf16.gmra.mxu0 %v1954
      %v1974 = vpop.f32.mrf.mxu0
      %v1975 = vadd.f32 0.0, %v1974
      %v1976 = vpop.f32.mrf.mxu0
      %v1977 = vadd.f32 0.0, %v1976
      %1978 = vmatmul.bf16.gmra.mxu0 %v1957
      %v1979 = vpop.f32.mrf.mxu0
      %v1980 = vadd.f32 0.0, %v1979
      %v1981 = vpop.f32.mrf.mxu0
      %v1982 = vadd.f32 0.0, %v1981
      %1983 = vmatmul.bf16.gmra.mxu0 %v1960
      %v1984 = vpop.f32.mrf.mxu0
      %v1985 = vadd.f32 0.0, %v1984
      %v1986 = vpop.f32.mrf.mxu0
      %v1987 = vadd.f32 0.0, %v1986
      %1988 = vmatmul.bf16.gmra.mxu0 %v1963
      %v1989 = vpop.f32.mrf.mxu0
      %v1990 = vadd.f32 0.0, %v1989
      %v1991 = vpop.f32.mrf.mxu0
      %v1992 = vadd.f32 0.0, %v1991
      %1993 = vdwg.mxu0
      %1994 = vmatpush.bf16.msra.mxu0 0
      %1995 = vmatpush.bf16.msra.mxu0 0
      %1996 = vmatpush.bf16.msra.mxu0 0
      %1997 = vmatpush.bf16.msra.mxu0 0
      %1998 = vmatpush.bf16.msra.mxu0 %v1940
      %1999 = vmatpush.bf16.msra.mxu0 %v1938
      %2000 = vmatpush.bf16.msra.mxu0 %v1936
      %2001 = vmatpush.bf16.msra.mxu0 %v1934
      %2002 = vmatmul.bf16.gmra.mxu0 %v1954
      %v2003 = vpop.f32.mrf.mxu0
      %v2004 = vadd.f32 0.0, %v2003
      %v2005 = vpop.f32.mrf.mxu0
      %v2006 = vadd.f32 0.0, %v2005
      %2007 = vmatmul.bf16.gmra.mxu0 %v1957
      %v2008 = vpop.f32.mrf.mxu0
      %v2009 = vadd.f32 0.0, %v2008
      %v2010 = vpop.f32.mrf.mxu0
      %v2011 = vadd.f32 0.0, %v2010
      %2012 = vmatmul.bf16.gmra.mxu0 %v1960
      %v2013 = vpop.f32.mrf.mxu0
      %v2014 = vadd.f32 0.0, %v2013
      %v2015 = vpop.f32.mrf.mxu0
      %v2016 = vadd.f32 0.0, %v2015
      %2017 = vmatmul.bf16.gmra.mxu0 %v1963
      %v2018 = vpop.f32.mrf.mxu0
      %v2019 = vadd.f32 0.0, %v2018
      %v2020 = vpop.f32.mrf.mxu0
      %v2021 = vadd.f32 0.0, %v2020
      %2022 = vdwg.mxu0
      %2023 = vmatpush.bf16.msra.mxu0 0
      %2024 = vmatpush.bf16.msra.mxu0 0
      %2025 = vmatpush.bf16.msra.mxu0 0
      %2026 = vmatpush.bf16.msra.mxu0 0
      %2027 = vmatpush.bf16.msra.mxu0 %v1931
      %2028 = vmatpush.bf16.msra.mxu0 %v1925
      %2029 = vmatpush.bf16.msra.mxu0 %v1919
      %2030 = vmatpush.bf16.msra.mxu0 %v1913
      %2031 = vmatmul.bf16.gmra.mxu0 %v1954
      %v2032 = vpop.f32.mrf.mxu0
      %v2033 = vadd.f32 0.0, %v2032
      %v2034 = vpop.f32.mrf.mxu0
      %v2035 = vadd.f32 0.0, %v2034
      %2036 = vmatmul.bf16.gmra.mxu0 %v1957
      %v2037 = vpop.f32.mrf.mxu0
      %v2038 = vadd.f32 0.0, %v2037
      %v2039 = vpop.f32.mrf.mxu0
      %v2040 = vadd.f32 0.0, %v2039
      %2041 = vmatmul.bf16.gmra.mxu0 %v1960
      %v2042 = vpop.f32.mrf.mxu0
      %v2043 = vadd.f32 0.0, %v2042
      %v2044 = vpop.f32.mrf.mxu0
      %v2045 = vadd.f32 0.0, %v2044
      %2046 = vmatmul.bf16.gmra.mxu0 %v1963
      %v2047 = vpop.f32.mrf.mxu0
      %v2048 = vadd.f32 0.0, %v2047
      %v2049 = vpop.f32.mrf.mxu0
      %v2050 = vadd.f32 0.0, %v2049
      %2051 = vdwg.mxu0
      %v2052 = vadd.f32 %v1855, %v1975
      %v2053 = vadd.f32 %v1856, %v2004
      %v2054 = vadd.f32 %v1857, %v2033
      %v2055 = vadd.f32 %v1858, %v1977
      %v2056 = vadd.f32 %v1859, %v2006
      %v2057 = vadd.f32 %v1860, %v2035
      %v2058 = vadd.f32 %v1861, %v1980
      %v2059 = vadd.f32 %v1862, %v2009
      %v2060 = vadd.f32 %v1863, %v2038
      %v2061 = vadd.f32 %v1864, %v1982
      %v2062 = vadd.f32 %v1865, %v2011
      %v2063 = vadd.f32 %v1866, %v2040
      %v2064 = vadd.f32 %v1867, %v1985
      %v2065 = vadd.f32 %v1868, %v2014
      %v2066 = vadd.f32 %v1869, %v2043
      %v2067 = vadd.f32 %v1870, %v1987
      %v2068 = vadd.f32 %v1871, %v2016
      %v2069 = vadd.f32 %v1872, %v2045
      %v2070 = vadd.f32 %v1873, %v1990
      %v2071 = vadd.f32 %v1874, %v2019
      %v2072 = vadd.f32 %v1875, %v2048
      %v2073 = vadd.f32 %v1876, %v1992
      %v2074 = vadd.f32 %v1877, %v2021
      %v2075 = vadd.f32 %v1878, %v2050
      %s2076 = scalar_lea.vmem %s3, 192
      %v2077 = vld [vmem:[%s2076] sm:$0xf]
      %v2078 = vld [vmem:[%s2076 + $0x4] sm:$0xf]
      %v2079 = vld [vmem:[%s2076 + $0x8] sm:$0xf]
      %v2080 = vld [vmem:[%s2076 + $0xc] sm:$0xf]
      %v2081 = vld [vmem:[%s2076 + $0x10] sm:$0xf]
      %v2082 = vld [vmem:[%s2076 + $0x14] sm:$0xf]
      %v2083 = vld [vmem:[%s2076 + $0x18] sm:$0xf]
      %v2084 = vld [vmem:[%s2076 + $0x1c] sm:$0xf]
      %v2093 = vunpack.c.l.b16 %v2077
      %v2094 = vunpack.c.l.b16 %v2078
      %v2095 = vunpack.c.l.b16 %v2079
      %v2096 = vunpack.c.l.b16 %v2080
      %v2097 = vunpack.c.l.b16 %v2081
      %v2098 = vunpack.c.l.b16 %v2082
      %v2099 = vunpack.c.l.b16 %v2083
      %v2100 = vunpack.c.l.b16 %v2084
      %v2101 = vpack.c.b16 %v2094, %v2093
      %v2102 = vpack.c.b16 %v2096, %v2095
      %v2103 = vpack.c.b16 %v2098, %v2097
      %v2104 = vpack.c.b16 %v2100, %v2099
      %2105 = vrot.lane.b32.xlu0 %v1732, 109
      %v2106 = vpop.permute.xlu0 %2105
      %2107 = vrot.lane.b32.xlu0 %v1733, 109
      %v2108 = vpop.permute.xlu0 %2107
      %2109 = vrot.lane.b32.xlu0 %v1734, 109
      %v2110 = vpop.permute.xlu0 %2109
      %2111 = vrot.lane.b32.xlu0 %v1735, 109
      %v2112 = vpop.permute.xlu0 %2111
      %2113 = vrot.lane.b32.xlu0 %v1736, 109
      %v2114 = vpop.permute.xlu0 %2113
      %2115 = vrot.lane.b32.xlu0 %v1737, 109
      %v2116 = vpop.permute.xlu0 %2115
      %2117 = vrot.lane.b32.xlu0 %v1738, 109
      %v2118 = vpop.permute.xlu0 %2117
      %2119 = vrot.lane.b32.xlu0 %v1739, 109
      %v2120 = vpop.permute.xlu0 %2119
      %2121 = vrot.lane.b32.xlu0 %v1740, 109
      %v2122 = vpop.permute.xlu0 %2121
      %2123 = vrot.lane.b32.xlu0 %v1741, 109
      %v2124 = vpop.permute.xlu0 %2123
      %2125 = vrot.lane.b32.xlu0 %v1742, 109
      %v2126 = vpop.permute.xlu0 %2125
      %2127 = vrot.lane.b32.xlu0 %v1743, 109
      %v2128 = vpop.permute.xlu0 %2127
      %vm2129 = vcmask 891904
      %v2130 = vsel %vm2129, %v2106, %v2108
      %v2131 = vsel %vm2129, %v2108, %v2110
      %v2132 = vsel %vm2129, %v2112, %v2114
      %v2133 = vsel %vm2129, %v2114, %v2116
      %v2134 = vsel %vm2129, %v2118, %v2120
      %v2135 = vsel %vm2129, %v2120, %v2122
      %v2136 = vsel %vm2129, %v2124, %v2126
      %v2137 = vsel %vm2129, %v2126, %v2128
      %v2151 = vsel %vm953, %v2101, 0
      %v2154 = vsel %vm953, %v2102, 0
      %v2157 = vsel %vm953, %v2103, 0
      %v2160 = vsel %vm953, %v2104, 0
      %2162 = vmatpush.bf16.msra.mxu0 0
      %2163 = vmatpush.bf16.msra.mxu0 0
      %2164 = vmatpush.bf16.msra.mxu0 0
      %2165 = vmatpush.bf16.msra.mxu0 0
      %2166 = vmatpush.bf16.msra.mxu0 %v2136
      %2167 = vmatpush.bf16.msra.mxu0 %v2134
      %2168 = vmatpush.bf16.msra.mxu0 %v2132
      %2169 = vmatpush.bf16.msra.mxu0 %v2130
      %2170 = vmatmul.bf16.gmra.mxu0 %v2151
      %v2171 = vpop.f32.mrf.mxu0
      %v2172 = vadd.f32 0.0, %v2171
      %v2173 = vpop.f32.mrf.mxu0
      %v2174 = vadd.f32 0.0, %v2173
      %2175 = vmatmul.bf16.gmra.mxu0 %v2154
      %v2176 = vpop.f32.mrf.mxu0
      %v2177 = vadd.f32 0.0, %v2176
      %v2178 = vpop.f32.mrf.mxu0
      %v2179 = vadd.f32 0.0, %v2178
      %2180 = vmatmul.bf16.gmra.mxu0 %v2157
      %v2181 = vpop.f32.mrf.mxu0
      %v2182 = vadd.f32 0.0, %v2181
      %v2183 = vpop.f32.mrf.mxu0
      %v2184 = vadd.f32 0.0, %v2183
      %2185 = vmatmul.bf16.gmra.mxu0 %v2160
      %v2186 = vpop.f32.mrf.mxu0
      %v2187 = vadd.f32 0.0, %v2186
      %v2188 = vpop.f32.mrf.mxu0
      %v2189 = vadd.f32 0.0, %v2188
      %2190 = vdwg.mxu0
      %2191 = vmatpush.bf16.msra.mxu0 0
      %2192 = vmatpush.bf16.msra.mxu0 0
      %2193 = vmatpush.bf16.msra.mxu0 0
      %2194 = vmatpush.bf16.msra.mxu0 0
      %2195 = vmatpush.bf16.msra.mxu0 %v2137
      %2196 = vmatpush.bf16.msra.mxu0 %v2135
      %2197 = vmatpush.bf16.msra.mxu0 %v2133
      %2198 = vmatpush.bf16.msra.mxu0 %v2131
      %2199 = vmatmul.bf16.gmra.mxu0 %v2151
      %v2200 = vpop.f32.mrf.mxu0
      %v2201 = vadd.f32 0.0, %v2200
      %v2202 = vpop.f32.mrf.mxu0
      %v2203 = vadd.f32 0.0, %v2202
      %2204 = vmatmul.bf16.gmra.mxu0 %v2154
      %v2205 = vpop.f32.mrf.mxu0
      %v2206 = vadd.f32 0.0, %v2205
      %v2207 = vpop.f32.mrf.mxu0
      %v2208 = vadd.f32 0.0, %v2207
      %2209 = vmatmul.bf16.gmra.mxu0 %v2157
      %v2210 = vpop.f32.mrf.mxu0
      %v2211 = vadd.f32 0.0, %v2210
      %v2212 = vpop.f32.mrf.mxu0
      %v2213 = vadd.f32 0.0, %v2212
      %2214 = vmatmul.bf16.gmra.mxu0 %v2160
      %v2215 = vpop.f32.mrf.mxu0
      %v2216 = vadd.f32 0.0, %v2215
      %v2217 = vpop.f32.mrf.mxu0
      %v2218 = vadd.f32 0.0, %v2217
      %2219 = vdwg.mxu0
      %2220 = vmatpush.bf16.msra.mxu0 0
      %2221 = vmatpush.bf16.msra.mxu0 0
      %2222 = vmatpush.bf16.msra.mxu0 0
      %2223 = vmatpush.bf16.msra.mxu0 0
      %2224 = vmatpush.bf16.msra.mxu0 %v2128
      %2225 = vmatpush.bf16.msra.mxu0 %v2122
      %2226 = vmatpush.bf16.msra.mxu0 %v2116
      %2227 = vmatpush.bf16.msra.mxu0 %v2110
      %2228 = vmatmul.bf16.gmra.mxu0 %v2151
      %v2229 = vpop.f32.mrf.mxu0
      %v2230 = vadd.f32 0.0, %v2229
      %v2231 = vpop.f32.mrf.mxu0
      %v2232 = vadd.f32 0.0, %v2231
      %2233 = vmatmul.bf16.gmra.mxu0 %v2154
      %v2234 = vpop.f32.mrf.mxu0
      %v2235 = vadd.f32 0.0, %v2234
      %v2236 = vpop.f32.mrf.mxu0
      %v2237 = vadd.f32 0.0, %v2236
      %2238 = vmatmul.bf16.gmra.mxu0 %v2157
      %v2239 = vpop.f32.mrf.mxu0
      %v2240 = vadd.f32 0.0, %v2239
      %v2241 = vpop.f32.mrf.mxu0
      %v2242 = vadd.f32 0.0, %v2241
      %2243 = vmatmul.bf16.gmra.mxu0 %v2160
      %v2244 = vpop.f32.mrf.mxu0
      %v2245 = vadd.f32 0.0, %v2244
      %v2246 = vpop.f32.mrf.mxu0
      %v2247 = vadd.f32 0.0, %v2246
      %2248 = vdwg.mxu0
      %v2249 = vadd.f32 %v2052, %v2172
      %v2250 = vadd.f32 %v2053, %v2201
      %v2251 = vadd.f32 %v2054, %v2230
      %v2252 = vadd.f32 %v2055, %v2174
      %v2253 = vadd.f32 %v2056, %v2203
      %v2254 = vadd.f32 %v2057, %v2232
      %v2255 = vadd.f32 %v2058, %v2177
      %v2256 = vadd.f32 %v2059, %v2206
      %v2257 = vadd.f32 %v2060, %v2235
      %v2258 = vadd.f32 %v2061, %v2179
      %v2259 = vadd.f32 %v2062, %v2208
      %v2260 = vadd.f32 %v2063, %v2237
      %v2261 = vadd.f32 %v2064, %v2182
      %v2262 = vadd.f32 %v2065, %v2211
      %v2263 = vadd.f32 %v2066, %v2240
      %v2264 = vadd.f32 %v2067, %v2184
      %v2265 = vadd.f32 %v2068, %v2213
      %v2266 = vadd.f32 %v2069, %v2242
      %v2267 = vadd.f32 %v2070, %v2187
      %v2268 = vadd.f32 %v2071, %v2216
      %v2269 = vadd.f32 %v2072, %v2245
      %v2270 = vadd.f32 %v2073, %v2189
      %v2271 = vadd.f32 %v2074, %v2218
      %v2272 = vadd.f32 %v2075, %v2247
      %s2273 = scalar_lea.vmem %s3, 224
      %v2274 = vld [vmem:[%s2273] sm:$0xf]
      %v2275 = vld [vmem:[%s2273 + $0x4] sm:$0xf]
      %v2276 = vld [vmem:[%s2273 + $0x8] sm:$0xf]
      %v2277 = vld [vmem:[%s2273 + $0xc] sm:$0xf]
      %v2278 = vld [vmem:[%s2273 + $0x10] sm:$0xf]
      %v2279 = vld [vmem:[%s2273 + $0x14] sm:$0xf]
      %v2280 = vld [vmem:[%s2273 + $0x18] sm:$0xf]
      %v2281 = vld [vmem:[%s2273 + $0x1c] sm:$0xf]
      %v2290 = vunpack.c.l.b16 %v2274
      %v2291 = vunpack.c.l.b16 %v2275
      %v2292 = vunpack.c.l.b16 %v2276
      %v2293 = vunpack.c.l.b16 %v2277
      %v2294 = vunpack.c.l.b16 %v2278
      %v2295 = vunpack.c.l.b16 %v2279
      %v2296 = vunpack.c.l.b16 %v2280
      %v2297 = vunpack.c.l.b16 %v2281
      %v2298 = vpack.c.b16 %v2291, %v2290
      %v2299 = vpack.c.b16 %v2293, %v2292
      %v2300 = vpack.c.b16 %v2295, %v2294
      %v2301 = vpack.c.b16 %v2297, %v2296
      %2302 = vrot.lane.b32.xlu0 %v1732, 108
      %v2303 = vpop.permute.xlu0 %2302
      %2304 = vrot.lane.b32.xlu0 %v1733, 108
      %v2305 = vpop.permute.xlu0 %2304
      %2306 = vrot.lane.b32.xlu0 %v1734, 108
      %v2307 = vpop.permute.xlu0 %2306
      %2308 = vrot.lane.b32.xlu0 %v1735, 108
      %v2309 = vpop.permute.xlu0 %2308
      %2310 = vrot.lane.b32.xlu0 %v1736, 108
      %v2311 = vpop.permute.xlu0 %2310
      %2312 = vrot.lane.b32.xlu0 %v1737, 108
      %v2313 = vpop.permute.xlu0 %2312
      %2314 = vrot.lane.b32.xlu0 %v1738, 108
      %v2315 = vpop.permute.xlu0 %2314
      %2316 = vrot.lane.b32.xlu0 %v1739, 108
      %v2317 = vpop.permute.xlu0 %2316
      %2318 = vrot.lane.b32.xlu0 %v1740, 108
      %v2319 = vpop.permute.xlu0 %2318
      %2320 = vrot.lane.b32.xlu0 %v1741, 108
      %v2321 = vpop.permute.xlu0 %2320
      %2322 = vrot.lane.b32.xlu0 %v1742, 108
      %v2323 = vpop.permute.xlu0 %2322
      %2324 = vrot.lane.b32.xlu0 %v1743, 108
      %v2325 = vpop.permute.xlu0 %2324
      %vm2326 = vcmask 883712
      %v2327 = vsel %vm2326, %v2303, %v2305
      %v2328 = vsel %vm2326, %v2305, %v2307
      %v2329 = vsel %vm2326, %v2309, %v2311
      %v2330 = vsel %vm2326, %v2311, %v2313
      %v2331 = vsel %vm2326, %v2315, %v2317
      %v2332 = vsel %vm2326, %v2317, %v2319
      %v2333 = vsel %vm2326, %v2321, %v2323
      %v2334 = vsel %vm2326, %v2323, %v2325
      %v2348 = vsel %vm953, %v2298, 0
      %v2351 = vsel %vm953, %v2299, 0
      %v2354 = vsel %vm953, %v2300, 0
      %v2357 = vsel %vm953, %v2301, 0
      %2359 = vmatpush.bf16.msra.mxu0 0
      %2360 = vmatpush.bf16.msra.mxu0 0
      %2361 = vmatpush.bf16.msra.mxu0 0
      %2362 = vmatpush.bf16.msra.mxu0 0
      %2363 = vmatpush.bf16.msra.mxu0 %v2333
      %2364 = vmatpush.bf16.msra.mxu0 %v2331
      %2365 = vmatpush.bf16.msra.mxu0 %v2329
      %2366 = vmatpush.bf16.msra.mxu0 %v2327
      %2367 = vmatmul.bf16.gmra.mxu0 %v2348
      %v2368 = vpop.f32.mrf.mxu0
      %v2369 = vadd.f32 0.0, %v2368
      %v2370 = vpop.f32.mrf.mxu0
      %v2371 = vadd.f32 0.0, %v2370
      %2372 = vmatmul.bf16.gmra.mxu0 %v2351
      %v2373 = vpop.f32.mrf.mxu0
      %v2374 = vadd.f32 0.0, %v2373
      %v2375 = vpop.f32.mrf.mxu0
      %v2376 = vadd.f32 0.0, %v2375
      %2377 = vmatmul.bf16.gmra.mxu0 %v2354
      %v2378 = vpop.f32.mrf.mxu0
      %v2379 = vadd.f32 0.0, %v2378
      %v2380 = vpop.f32.mrf.mxu0
      %v2381 = vadd.f32 0.0, %v2380
      %2382 = vmatmul.bf16.gmra.mxu0 %v2357
      %v2383 = vpop.f32.mrf.mxu0
      %v2384 = vadd.f32 0.0, %v2383
      %v2385 = vpop.f32.mrf.mxu0
      %v2386 = vadd.f32 0.0, %v2385
      %2387 = vdwg.mxu0
      %2388 = vmatpush.bf16.msra.mxu0 0
      %2389 = vmatpush.bf16.msra.mxu0 0
      %2390 = vmatpush.bf16.msra.mxu0 0
      %2391 = vmatpush.bf16.msra.mxu0 0
      %2392 = vmatpush.bf16.msra.mxu0 %v2334
      %2393 = vmatpush.bf16.msra.mxu0 %v2332
      %2394 = vmatpush.bf16.msra.mxu0 %v2330
      %2395 = vmatpush.bf16.msra.mxu0 %v2328
      %2396 = vmatmul.bf16.gmra.mxu0 %v2348
      %v2397 = vpop.f32.mrf.mxu0
      %v2398 = vadd.f32 0.0, %v2397
      %v2399 = vpop.f32.mrf.mxu0
      %v2400 = vadd.f32 0.0, %v2399
      %2401 = vmatmul.bf16.gmra.mxu0 %v2351
      %v2402 = vpop.f32.mrf.mxu0
      %v2403 = vadd.f32 0.0, %v2402
      %v2404 = vpop.f32.mrf.mxu0
      %v2405 = vadd.f32 0.0, %v2404
      %2406 = vmatmul.bf16.gmra.mxu0 %v2354
      %v2407 = vpop.f32.mrf.mxu0
      %v2408 = vadd.f32 0.0, %v2407
      %v2409 = vpop.f32.mrf.mxu0
      %v2410 = vadd.f32 0.0, %v2409
      %2411 = vmatmul.bf16.gmra.mxu0 %v2357
      %v2412 = vpop.f32.mrf.mxu0
      %v2413 = vadd.f32 0.0, %v2412
      %v2414 = vpop.f32.mrf.mxu0
      %v2415 = vadd.f32 0.0, %v2414
      %2416 = vdwg.mxu0
      %2417 = vmatpush.bf16.msra.mxu0 0
      %2418 = vmatpush.bf16.msra.mxu0 0
      %2419 = vmatpush.bf16.msra.mxu0 0
      %2420 = vmatpush.bf16.msra.mxu0 0
      %2421 = vmatpush.bf16.msra.mxu0 %v2325
      %2422 = vmatpush.bf16.msra.mxu0 %v2319
      %2423 = vmatpush.bf16.msra.mxu0 %v2313
      %2424 = vmatpush.bf16.msra.mxu0 %v2307
      %2425 = vmatmul.bf16.gmra.mxu0 %v2348
      %v2426 = vpop.f32.mrf.mxu0
      %v2427 = vadd.f32 0.0, %v2426
      %v2428 = vpop.f32.mrf.mxu0
      %v2429 = vadd.f32 0.0, %v2428
      %2430 = vmatmul.bf16.gmra.mxu0 %v2351
      %v2431 = vpop.f32.mrf.mxu0
      %v2432 = vadd.f32 0.0, %v2431
      %v2433 = vpop.f32.mrf.mxu0
      %v2434 = vadd.f32 0.0, %v2433
      %2435 = vmatmul.bf16.gmra.mxu0 %v2354
      %v2436 = vpop.f32.mrf.mxu0
      %v2437 = vadd.f32 0.0, %v2436
      %v2438 = vpop.f32.mrf.mxu0
      %v2439 = vadd.f32 0.0, %v2438
      %2440 = vmatmul.bf16.gmra.mxu0 %v2357
      %v2441 = vpop.f32.mrf.mxu0
      %v2442 = vadd.f32 0.0, %v2441
      %v2443 = vpop.f32.mrf.mxu0
      %v2444 = vadd.f32 0.0, %v2443
      %2445 = vdwg.mxu0
      %v2446 = vadd.f32 %v2249, %v2369
      %v2447 = vadd.f32 %v2250, %v2398
      %v2448 = vadd.f32 %v2251, %v2427
      %v2449 = vadd.f32 %v2252, %v2371
      %v2450 = vadd.f32 %v2253, %v2400
      %v2451 = vadd.f32 %v2254, %v2429
      %v2452 = vadd.f32 %v2255, %v2374
      %v2453 = vadd.f32 %v2256, %v2403
      %v2454 = vadd.f32 %v2257, %v2432
      %v2455 = vadd.f32 %v2258, %v2376
      %v2456 = vadd.f32 %v2259, %v2405
      %v2457 = vadd.f32 %v2260, %v2434
      %v2458 = vadd.f32 %v2261, %v2379
      %v2459 = vadd.f32 %v2262, %v2408
      %v2460 = vadd.f32 %v2263, %v2437
      %v2461 = vadd.f32 %v2264, %v2381
      %v2462 = vadd.f32 %v2265, %v2410
      %v2463 = vadd.f32 %v2266, %v2439
      %v2464 = vadd.f32 %v2267, %v2384
      %v2465 = vadd.f32 %v2268, %v2413
      %v2466 = vadd.f32 %v2269, %v2442
      %v2467 = vadd.f32 %v2270, %v2386
      %v2468 = vadd.f32 %v2271, %v2415
      %v2469 = vadd.f32 %v2272, %v2444
      %s2470 = scalar_lea.vmem %s3, 256
      %v2471 = vld [vmem:[%s2470] sm:$0xf]
      %v2472 = vld [vmem:[%s2470 + $0x4] sm:$0xf]
      %v2473 = vld [vmem:[%s2470 + $0x8] sm:$0xf]
      %v2474 = vld [vmem:[%s2470 + $0xc] sm:$0xf]
      %v2475 = vld [vmem:[%s2470 + $0x10] sm:$0xf]
      %v2476 = vld [vmem:[%s2470 + $0x14] sm:$0xf]
      %v2477 = vld [vmem:[%s2470 + $0x18] sm:$0xf]
      %v2478 = vld [vmem:[%s2470 + $0x1c] sm:$0xf]
      %v2487 = vunpack.c.l.b16 %v2471
      %v2488 = vunpack.c.l.b16 %v2472
      %v2489 = vunpack.c.l.b16 %v2473
      %v2490 = vunpack.c.l.b16 %v2474
      %v2491 = vunpack.c.l.b16 %v2475
      %v2492 = vunpack.c.l.b16 %v2476
      %v2493 = vunpack.c.l.b16 %v2477
      %v2494 = vunpack.c.l.b16 %v2478
      %v2495 = vpack.c.b16 %v2488, %v2487
      %v2496 = vpack.c.b16 %v2490, %v2489
      %v2497 = vpack.c.b16 %v2492, %v2491
      %v2498 = vpack.c.b16 %v2494, %v2493
      %2499 = vrot.lane.b32.xlu0 %v1732, 107
      %v2500 = vpop.permute.xlu0 %2499
      %2501 = vrot.lane.b32.xlu0 %v1733, 107
      %v2502 = vpop.permute.xlu0 %2501
      %2503 = vrot.lane.b32.xlu0 %v1734, 107
      %v2504 = vpop.permute.xlu0 %2503
      %2505 = vrot.lane.b32.xlu0 %v1735, 107
      %v2506 = vpop.permute.xlu0 %2505
      %2507 = vrot.lane.b32.xlu0 %v1736, 107
      %v2508 = vpop.permute.xlu0 %2507
      %2509 = vrot.lane.b32.xlu0 %v1737, 107
      %v2510 = vpop.permute.xlu0 %2509
      %2511 = vrot.lane.b32.xlu0 %v1738, 107
      %v2512 = vpop.permute.xlu0 %2511
      %2513 = vrot.lane.b32.xlu0 %v1739, 107
      %v2514 = vpop.permute.xlu0 %2513
      %2515 = vrot.lane.b32.xlu0 %v1740, 107
      %v2516 = vpop.permute.xlu0 %2515
      %2517 = vrot.lane.b32.xlu0 %v1741, 107
      %v2518 = vpop.permute.xlu0 %2517
      %2519 = vrot.lane.b32.xlu0 %v1742, 107
      %v2520 = vpop.permute.xlu0 %2519
      %2521 = vrot.lane.b32.xlu0 %v1743, 107
      %v2522 = vpop.permute.xlu0 %2521
      %vm2523 = vcmask 875520
      %v2524 = vsel %vm2523, %v2500, %v2502
      %v2525 = vsel %vm2523, %v2502, %v2504
      %v2526 = vsel %vm2523, %v2506, %v2508
      %v2527 = vsel %vm2523, %v2508, %v2510
      %v2528 = vsel %vm2523, %v2512, %v2514
      %v2529 = vsel %vm2523, %v2514, %v2516
      %v2530 = vsel %vm2523, %v2518, %v2520
      %v2531 = vsel %vm2523, %v2520, %v2522
      %v2545 = vsel %vm953, %v2495, 0
      %v2548 = vsel %vm953, %v2496, 0
      %v2551 = vsel %vm953, %v2497, 0
      %v2554 = vsel %vm953, %v2498, 0
      %2556 = vmatpush.bf16.msra.mxu0 0
      %2557 = vmatpush.bf16.msra.mxu0 0
      %2558 = vmatpush.bf16.msra.mxu0 0
      %2559 = vmatpush.bf16.msra.mxu0 0
      %2560 = vmatpush.bf16.msra.mxu0 %v2530
      %2561 = vmatpush.bf16.msra.mxu0 %v2528
      %2562 = vmatpush.bf16.msra.mxu0 %v2526
      %2563 = vmatpush.bf16.msra.mxu0 %v2524
      %2564 = vmatmul.bf16.gmra.mxu0 %v2545
      %v2565 = vpop.f32.mrf.mxu0
      %v2566 = vadd.f32 0.0, %v2565
      %v2567 = vpop.f32.mrf.mxu0
      %v2568 = vadd.f32 0.0, %v2567
      %2569 = vmatmul.bf16.gmra.mxu0 %v2548
      %v2570 = vpop.f32.mrf.mxu0
      %v2571 = vadd.f32 0.0, %v2570
      %v2572 = vpop.f32.mrf.mxu0
      %v2573 = vadd.f32 0.0, %v2572
      %2574 = vmatmul.bf16.gmra.mxu0 %v2551
      %v2575 = vpop.f32.mrf.mxu0
      %v2576 = vadd.f32 0.0, %v2575
      %v2577 = vpop.f32.mrf.mxu0
      %v2578 = vadd.f32 0.0, %v2577
      %2579 = vmatmul.bf16.gmra.mxu0 %v2554
      %v2580 = vpop.f32.mrf.mxu0
      %v2581 = vadd.f32 0.0, %v2580
      %v2582 = vpop.f32.mrf.mxu0
      %v2583 = vadd.f32 0.0, %v2582
      %2584 = vdwg.mxu0
      %2585 = vmatpush.bf16.msra.mxu0 0
      %2586 = vmatpush.bf16.msra.mxu0 0
      %2587 = vmatpush.bf16.msra.mxu0 0
      %2588 = vmatpush.bf16.msra.mxu0 0
      %2589 = vmatpush.bf16.msra.mxu0 %v2531
      %2590 = vmatpush.bf16.msra.mxu0 %v2529
      %2591 = vmatpush.bf16.msra.mxu0 %v2527
      %2592 = vmatpush.bf16.msra.mxu0 %v2525
      %2593 = vmatmul.bf16.gmra.mxu0 %v2545
      %v2594 = vpop.f32.mrf.mxu0
      %v2595 = vadd.f32 0.0, %v2594
      %v2596 = vpop.f32.mrf.mxu0
      %v2597 = vadd.f32 0.0, %v2596
      %2598 = vmatmul.bf16.gmra.mxu0 %v2548
      %v2599 = vpop.f32.mrf.mxu0
      %v2600 = vadd.f32 0.0, %v2599
      %v2601 = vpop.f32.mrf.mxu0
      %v2602 = vadd.f32 0.0, %v2601
      %2603 = vmatmul.bf16.gmra.mxu0 %v2551
      %v2604 = vpop.f32.mrf.mxu0
      %v2605 = vadd.f32 0.0, %v2604
      %v2606 = vpop.f32.mrf.mxu0
      %v2607 = vadd.f32 0.0, %v2606
      %2608 = vmatmul.bf16.gmra.mxu0 %v2554
      %v2609 = vpop.f32.mrf.mxu0
      %v2610 = vadd.f32 0.0, %v2609
      %v2611 = vpop.f32.mrf.mxu0
      %v2612 = vadd.f32 0.0, %v2611
      %2613 = vdwg.mxu0
      %2614 = vmatpush.bf16.msra.mxu0 0
      %2615 = vmatpush.bf16.msra.mxu0 0
      %2616 = vmatpush.bf16.msra.mxu0 0
      %2617 = vmatpush.bf16.msra.mxu0 0
      %2618 = vmatpush.bf16.msra.mxu0 %v2522
      %2619 = vmatpush.bf16.msra.mxu0 %v2516
      %2620 = vmatpush.bf16.msra.mxu0 %v2510
      %2621 = vmatpush.bf16.msra.mxu0 %v2504
      %2622 = vmatmul.bf16.gmra.mxu0 %v2545
      %v2623 = vpop.f32.mrf.mxu0
      %v2624 = vadd.f32 0.0, %v2623
      %v2625 = vpop.f32.mrf.mxu0
      %v2626 = vadd.f32 0.0, %v2625
      %2627 = vmatmul.bf16.gmra.mxu0 %v2548
      %v2628 = vpop.f32.mrf.mxu0
      %v2629 = vadd.f32 0.0, %v2628
      %v2630 = vpop.f32.mrf.mxu0
      %v2631 = vadd.f32 0.0, %v2630
      %2632 = vmatmul.bf16.gmra.mxu0 %v2551
      %v2633 = vpop.f32.mrf.mxu0
      %v2634 = vadd.f32 0.0, %v2633
      %v2635 = vpop.f32.mrf.mxu0
      %v2636 = vadd.f32 0.0, %v2635
      %2637 = vmatmul.bf16.gmra.mxu0 %v2554
      %v2638 = vpop.f32.mrf.mxu0
      %v2639 = vadd.f32 0.0, %v2638
      %v2640 = vpop.f32.mrf.mxu0
      %v2641 = vadd.f32 0.0, %v2640
      %2642 = vdwg.mxu0
      %v2643 = vadd.f32 %v2446, %v2566
      %v2644 = vadd.f32 %v2447, %v2595
      %v2645 = vadd.f32 %v2448, %v2624
      %v2646 = vadd.f32 %v2449, %v2568
      %v2647 = vadd.f32 %v2450, %v2597
      %v2648 = vadd.f32 %v2451, %v2626
      %v2649 = vadd.f32 %v2452, %v2571
      %v2650 = vadd.f32 %v2453, %v2600
      %v2651 = vadd.f32 %v2454, %v2629
      %v2652 = vadd.f32 %v2455, %v2573
      %v2653 = vadd.f32 %v2456, %v2602
      %v2654 = vadd.f32 %v2457, %v2631
      %v2655 = vadd.f32 %v2458, %v2576
      %v2656 = vadd.f32 %v2459, %v2605
      %v2657 = vadd.f32 %v2460, %v2634
      %v2658 = vadd.f32 %v2461, %v2578
      %v2659 = vadd.f32 %v2462, %v2607
      %v2660 = vadd.f32 %v2463, %v2636
      %v2661 = vadd.f32 %v2464, %v2581
      %v2662 = vadd.f32 %v2465, %v2610
      %v2663 = vadd.f32 %v2466, %v2639
      %v2664 = vadd.f32 %v2467, %v2583
      %v2665 = vadd.f32 %v2468, %v2612
      %v2666 = vadd.f32 %v2469, %v2641
      %v2667 = vld [vmem:[%s4] sm:$0xff]
      %v2668 = vld [vmem:[%s4 + $0x8] sm:$0xff]
      %v2669 = vld [vmem:[%s4 + $0x10] sm:$0xff]
      %v2670 = vld [vmem:[%s4 + $0x18] sm:$0xff]
      %v2671 = vld [vmem:[%s4 + $0x20] sm:$0xff]
      %v2672 = vld [vmem:[%s4 + $0x28] sm:$0xff]
      %v2673 = vld [vmem:[%s4 + $0x30] sm:$0xff]
      %v2674 = vld [vmem:[%s4 + $0x38] sm:$0xff]
      %2676 = vset.pattern.permute.xlu0 0
      %2677 = vperm.xlu0 %2676, %v2667
      %v2678 = vpop.permute.xlu0 %2677
      %2681 = vset.pattern.permute.xlu0 0
      %2682 = vperm.xlu0 %2681, %v2668
      %v2683 = vpop.permute.xlu0 %2682
      %2686 = vset.pattern.permute.xlu0 0
      %2687 = vperm.xlu0 %2686, %v2669
      %v2688 = vpop.permute.xlu0 %2687
      %2691 = vset.pattern.permute.xlu0 0
      %2692 = vperm.xlu0 %2691, %v2670
      %v2693 = vpop.permute.xlu0 %2692
      %2696 = vset.pattern.permute.xlu0 0
      %2697 = vperm.xlu0 %2696, %v2671
      %v2698 = vpop.permute.xlu0 %2697
      %2701 = vset.pattern.permute.xlu0 0
      %2702 = vperm.xlu0 %2701, %v2672
      %v2703 = vpop.permute.xlu0 %2702
      %2706 = vset.pattern.permute.xlu0 0
      %2707 = vperm.xlu0 %2706, %v2673
      %v2708 = vpop.permute.xlu0 %2707
      %2711 = vset.pattern.permute.xlu0 0
      %2712 = vperm.xlu0 %2711, %v2674
      %v2713 = vpop.permute.xlu0 %2712
      %v2715 = vadd.f32 %v2643, %v2678
      %v2716 = vadd.f32 %v2644, %v2678
      %v2717 = vadd.f32 %v2645, %v2678
      %v2718 = vadd.f32 %v2646, %v2683
      %v2719 = vadd.f32 %v2647, %v2683
      %v2720 = vadd.f32 %v2648, %v2683
      %v2721 = vadd.f32 %v2649, %v2688
      %v2722 = vadd.f32 %v2650, %v2688
      %v2723 = vadd.f32 %v2651, %v2688
      %v2724 = vadd.f32 %v2652, %v2693
      %v2725 = vadd.f32 %v2653, %v2693
      %v2726 = vadd.f32 %v2654, %v2693
      %v2727 = vadd.f32 %v2655, %v2698
      %v2728 = vadd.f32 %v2656, %v2698
      %v2729 = vadd.f32 %v2657, %v2698
      %v2730 = vadd.f32 %v2658, %v2703
      %v2731 = vadd.f32 %v2659, %v2703
      %v2732 = vadd.f32 %v2660, %v2703
      %v2733 = vadd.f32 %v2661, %v2708
      %v2734 = vadd.f32 %v2662, %v2708
      %v2735 = vadd.f32 %v2663, %v2708
      %v2736 = vadd.f32 %v2664, %v2713
      %v2737 = vadd.f32 %v2665, %v2713
      %v2738 = vadd.f32 %v2666, %v2713
      %v2739 = vmax.f32 %v2715, 0.0
      %v2740 = vmax.f32 %v2716, 0.0
      %v2741 = vmax.f32 %v2717, 0.0
      %v2742 = vmax.f32 %v2718, 0.0
      %v2743 = vmax.f32 %v2719, 0.0
      %v2744 = vmax.f32 %v2720, 0.0
      %v2745 = vmax.f32 %v2721, 0.0
      %v2746 = vmax.f32 %v2722, 0.0
      %v2747 = vmax.f32 %v2723, 0.0
      %v2748 = vmax.f32 %v2724, 0.0
      %v2749 = vmax.f32 %v2725, 0.0
      %v2750 = vmax.f32 %v2726, 0.0
      %v2751 = vmax.f32 %v2727, 0.0
      %v2752 = vmax.f32 %v2728, 0.0
      %v2753 = vmax.f32 %v2729, 0.0
      %v2754 = vmax.f32 %v2730, 0.0
      %v2755 = vmax.f32 %v2731, 0.0
      %v2756 = vmax.f32 %v2732, 0.0
      %v2757 = vmax.f32 %v2733, 0.0
      %v2758 = vmax.f32 %v2734, 0.0
      %v2759 = vmax.f32 %v2735, 0.0
      %v2760 = vmax.f32 %v2736, 0.0
      %v2761 = vmax.f32 %v2737, 0.0
      %v2762 = vmax.f32 %v2738, 0.0
      %v2763 = vmul.f32 %v2739, %v479
      %v2764 = vmul.f32 %v2740, %v480
      %v2765 = vmul.f32 %v2741, %v481
      %v2766 = vmul.f32 %v2742, %v479
      %v2767 = vmul.f32 %v2743, %v480
      %v2768 = vmul.f32 %v2744, %v481
      %v2769 = vmul.f32 %v2745, %v479
      %v2770 = vmul.f32 %v2746, %v480
      %v2771 = vmul.f32 %v2747, %v481
      %v2772 = vmul.f32 %v2748, %v479
      %v2773 = vmul.f32 %v2749, %v480
      %v2774 = vmul.f32 %v2750, %v481
      %v2775 = vmul.f32 %v2751, %v479
      %v2776 = vmul.f32 %v2752, %v480
      %v2777 = vmul.f32 %v2753, %v481
      %v2778 = vmul.f32 %v2754, %v479
      %v2779 = vmul.f32 %v2755, %v480
      %v2780 = vmul.f32 %v2756, %v481
      %v2781 = vmul.f32 %v2757, %v479
      %v2782 = vmul.f32 %v2758, %v480
      %v2783 = vmul.f32 %v2759, %v481
      %v2784 = vmul.f32 %v2760, %v479
      %v2785 = vmul.f32 %v2761, %v480
      %v2786 = vmul.f32 %v2762, %v481
      %v2787 = vpack.c.bf16 %v2764, %v2763
      %v2788 = vpack.c.bf16 %v2765, %v2765
      %v2789 = vpack.c.bf16 %v2767, %v2766
      %v2790 = vpack.c.bf16 %v2768, %v2768
      %v2791 = vpack.c.bf16 %v2770, %v2769
      %v2792 = vpack.c.bf16 %v2771, %v2771
      %v2793 = vpack.c.bf16 %v2773, %v2772
      %v2794 = vpack.c.bf16 %v2774, %v2774
      %v2795 = vpack.c.bf16 %v2776, %v2775
      %v2796 = vpack.c.bf16 %v2777, %v2777
      %v2797 = vpack.c.bf16 %v2779, %v2778
      %v2798 = vpack.c.bf16 %v2780, %v2780
      %v2799 = vpack.c.bf16 %v2782, %v2781
      %v2800 = vpack.c.bf16 %v2783, %v2783
      %v2801 = vpack.c.bf16 %v2785, %v2784
      %v2802 = vpack.c.bf16 %v2786, %v2786
      %2803 = vst [vmem:[#allocation3 + $0x4] sm:$0xff] %v2787
      %2804 = vst.msk [vmem:[#allocation3 + $0xc] sm:$0xf] %vm763, %v2788
      %2805 = vst [vmem:[#allocation3 + $0x14] sm:$0xff] %v2789
      %2806 = vst.msk [vmem:[#allocation3 + $0x1c] sm:$0xf] %vm763, %v2790
      %2807 = vst [vmem:[#allocation3 + $0x24] sm:$0xff] %v2791
      %2808 = vst.msk [vmem:[#allocation3 + $0x2c] sm:$0xf] %vm763, %v2792
      %2809 = vst [vmem:[#allocation3 + $0x34] sm:$0xff] %v2793
      %2810 = vst.msk [vmem:[#allocation3 + $0x3c] sm:$0xf] %vm763, %v2794
      %2811 = vst [vmem:[#allocation3 + $0x44] sm:$0xff] %v2795
      %2812 = vst.msk [vmem:[#allocation3 + $0x4c] sm:$0xf] %vm763, %v2796
      %2813 = vst [vmem:[#allocation3 + $0x54] sm:$0xff] %v2797
      %2814 = vst.msk [vmem:[#allocation3 + $0x5c] sm:$0xf] %vm763, %v2798
      %2815 = vst [vmem:[#allocation3 + $0x64] sm:$0xff] %v2799
      %2816 = vst.msk [vmem:[#allocation3 + $0x6c] sm:$0xf] %vm763, %v2800
      %2817 = vst [vmem:[#allocation3 + $0x74] sm:$0xff] %v2801
      %2818 = vst.msk [vmem:[#allocation3 + $0x7c] sm:$0xf] %vm763, %v2802
      %v2819 = vld [vmem:[#allocation3] sm:$0xff]
      %v2820 = vld [vmem:[#allocation3 + $0x8] sm:$0xff]
      %v2821 = vld [vmem:[#allocation3 + $0x10] sm:$0xff]
      %v2822 = vld [vmem:[#allocation3 + $0x18] sm:$0xff]
      %v2823 = vld [vmem:[#allocation3 + $0x20] sm:$0xff]
      %v2824 = vld [vmem:[#allocation3 + $0x28] sm:$0xff]
      %v2825 = vld [vmem:[#allocation3 + $0x30] sm:$0xff]
      %v2826 = vld [vmem:[#allocation3 + $0x38] sm:$0xff]
      %v2827 = vld [vmem:[#allocation3 + $0x40] sm:$0xff]
      %v2828 = vld [vmem:[#allocation3 + $0x48] sm:$0xff]
      %v2829 = vld [vmem:[#allocation3 + $0x50] sm:$0xff]
      %v2830 = vld [vmem:[#allocation3 + $0x58] sm:$0xff]
      %v2831 = vld [vmem:[#allocation3 + $0x60] sm:$0xff]
      %v2832 = vld [vmem:[#allocation3 + $0x68] sm:$0xff]
      %v2833 = vld [vmem:[#allocation3 + $0x70] sm:$0xff]
      %v2834 = vld [vmem:[#allocation3 + $0x78] sm:$0xff]
      %v2835 = vld [vmem:[%s5] sm:$0xf]
      %v2836 = vld [vmem:[%s5 + $0x4] sm:$0xf]
      %v2837 = vld [vmem:[%s5 + $0x8] sm:$0xf]
      %v2838 = vld [vmem:[%s5 + $0xc] sm:$0xf]
      %s2839 = scalar_lea.vmem %s5, 16
      %v2840 = vld [vmem:[%s2839] sm:$0xf]
      %v2841 = vld [vmem:[%s2839 + $0x4] sm:$0xf]
      %v2842 = vld [vmem:[%s2839 + $0x8] sm:$0xf]
      %v2843 = vld [vmem:[%s2839 + $0xc] sm:$0xf]
      %v2848 = vunpack.c.l.b16 %v2840
      %v2849 = vunpack.c.l.b16 %v2841
      %v2850 = vunpack.c.l.b16 %v2842
      %v2851 = vunpack.c.l.b16 %v2843
      %v2852 = vpack.c.b16 %v2849, %v2848
      %v2853 = vpack.c.b16 %v2851, %v2850
      %v2870 = vunpack.c.l.b16 %v2819
      %v2871 = vunpack.c.h.b16 %v2819
      %v2872 = vunpack.c.l.b16 %v2820
      %v2873 = vunpack.c.h.b16 %v2820
      %v2874 = vunpack.c.l.b16 %v2821
      %v2875 = vunpack.c.h.b16 %v2821
      %v2876 = vunpack.c.l.b16 %v2822
      %v2877 = vunpack.c.h.b16 %v2822
      %v2878 = vunpack.c.l.b16 %v2823
      %v2879 = vunpack.c.h.b16 %v2823
      %v2880 = vunpack.c.l.b16 %v2824
      %v2881 = vunpack.c.h.b16 %v2824
      %v2882 = vunpack.c.l.b16 %v2825
      %v2883 = vunpack.c.h.b16 %v2825
      %v2884 = vunpack.c.l.b16 %v2826
      %v2885 = vunpack.c.h.b16 %v2826
      %v2886 = vunpack.c.l.b16 %v2827
      %v2887 = vunpack.c.h.b16 %v2827
      %v2888 = vunpack.c.l.b16 %v2828
      %v2889 = vunpack.c.h.b16 %v2828
      %v2890 = vunpack.c.l.b16 %v2829
      %v2891 = vunpack.c.h.b16 %v2829
      %v2892 = vunpack.c.l.b16 %v2830
      %v2893 = vunpack.c.h.b16 %v2830
      %v2894 = vunpack.c.l.b16 %v2831
      %v2895 = vunpack.c.h.b16 %v2831
      %v2896 = vunpack.c.l.b16 %v2832
      %v2897 = vunpack.c.h.b16 %v2832
      %v2898 = vunpack.c.l.b16 %v2833
      %v2899 = vunpack.c.h.b16 %v2833
      %v2900 = vunpack.c.l.b16 %v2834
      %v2901 = vunpack.c.h.b16 %v2834
      %v2902 = vpack.c.b16 %v2874, %v2870
      %v2903 = vpack.c.b16 %v2875, %v2871
      %v2904 = vpack.c.b16 %v2876, %v2872
      %v2905 = vpack.c.b16 %v2877, %v2873
      %v2906 = vpack.c.b16 %v2882, %v2878
      %v2907 = vpack.c.b16 %v2883, %v2879
      %v2908 = vpack.c.b16 %v2884, %v2880
      %v2909 = vpack.c.b16 %v2885, %v2881
      %v2910 = vpack.c.b16 %v2890, %v2886
      %v2911 = vpack.c.b16 %v2891, %v2887
      %v2912 = vpack.c.b16 %v2892, %v2888
      %v2913 = vpack.c.b16 %v2893, %v2889
      %v2914 = vpack.c.b16 %v2898, %v2894
      %v2915 = vpack.c.b16 %v2899, %v2895
      %v2916 = vpack.c.b16 %v2900, %v2896
      %v2917 = vpack.c.b16 %v2901, %v2897
      %2918 = vrot.lane.b32.xlu0 %v2902, 20
      %v2919 = vpop.permute.xlu0 %2918
      %2920 = vrot.lane.b32.xlu0 %v2903, 20
      %v2921 = vpop.permute.xlu0 %2920
      %2922 = vrot.lane.b32.xlu0 %v2904, 20
      %v2923 = vpop.permute.xlu0 %2922
      %2924 = vrot.lane.b32.xlu0 %v2905, 20
      %v2925 = vpop.permute.xlu0 %2924
      %2926 = vrot.lane.b32.xlu0 %v2906, 20
      %v2927 = vpop.permute.xlu0 %2926
      %2928 = vrot.lane.b32.xlu0 %v2907, 20
      %v2929 = vpop.permute.xlu0 %2928
      %2930 = vrot.lane.b32.xlu0 %v2908, 20
      %v2931 = vpop.permute.xlu0 %2930
      %2932 = vrot.lane.b32.xlu0 %v2909, 20
      %v2933 = vpop.permute.xlu0 %2932
      %2934 = vrot.lane.b32.xlu0 %v2910, 20
      %v2935 = vpop.permute.xlu0 %2934
      %2936 = vrot.lane.b32.xlu0 %v2911, 20
      %v2937 = vpop.permute.xlu0 %2936
      %2938 = vrot.lane.b32.xlu0 %v2912, 20
      %v2939 = vpop.permute.xlu0 %2938
      %2940 = vrot.lane.b32.xlu0 %v2913, 20
      %v2941 = vpop.permute.xlu0 %2940
      %2942 = vrot.lane.b32.xlu0 %v2914, 20
      %v2943 = vpop.permute.xlu0 %2942
      %2944 = vrot.lane.b32.xlu0 %v2915, 20
      %v2945 = vpop.permute.xlu0 %2944
      %2946 = vrot.lane.b32.xlu0 %v2916, 20
      %v2947 = vpop.permute.xlu0 %2946
      %2948 = vrot.lane.b32.xlu0 %v2917, 20
      %v2949 = vpop.permute.xlu0 %2948
      %v2950 = vsel %vm928, %v2919, %v2921
      %v2951 = vsel %vm928, %v2921, %v2923
      %v2952 = vsel %vm928, %v2923, %v2925
      %v2953 = vsel %vm928, %v2927, %v2929
      %v2954 = vsel %vm928, %v2929, %v2931
      %v2955 = vsel %vm928, %v2931, %v2933
      %v2956 = vsel %vm928, %v2935, %v2937
      %v2957 = vsel %vm928, %v2937, %v2939
      %v2958 = vsel %vm928, %v2939, %v2941
      %v2959 = vsel %vm928, %v2943, %v2945
      %v2960 = vsel %vm928, %v2945, %v2947
      %v2961 = vsel %vm928, %v2947, %v2949
      %v2975 = vsel %vm953, %v2852, 0
      %v2978 = vsel %vm953, %v2853, 0
      %2980 = vmatpush.bf16.msra.mxu0 0
      %2981 = vmatpush.bf16.msra.mxu0 0
      %2982 = vmatpush.bf16.msra.mxu0 0
      %2983 = vmatpush.bf16.msra.mxu0 0
      %2984 = vmatpush.bf16.msra.mxu0 %v2959
      %2985 = vmatpush.bf16.msra.mxu0 %v2956
      %2986 = vmatpush.bf16.msra.mxu0 %v2953
      %2987 = vmatpush.bf16.msra.mxu0 %v2950
      %2988 = vmatmul.bf16.gmra.mxu0 %v2975
      %v2989 = vpop.f32.mrf.mxu0
      %v2990 = vadd.f32 0.0, %v2989
      %v2991 = vpop.f32.mrf.mxu0
      %v2992 = vadd.f32 0.0, %v2991
      %2993 = vmatmul.bf16.gmra.mxu0 %v2978
      %v2994 = vpop.f32.mrf.mxu0
      %v2995 = vadd.f32 0.0, %v2994
      %v2996 = vpop.f32.mrf.mxu0
      %v2997 = vadd.f32 0.0, %v2996
      %2998 = vdwg.mxu0
      %2999 = vmatpush.bf16.msra.mxu0 0
      %3000 = vmatpush.bf16.msra.mxu0 0
      %3001 = vmatpush.bf16.msra.mxu0 0
      %3002 = vmatpush.bf16.msra.mxu0 0
      %3003 = vmatpush.bf16.msra.mxu0 %v2960
      %3004 = vmatpush.bf16.msra.mxu0 %v2957
      %3005 = vmatpush.bf16.msra.mxu0 %v2954
      %3006 = vmatpush.bf16.msra.mxu0 %v2951
      %3007 = vmatmul.bf16.gmra.mxu0 %v2975
      %v3008 = vpop.f32.mrf.mxu0
      %v3009 = vadd.f32 0.0, %v3008
      %v3010 = vpop.f32.mrf.mxu0
      %v3011 = vadd.f32 0.0, %v3010
      %3012 = vmatmul.bf16.gmra.mxu0 %v2978
      %v3013 = vpop.f32.mrf.mxu0
      %v3014 = vadd.f32 0.0, %v3013
      %v3015 = vpop.f32.mrf.mxu0
      %v3016 = vadd.f32 0.0, %v3015
      %3017 = vdwg.mxu0
      %3018 = vmatpush.bf16.msra.mxu0 0
      %3019 = vmatpush.bf16.msra.mxu0 0
      %3020 = vmatpush.bf16.msra.mxu0 0
      %3021 = vmatpush.bf16.msra.mxu0 0
      %3022 = vmatpush.bf16.msra.mxu0 %v2961
      %3023 = vmatpush.bf16.msra.mxu0 %v2958
      %3024 = vmatpush.bf16.msra.mxu0 %v2955
      %3025 = vmatpush.bf16.msra.mxu0 %v2952
      %3026 = vmatmul.bf16.gmra.mxu0 %v2975
      %v3027 = vpop.f32.mrf.mxu0
      %v3028 = vadd.f32 0.0, %v3027
      %v3029 = vpop.f32.mrf.mxu0
      %v3030 = vadd.f32 0.0, %v3029
      %3031 = vmatmul.bf16.gmra.mxu0 %v2978
      %v3032 = vpop.f32.mrf.mxu0
      %v3033 = vadd.f32 0.0, %v3032
      %v3034 = vpop.f32.mrf.mxu0
      %v3035 = vadd.f32 0.0, %v3034
      %3036 = vdwg.mxu0
      %v3041 = vunpack.c.l.b16 %v2835
      %v3042 = vunpack.c.l.b16 %v2836
      %v3043 = vunpack.c.l.b16 %v2837
      %v3044 = vunpack.c.l.b16 %v2838
      %v3045 = vpack.c.b16 %v3042, %v3041
      %v3046 = vpack.c.b16 %v3044, %v3043
      %3047 = vrot.lane.b32.xlu0 %v2902, 21
      %v3048 = vpop.permute.xlu0 %3047
      %3049 = vrot.lane.b32.xlu0 %v2903, 21
      %v3050 = vpop.permute.xlu0 %3049
      %3051 = vrot.lane.b32.xlu0 %v2904, 21
      %v3052 = vpop.permute.xlu0 %3051
      %3053 = vrot.lane.b32.xlu0 %v2905, 21
      %v3054 = vpop.permute.xlu0 %3053
      %3055 = vrot.lane.b32.xlu0 %v2906, 21
      %v3056 = vpop.permute.xlu0 %3055
      %3057 = vrot.lane.b32.xlu0 %v2907, 21
      %v3058 = vpop.permute.xlu0 %3057
      %3059 = vrot.lane.b32.xlu0 %v2908, 21
      %v3060 = vpop.permute.xlu0 %3059
      %3061 = vrot.lane.b32.xlu0 %v2909, 21
      %v3062 = vpop.permute.xlu0 %3061
      %3063 = vrot.lane.b32.xlu0 %v2910, 21
      %v3064 = vpop.permute.xlu0 %3063
      %3065 = vrot.lane.b32.xlu0 %v2911, 21
      %v3066 = vpop.permute.xlu0 %3065
      %3067 = vrot.lane.b32.xlu0 %v2912, 21
      %v3068 = vpop.permute.xlu0 %3067
      %3069 = vrot.lane.b32.xlu0 %v2913, 21
      %v3070 = vpop.permute.xlu0 %3069
      %3071 = vrot.lane.b32.xlu0 %v2914, 21
      %v3072 = vpop.permute.xlu0 %3071
      %3073 = vrot.lane.b32.xlu0 %v2915, 21
      %v3074 = vpop.permute.xlu0 %3073
      %3075 = vrot.lane.b32.xlu0 %v2916, 21
      %v3076 = vpop.permute.xlu0 %3075
      %3077 = vrot.lane.b32.xlu0 %v2917, 21
      %v3078 = vpop.permute.xlu0 %3077
      %v3079 = vsel %vm1105, %v3048, %v3050
      %v3080 = vsel %vm1105, %v3050, %v3052
      %v3081 = vsel %vm1105, %v3052, %v3054
      %v3082 = vsel %vm1105, %v3056, %v3058
      %v3083 = vsel %vm1105, %v3058, %v3060
      %v3084 = vsel %vm1105, %v3060, %v3062
      %v3085 = vsel %vm1105, %v3064, %v3066
      %v3086 = vsel %vm1105, %v3066, %v3068
      %v3087 = vsel %vm1105, %v3068, %v3070
      %v3088 = vsel %vm1105, %v3072, %v3074
      %v3089 = vsel %vm1105, %v3074, %v3076
      %v3090 = vsel %vm1105, %v3076, %v3078
      %v3104 = vsel %vm953, %v3045, 0
      %v3107 = vsel %vm953, %v3046, 0
      %3109 = vmatpush.bf16.msra.mxu0 0
      %3110 = vmatpush.bf16.msra.mxu0 0
      %3111 = vmatpush.bf16.msra.mxu0 0
      %3112 = vmatpush.bf16.msra.mxu0 0
      %3113 = vmatpush.bf16.msra.mxu0 %v3088
      %3114 = vmatpush.bf16.msra.mxu0 %v3085
      %3115 = vmatpush.bf16.msra.mxu0 %v3082
      %3116 = vmatpush.bf16.msra.mxu0 %v3079
      %3117 = vmatmul.bf16.gmra.mxu0 %v3104
      %v3118 = vpop.f32.mrf.mxu0
      %v3119 = vadd.f32 %v2990, %v3118
      %v3120 = vpop.f32.mrf.mxu0
      %v3121 = vadd.f32 %v2992, %v3120
      %3122 = vmatmul.bf16.gmra.mxu0 %v3107
      %v3123 = vpop.f32.mrf.mxu0
      %v3124 = vadd.f32 %v2995, %v3123
      %v3125 = vpop.f32.mrf.mxu0
      %v3126 = vadd.f32 %v2997, %v3125
      %3127 = vdwg.mxu0
      %3128 = vmatpush.bf16.msra.mxu0 0
      %3129 = vmatpush.bf16.msra.mxu0 0
      %3130 = vmatpush.bf16.msra.mxu0 0
      %3131 = vmatpush.bf16.msra.mxu0 0
      %3132 = vmatpush.bf16.msra.mxu0 %v3089
      %3133 = vmatpush.bf16.msra.mxu0 %v3086
      %3134 = vmatpush.bf16.msra.mxu0 %v3083
      %3135 = vmatpush.bf16.msra.mxu0 %v3080
      %3136 = vmatmul.bf16.gmra.mxu0 %v3104
      %v3137 = vpop.f32.mrf.mxu0
      %v3138 = vadd.f32 %v3009, %v3137
      %v3139 = vpop.f32.mrf.mxu0
      %v3140 = vadd.f32 %v3011, %v3139
      %3141 = vmatmul.bf16.gmra.mxu0 %v3107
      %v3142 = vpop.f32.mrf.mxu0
      %v3143 = vadd.f32 %v3014, %v3142
      %v3144 = vpop.f32.mrf.mxu0
      %v3145 = vadd.f32 %v3016, %v3144
      %3146 = vdwg.mxu0
      %3147 = vmatpush.bf16.msra.mxu0 0
      %3148 = vmatpush.bf16.msra.mxu0 0
      %3149 = vmatpush.bf16.msra.mxu0 0
      %3150 = vmatpush.bf16.msra.mxu0 0
      %3151 = vmatpush.bf16.msra.mxu0 %v3090
      %3152 = vmatpush.bf16.msra.mxu0 %v3087
      %3153 = vmatpush.bf16.msra.mxu0 %v3084
      %3154 = vmatpush.bf16.msra.mxu0 %v3081
      %3155 = vmatmul.bf16.gmra.mxu0 %v3104
      %v3156 = vpop.f32.mrf.mxu0
      %v3157 = vadd.f32 %v3028, %v3156
      %v3158 = vpop.f32.mrf.mxu0
      %v3159 = vadd.f32 %v3030, %v3158
      %3160 = vmatmul.bf16.gmra.mxu0 %v3107
      %v3161 = vpop.f32.mrf.mxu0
      %v3162 = vadd.f32 %v3033, %v3161
      %v3163 = vpop.f32.mrf.mxu0
      %v3164 = vadd.f32 %v3035, %v3163
      %3165 = vdwg.mxu0
      %s3166 = scalar_lea.vmem %s5, 32
      %v3167 = vld [vmem:[%s3166] sm:$0xf]
      %v3168 = vld [vmem:[%s3166 + $0x4] sm:$0xf]
      %v3169 = vld [vmem:[%s3166 + $0x8] sm:$0xf]
      %v3170 = vld [vmem:[%s3166 + $0xc] sm:$0xf]
      %v3175 = vunpack.c.l.b16 %v3167
      %v3176 = vunpack.c.l.b16 %v3168
      %v3177 = vunpack.c.l.b16 %v3169
      %v3178 = vunpack.c.l.b16 %v3170
      %v3179 = vpack.c.b16 %v3176, %v3175
      %v3180 = vpack.c.b16 %v3178, %v3177
      %3181 = vrot.lane.b32.xlu0 %v2902, 19
      %v3182 = vpop.permute.xlu0 %3181
      %3183 = vrot.lane.b32.xlu0 %v2903, 19
      %v3184 = vpop.permute.xlu0 %3183
      %3185 = vrot.lane.b32.xlu0 %v2904, 19
      %v3186 = vpop.permute.xlu0 %3185
      %3187 = vrot.lane.b32.xlu0 %v2905, 19
      %v3188 = vpop.permute.xlu0 %3187
      %3189 = vrot.lane.b32.xlu0 %v2906, 19
      %v3190 = vpop.permute.xlu0 %3189
      %3191 = vrot.lane.b32.xlu0 %v2907, 19
      %v3192 = vpop.permute.xlu0 %3191
      %3193 = vrot.lane.b32.xlu0 %v2908, 19
      %v3194 = vpop.permute.xlu0 %3193
      %3195 = vrot.lane.b32.xlu0 %v2909, 19
      %v3196 = vpop.permute.xlu0 %3195
      %3197 = vrot.lane.b32.xlu0 %v2910, 19
      %v3198 = vpop.permute.xlu0 %3197
      %3199 = vrot.lane.b32.xlu0 %v2911, 19
      %v3200 = vpop.permute.xlu0 %3199
      %3201 = vrot.lane.b32.xlu0 %v2912, 19
      %v3202 = vpop.permute.xlu0 %3201
      %3203 = vrot.lane.b32.xlu0 %v2913, 19
      %v3204 = vpop.permute.xlu0 %3203
      %3205 = vrot.lane.b32.xlu0 %v2914, 19
      %v3206 = vpop.permute.xlu0 %3205
      %3207 = vrot.lane.b32.xlu0 %v2915, 19
      %v3208 = vpop.permute.xlu0 %3207
      %3209 = vrot.lane.b32.xlu0 %v2916, 19
      %v3210 = vpop.permute.xlu0 %3209
      %3211 = vrot.lane.b32.xlu0 %v2917, 19
      %v3212 = vpop.permute.xlu0 %3211
      %v3213 = vsel %vm1290, %v3182, %v3184
      %v3214 = vsel %vm1290, %v3184, %v3186
      %v3215 = vsel %vm1290, %v3186, %v3188
      %v3216 = vsel %vm1290, %v3190, %v3192
      %v3217 = vsel %vm1290, %v3192, %v3194
      %v3218 = vsel %vm1290, %v3194, %v3196
      %v3219 = vsel %vm1290, %v3198, %v3200
      %v3220 = vsel %vm1290, %v3200, %v3202
      %v3221 = vsel %vm1290, %v3202, %v3204
      %v3222 = vsel %vm1290, %v3206, %v3208
      %v3223 = vsel %vm1290, %v3208, %v3210
      %v3224 = vsel %vm1290, %v3210, %v3212
      %v3238 = vsel %vm953, %v3179, 0
      %v3241 = vsel %vm953, %v3180, 0
      %3243 = vmatpush.bf16.msra.mxu0 0
      %3244 = vmatpush.bf16.msra.mxu0 0
      %3245 = vmatpush.bf16.msra.mxu0 0
      %3246 = vmatpush.bf16.msra.mxu0 0
      %3247 = vmatpush.bf16.msra.mxu0 %v3222
      %3248 = vmatpush.bf16.msra.mxu0 %v3219
      %3249 = vmatpush.bf16.msra.mxu0 %v3216
      %3250 = vmatpush.bf16.msra.mxu0 %v3213
      %3251 = vmatmul.bf16.gmra.mxu0 %v3238
      %v3252 = vpop.f32.mrf.mxu0
      %v3253 = vadd.f32 0.0, %v3252
      %v3254 = vpop.f32.mrf.mxu0
      %v3255 = vadd.f32 0.0, %v3254
      %3256 = vmatmul.bf16.gmra.mxu0 %v3241
      %v3257 = vpop.f32.mrf.mxu0
      %v3258 = vadd.f32 0.0, %v3257
      %v3259 = vpop.f32.mrf.mxu0
      %v3260 = vadd.f32 0.0, %v3259
      %3261 = vdwg.mxu0
      %3262 = vmatpush.bf16.msra.mxu0 0
      %3263 = vmatpush.bf16.msra.mxu0 0
      %3264 = vmatpush.bf16.msra.mxu0 0
      %3265 = vmatpush.bf16.msra.mxu0 0
      %3266 = vmatpush.bf16.msra.mxu0 %v3223
      %3267 = vmatpush.bf16.msra.mxu0 %v3220
      %3268 = vmatpush.bf16.msra.mxu0 %v3217
      %3269 = vmatpush.bf16.msra.mxu0 %v3214
      %3270 = vmatmul.bf16.gmra.mxu0 %v3238
      %v3271 = vpop.f32.mrf.mxu0
      %v3272 = vadd.f32 0.0, %v3271
      %v3273 = vpop.f32.mrf.mxu0
      %v3274 = vadd.f32 0.0, %v3273
      %3275 = vmatmul.bf16.gmra.mxu0 %v3241
      %v3276 = vpop.f32.mrf.mxu0
      %v3277 = vadd.f32 0.0, %v3276
      %v3278 = vpop.f32.mrf.mxu0
      %v3279 = vadd.f32 0.0, %v3278
      %3280 = vdwg.mxu0
      %3281 = vmatpush.bf16.msra.mxu0 0
      %3282 = vmatpush.bf16.msra.mxu0 0
      %3283 = vmatpush.bf16.msra.mxu0 0
      %3284 = vmatpush.bf16.msra.mxu0 0
      %3285 = vmatpush.bf16.msra.mxu0 %v3224
      %3286 = vmatpush.bf16.msra.mxu0 %v3221
      %3287 = vmatpush.bf16.msra.mxu0 %v3218
      %3288 = vmatpush.bf16.msra.mxu0 %v3215
      %3289 = vmatmul.bf16.gmra.mxu0 %v3238
      %v3290 = vpop.f32.mrf.mxu0
      %v3291 = vadd.f32 0.0, %v3290
      %v3292 = vpop.f32.mrf.mxu0
      %v3293 = vadd.f32 0.0, %v3292
      %3294 = vmatmul.bf16.gmra.mxu0 %v3241
      %v3295 = vpop.f32.mrf.mxu0
      %v3296 = vadd.f32 0.0, %v3295
      %v3297 = vpop.f32.mrf.mxu0
      %v3298 = vadd.f32 0.0, %v3297
      %3299 = vdwg.mxu0
      %v3300 = vadd.f32 %v3119, %v3253
      %v3301 = vadd.f32 %v3138, %v3272
      %v3302 = vadd.f32 %v3157, %v3291
      %v3303 = vadd.f32 %v3121, %v3255
      %v3304 = vadd.f32 %v3140, %v3274
      %v3305 = vadd.f32 %v3159, %v3293
      %v3306 = vadd.f32 %v3124, %v3258
      %v3307 = vadd.f32 %v3143, %v3277
      %v3308 = vadd.f32 %v3162, %v3296
      %v3309 = vadd.f32 %v3126, %v3260
      %v3310 = vadd.f32 %v3145, %v3279
      %v3311 = vadd.f32 %v3164, %v3298
      %s3312 = scalar_lea.vmem %s5, 48
      %v3313 = vld [vmem:[%s3312] sm:$0xf]
      %v3314 = vld [vmem:[%s3312 + $0x4] sm:$0xf]
      %v3315 = vld [vmem:[%s3312 + $0x8] sm:$0xf]
      %v3316 = vld [vmem:[%s3312 + $0xc] sm:$0xf]
      %v3321 = vunpack.c.l.b16 %v3313
      %v3322 = vunpack.c.l.b16 %v3314
      %v3323 = vunpack.c.l.b16 %v3315
      %v3324 = vunpack.c.l.b16 %v3316
      %v3325 = vpack.c.b16 %v3322, %v3321
      %v3326 = vpack.c.b16 %v3324, %v3323
      %3327 = vrot.lane.b32.xlu0 %v2902, 1
      %v3328 = vpop.permute.xlu0 %3327
      %3329 = vrot.lane.b32.xlu0 %v2903, 1
      %v3330 = vpop.permute.xlu0 %3329
      %3331 = vrot.lane.b32.xlu0 %v2904, 1
      %v3332 = vpop.permute.xlu0 %3331
      %3333 = vrot.lane.b32.xlu0 %v2905, 1
      %v3334 = vpop.permute.xlu0 %3333
      %3335 = vrot.lane.b32.xlu0 %v2906, 1
      %v3336 = vpop.permute.xlu0 %3335
      %3337 = vrot.lane.b32.xlu0 %v2907, 1
      %v3338 = vpop.permute.xlu0 %3337
      %3339 = vrot.lane.b32.xlu0 %v2908, 1
      %v3340 = vpop.permute.xlu0 %3339
      %3341 = vrot.lane.b32.xlu0 %v2909, 1
      %v3342 = vpop.permute.xlu0 %3341
      %3343 = vrot.lane.b32.xlu0 %v2910, 1
      %v3344 = vpop.permute.xlu0 %3343
      %3345 = vrot.lane.b32.xlu0 %v2911, 1
      %v3346 = vpop.permute.xlu0 %3345
      %3347 = vrot.lane.b32.xlu0 %v2912, 1
      %v3348 = vpop.permute.xlu0 %3347
      %3349 = vrot.lane.b32.xlu0 %v2913, 1
      %v3350 = vpop.permute.xlu0 %3349
      %3351 = vrot.lane.b32.xlu0 %v2914, 1
      %v3352 = vpop.permute.xlu0 %3351
      %3353 = vrot.lane.b32.xlu0 %v2915, 1
      %v3354 = vpop.permute.xlu0 %3353
      %3355 = vrot.lane.b32.xlu0 %v2916, 1
      %v3356 = vpop.permute.xlu0 %3355
      %3357 = vrot.lane.b32.xlu0 %v2917, 1
      %v3358 = vpop.permute.xlu0 %3357
      %v3359 = vsel %vm1499, %v3328, %v3330
      %v3360 = vsel %vm1499, %v3330, %v3332
      %v3361 = vsel %vm1499, %v3332, %v3334
      %v3362 = vsel %vm1499, %v3336, %v3338
      %v3363 = vsel %vm1499, %v3338, %v3340
      %v3364 = vsel %vm1499, %v3340, %v3342
      %v3365 = vsel %vm1499, %v3344, %v3346
      %v3366 = vsel %vm1499, %v3346, %v3348
      %v3367 = vsel %vm1499, %v3348, %v3350
      %v3368 = vsel %vm1499, %v3352, %v3354
      %v3369 = vsel %vm1499, %v3354, %v3356
      %v3370 = vsel %vm1499, %v3356, %v3358
      %v3384 = vsel %vm953, %v3325, 0
      %v3387 = vsel %vm953, %v3326, 0
      %3389 = vmatpush.bf16.msra.mxu0 0
      %3390 = vmatpush.bf16.msra.mxu0 0
      %3391 = vmatpush.bf16.msra.mxu0 0
      %3392 = vmatpush.bf16.msra.mxu0 0
      %3393 = vmatpush.bf16.msra.mxu0 %v3368
      %3394 = vmatpush.bf16.msra.mxu0 %v3365
      %3395 = vmatpush.bf16.msra.mxu0 %v3362
      %3396 = vmatpush.bf16.msra.mxu0 %v3359
      %3397 = vmatmul.bf16.gmra.mxu0 %v3384
      %v3398 = vpop.f32.mrf.mxu0
      %v3399 = vadd.f32 0.0, %v3398
      %v3400 = vpop.f32.mrf.mxu0
      %v3401 = vadd.f32 0.0, %v3400
      %3402 = vmatmul.bf16.gmra.mxu0 %v3387
      %v3403 = vpop.f32.mrf.mxu0
      %v3404 = vadd.f32 0.0, %v3403
      %v3405 = vpop.f32.mrf.mxu0
      %v3406 = vadd.f32 0.0, %v3405
      %3407 = vdwg.mxu0
      %3408 = vmatpush.bf16.msra.mxu0 0
      %3409 = vmatpush.bf16.msra.mxu0 0
      %3410 = vmatpush.bf16.msra.mxu0 0
      %3411 = vmatpush.bf16.msra.mxu0 0
      %3412 = vmatpush.bf16.msra.mxu0 %v3369
      %3413 = vmatpush.bf16.msra.mxu0 %v3366
      %3414 = vmatpush.bf16.msra.mxu0 %v3363
      %3415 = vmatpush.bf16.msra.mxu0 %v3360
      %3416 = vmatmul.bf16.gmra.mxu0 %v3384
      %v3417 = vpop.f32.mrf.mxu0
      %v3418 = vadd.f32 0.0, %v3417
      %v3419 = vpop.f32.mrf.mxu0
      %v3420 = vadd.f32 0.0, %v3419
      %3421 = vmatmul.bf16.gmra.mxu0 %v3387
      %v3422 = vpop.f32.mrf.mxu0
      %v3423 = vadd.f32 0.0, %v3422
      %v3424 = vpop.f32.mrf.mxu0
      %v3425 = vadd.f32 0.0, %v3424
      %3426 = vdwg.mxu0
      %3427 = vmatpush.bf16.msra.mxu0 0
      %3428 = vmatpush.bf16.msra.mxu0 0
      %3429 = vmatpush.bf16.msra.mxu0 0
      %3430 = vmatpush.bf16.msra.mxu0 0
      %3431 = vmatpush.bf16.msra.mxu0 %v3370
      %3432 = vmatpush.bf16.msra.mxu0 %v3367
      %3433 = vmatpush.bf16.msra.mxu0 %v3364
      %3434 = vmatpush.bf16.msra.mxu0 %v3361
      %3435 = vmatmul.bf16.gmra.mxu0 %v3384
      %v3436 = vpop.f32.mrf.mxu0
      %v3437 = vadd.f32 0.0, %v3436
      %v3438 = vpop.f32.mrf.mxu0
      %v3439 = vadd.f32 0.0, %v3438
      %3440 = vmatmul.bf16.gmra.mxu0 %v3387
      %v3441 = vpop.f32.mrf.mxu0
      %v3442 = vadd.f32 0.0, %v3441
      %v3443 = vpop.f32.mrf.mxu0
      %v3444 = vadd.f32 0.0, %v3443
      %3445 = vdwg.mxu0
      %v3446 = vadd.f32 %v3300, %v3399
      %v3447 = vadd.f32 %v3301, %v3418
      %v3448 = vadd.f32 %v3302, %v3437
      %v3449 = vadd.f32 %v3303, %v3401
      %v3450 = vadd.f32 %v3304, %v3420
      %v3451 = vadd.f32 %v3305, %v3439
      %v3452 = vadd.f32 %v3306, %v3404
      %v3453 = vadd.f32 %v3307, %v3423
      %v3454 = vadd.f32 %v3308, %v3442
      %v3455 = vadd.f32 %v3309, %v3406
      %v3456 = vadd.f32 %v3310, %v3425
      %v3457 = vadd.f32 %v3311, %v3444
      %v3458 = vld [vmem:[#allocation3 + $0x4] sm:$0xff]
      %v3459 = vld [vmem:[#allocation3 + $0xc] sm:$0xf]
      %v3460 = vld [vmem:[#allocation3 + $0x14] sm:$0xff]
      %v3461 = vld [vmem:[#allocation3 + $0x1c] sm:$0xf]
      %v3462 = vld [vmem:[#allocation3 + $0x24] sm:$0xff]
      %v3463 = vld [vmem:[#allocation3 + $0x2c] sm:$0xf]
      %v3464 = vld [vmem:[#allocation3 + $0x34] sm:$0xff]
      %v3465 = vld [vmem:[#allocation3 + $0x3c] sm:$0xf]
      %v3466 = vld [vmem:[#allocation3 + $0x44] sm:$0xff]
      %v3467 = vld [vmem:[#allocation3 + $0x4c] sm:$0xf]
      %v3468 = vld [vmem:[#allocation3 + $0x54] sm:$0xff]
      %v3469 = vld [vmem:[#allocation3 + $0x5c] sm:$0xf]
      %v3470 = vld [vmem:[#allocation3 + $0x64] sm:$0xff]
      %v3471 = vld [vmem:[#allocation3 + $0x6c] sm:$0xf]
      %v3472 = vld [vmem:[#allocation3 + $0x74] sm:$0xff]
      %v3473 = vld [vmem:[#allocation3 + $0x7c] sm:$0xf]
      %s3474 = scalar_lea.vmem %s5, 64
      %v3475 = vld [vmem:[%s3474] sm:$0xf]
      %v3476 = vld [vmem:[%s3474 + $0x4] sm:$0xf]
      %v3477 = vld [vmem:[%s3474 + $0x8] sm:$0xf]
      %v3478 = vld [vmem:[%s3474 + $0xc] sm:$0xf]
      %v3483 = vunpack.c.l.b16 %v3475
      %v3484 = vunpack.c.l.b16 %v3476
      %v3485 = vunpack.c.l.b16 %v3477
      %v3486 = vunpack.c.l.b16 %v3478
      %v3487 = vpack.c.b16 %v3484, %v3483
      %v3488 = vpack.c.b16 %v3486, %v3485
      %v3505 = vunpack.c.l.b16 %v3458
      %v3506 = vunpack.c.h.b16 %v3458
      %v3507 = vunpack.c.l.b16 %v3459
      %v3508 = vunpack.c.l.b16 %v3460
      %v3509 = vunpack.c.h.b16 %v3460
      %v3510 = vunpack.c.l.b16 %v3461
      %v3511 = vunpack.c.l.b16 %v3462
      %v3512 = vunpack.c.h.b16 %v3462
      %v3513 = vunpack.c.l.b16 %v3463
      %v3514 = vunpack.c.l.b16 %v3464
      %v3515 = vunpack.c.h.b16 %v3464
      %v3516 = vunpack.c.l.b16 %v3465
      %v3517 = vunpack.c.l.b16 %v3466
      %v3518 = vunpack.c.h.b16 %v3466
      %v3519 = vunpack.c.l.b16 %v3467
      %v3520 = vunpack.c.l.b16 %v3468
      %v3521 = vunpack.c.h.b16 %v3468
      %v3522 = vunpack.c.l.b16 %v3469
      %v3523 = vunpack.c.l.b16 %v3470
      %v3524 = vunpack.c.h.b16 %v3470
      %v3525 = vunpack.c.l.b16 %v3471
      %v3526 = vunpack.c.l.b16 %v3472
      %v3527 = vunpack.c.h.b16 %v3472
      %v3528 = vunpack.c.l.b16 %v3473
      %v3529 = vpack.c.b16 %v3508, %v3505
      %v3530 = vpack.c.b16 %v3509, %v3506
      %v3531 = vpack.c.b16 %v3510, %v3507
      %v3532 = vpack.c.b16 %v3514, %v3511
      %v3533 = vpack.c.b16 %v3515, %v3512
      %v3534 = vpack.c.b16 %v3516, %v3513
      %v3535 = vpack.c.b16 %v3520, %v3517
      %v3536 = vpack.c.b16 %v3521, %v3518
      %v3537 = vpack.c.b16 %v3522, %v3519
      %v3538 = vpack.c.b16 %v3526, %v3523
      %v3539 = vpack.c.b16 %v3527, %v3524
      %v3540 = vpack.c.b16 %v3528, %v3525
      %v3554 = vsel %vm953, %v3487, 0
      %v3557 = vsel %vm953, %v3488, 0
      %3559 = vmatpush.bf16.msra.mxu0 0
      %3560 = vmatpush.bf16.msra.mxu0 0
      %3561 = vmatpush.bf16.msra.mxu0 0
      %3562 = vmatpush.bf16.msra.mxu0 0
      %3563 = vmatpush.bf16.msra.mxu0 %v3538
      %3564 = vmatpush.bf16.msra.mxu0 %v3535
      %3565 = vmatpush.bf16.msra.mxu0 %v3532
      %3566 = vmatpush.bf16.msra.mxu0 %v3529
      %3567 = vmatmul.bf16.gmra.mxu0 %v3554
      %v3568 = vpop.f32.mrf.mxu0
      %v3569 = vadd.f32 0.0, %v3568
      %v3570 = vpop.f32.mrf.mxu0
      %v3571 = vadd.f32 0.0, %v3570
      %3572 = vmatmul.bf16.gmra.mxu0 %v3557
      %v3573 = vpop.f32.mrf.mxu0
      %v3574 = vadd.f32 0.0, %v3573
      %v3575 = vpop.f32.mrf.mxu0
      %v3576 = vadd.f32 0.0, %v3575
      %3577 = vdwg.mxu0
      %3578 = vmatpush.bf16.msra.mxu0 0
      %3579 = vmatpush.bf16.msra.mxu0 0
      %3580 = vmatpush.bf16.msra.mxu0 0
      %3581 = vmatpush.bf16.msra.mxu0 0
      %3582 = vmatpush.bf16.msra.mxu0 %v3539
      %3583 = vmatpush.bf16.msra.mxu0 %v3536
      %3584 = vmatpush.bf16.msra.mxu0 %v3533
      %3585 = vmatpush.bf16.msra.mxu0 %v3530
      %3586 = vmatmul.bf16.gmra.mxu0 %v3554
      %v3587 = vpop.f32.mrf.mxu0
      %v3588 = vadd.f32 0.0, %v3587
      %v3589 = vpop.f32.mrf.mxu0
      %v3590 = vadd.f32 0.0, %v3589
      %3591 = vmatmul.bf16.gmra.mxu0 %v3557
      %v3592 = vpop.f32.mrf.mxu0
      %v3593 = vadd.f32 0.0, %v3592
      %v3594 = vpop.f32.mrf.mxu0
      %v3595 = vadd.f32 0.0, %v3594
      %3596 = vdwg.mxu0
      %3597 = vmatpush.bf16.msra.mxu0 0
      %3598 = vmatpush.bf16.msra.mxu0 0
      %3599 = vmatpush.bf16.msra.mxu0 0
      %3600 = vmatpush.bf16.msra.mxu0 0
      %3601 = vmatpush.bf16.msra.mxu0 %v3540
      %3602 = vmatpush.bf16.msra.mxu0 %v3537
      %3603 = vmatpush.bf16.msra.mxu0 %v3534
      %3604 = vmatpush.bf16.msra.mxu0 %v3531
      %3605 = vmatmul.bf16.gmra.mxu0 %v3554
      %v3606 = vpop.f32.mrf.mxu0
      %v3607 = vadd.f32 0.0, %v3606
      %v3608 = vpop.f32.mrf.mxu0
      %v3609 = vadd.f32 0.0, %v3608
      %3610 = vmatmul.bf16.gmra.mxu0 %v3557
      %v3611 = vpop.f32.mrf.mxu0
      %v3612 = vadd.f32 0.0, %v3611
      %v3613 = vpop.f32.mrf.mxu0
      %v3614 = vadd.f32 0.0, %v3613
      %3615 = vdwg.mxu0
      %v3616 = vadd.f32 %v3446, %v3569
      %v3617 = vadd.f32 %v3447, %v3588
      %v3618 = vadd.f32 %v3448, %v3607
      %v3619 = vadd.f32 %v3449, %v3571
      %v3620 = vadd.f32 %v3450, %v3590
      %v3621 = vadd.f32 %v3451, %v3609
      %v3622 = vadd.f32 %v3452, %v3574
      %v3623 = vadd.f32 %v3453, %v3593
      %v3624 = vadd.f32 %v3454, %v3612
      %v3625 = vadd.f32 %v3455, %v3576
      %v3626 = vadd.f32 %v3456, %v3595
      %v3627 = vadd.f32 %v3457, %v3614
      %s3628 = scalar_lea.vmem %s5, 80
      %v3629 = vld [vmem:[%s3628] sm:$0xf]
      %v3630 = vld [vmem:[%s3628 + $0x4] sm:$0xf]
      %v3631 = vld [vmem:[%s3628 + $0x8] sm:$0xf]
      %v3632 = vld [vmem:[%s3628 + $0xc] sm:$0xf]
      %v3637 = vunpack.c.l.b16 %v3629
      %v3638 = vunpack.c.l.b16 %v3630
      %v3639 = vunpack.c.l.b16 %v3631
      %v3640 = vunpack.c.l.b16 %v3632
      %v3641 = vpack.c.b16 %v3638, %v3637
      %v3642 = vpack.c.b16 %v3640, %v3639
      %3643 = vrot.lane.b32.xlu0 %v3529, 127
      %v3644 = vpop.permute.xlu0 %3643
      %3645 = vrot.lane.b32.xlu0 %v3530, 127
      %v3646 = vpop.permute.xlu0 %3645
      %3647 = vrot.lane.b32.xlu0 %v3531, 127
      %v3648 = vpop.permute.xlu0 %3647
      %3649 = vrot.lane.b32.xlu0 %v3532, 127
      %v3650 = vpop.permute.xlu0 %3649
      %3651 = vrot.lane.b32.xlu0 %v3533, 127
      %v3652 = vpop.permute.xlu0 %3651
      %3653 = vrot.lane.b32.xlu0 %v3534, 127
      %v3654 = vpop.permute.xlu0 %3653
      %3655 = vrot.lane.b32.xlu0 %v3535, 127
      %v3656 = vpop.permute.xlu0 %3655
      %3657 = vrot.lane.b32.xlu0 %v3536, 127
      %v3658 = vpop.permute.xlu0 %3657
      %3659 = vrot.lane.b32.xlu0 %v3537, 127
      %v3660 = vpop.permute.xlu0 %3659
      %3661 = vrot.lane.b32.xlu0 %v3538, 127
      %v3662 = vpop.permute.xlu0 %3661
      %3663 = vrot.lane.b32.xlu0 %v3539, 127
      %v3664 = vpop.permute.xlu0 %3663
      %3665 = vrot.lane.b32.xlu0 %v3540, 127
      %v3666 = vpop.permute.xlu0 %3665
      %v3667 = vsel %vm1932, %v3644, %v3646
      %v3668 = vsel %vm1932, %v3646, %v3648
      %v3669 = vsel %vm1932, %v3650, %v3652
      %v3670 = vsel %vm1932, %v3652, %v3654
      %v3671 = vsel %vm1932, %v3656, %v3658
      %v3672 = vsel %vm1932, %v3658, %v3660
      %v3673 = vsel %vm1932, %v3662, %v3664
      %v3674 = vsel %vm1932, %v3664, %v3666
      %v3688 = vsel %vm953, %v3641, 0
      %v3691 = vsel %vm953, %v3642, 0
      %3693 = vmatpush.bf16.msra.mxu0 0
      %3694 = vmatpush.bf16.msra.mxu0 0
      %3695 = vmatpush.bf16.msra.mxu0 0
      %3696 = vmatpush.bf16.msra.mxu0 0
      %3697 = vmatpush.bf16.msra.mxu0 %v3673
      %3698 = vmatpush.bf16.msra.mxu0 %v3671
      %3699 = vmatpush.bf16.msra.mxu0 %v3669
      %3700 = vmatpush.bf16.msra.mxu0 %v3667
      %3701 = vmatmul.bf16.gmra.mxu0 %v3688
      %v3702 = vpop.f32.mrf.mxu0
      %v3703 = vadd.f32 0.0, %v3702
      %v3704 = vpop.f32.mrf.mxu0
      %v3705 = vadd.f32 0.0, %v3704
      %3706 = vmatmul.bf16.gmra.mxu0 %v3691
      %v3707 = vpop.f32.mrf.mxu0
      %v3708 = vadd.f32 0.0, %v3707
      %v3709 = vpop.f32.mrf.mxu0
      %v3710 = vadd.f32 0.0, %v3709
      %3711 = vdwg.mxu0
      %3712 = vmatpush.bf16.msra.mxu0 0
      %3713 = vmatpush.bf16.msra.mxu0 0
      %3714 = vmatpush.bf16.msra.mxu0 0
      %3715 = vmatpush.bf16.msra.mxu0 0
      %3716 = vmatpush.bf16.msra.mxu0 %v3674
      %3717 = vmatpush.bf16.msra.mxu0 %v3672
      %3718 = vmatpush.bf16.msra.mxu0 %v3670
      %3719 = vmatpush.bf16.msra.mxu0 %v3668
      %3720 = vmatmul.bf16.gmra.mxu0 %v3688
      %v3721 = vpop.f32.mrf.mxu0
      %v3722 = vadd.f32 0.0, %v3721
      %v3723 = vpop.f32.mrf.mxu0
      %v3724 = vadd.f32 0.0, %v3723
      %3725 = vmatmul.bf16.gmra.mxu0 %v3691
      %v3726 = vpop.f32.mrf.mxu0
      %v3727 = vadd.f32 0.0, %v3726
      %v3728 = vpop.f32.mrf.mxu0
      %v3729 = vadd.f32 0.0, %v3728
      %3730 = vdwg.mxu0
      %3731 = vmatpush.bf16.msra.mxu0 0
      %3732 = vmatpush.bf16.msra.mxu0 0
      %3733 = vmatpush.bf16.msra.mxu0 0
      %3734 = vmatpush.bf16.msra.mxu0 0
      %3735 = vmatpush.bf16.msra.mxu0 %v3666
      %3736 = vmatpush.bf16.msra.mxu0 %v3660
      %3737 = vmatpush.bf16.msra.mxu0 %v3654
      %3738 = vmatpush.bf16.msra.mxu0 %v3648
      %3739 = vmatmul.bf16.gmra.mxu0 %v3688
      %v3740 = vpop.f32.mrf.mxu0
      %v3741 = vadd.f32 0.0, %v3740
      %v3742 = vpop.f32.mrf.mxu0
      %v3743 = vadd.f32 0.0, %v3742
      %3744 = vmatmul.bf16.gmra.mxu0 %v3691
      %v3745 = vpop.f32.mrf.mxu0
      %v3746 = vadd.f32 0.0, %v3745
      %v3747 = vpop.f32.mrf.mxu0
      %v3748 = vadd.f32 0.0, %v3747
      %3749 = vdwg.mxu0
      %v3750 = vadd.f32 %v3616, %v3703
      %v3751 = vadd.f32 %v3617, %v3722
      %v3752 = vadd.f32 %v3618, %v3741
      %v3753 = vadd.f32 %v3619, %v3705
      %v3754 = vadd.f32 %v3620, %v3724
      %v3755 = vadd.f32 %v3621, %v3743
      %v3756 = vadd.f32 %v3622, %v3708
      %v3757 = vadd.f32 %v3623, %v3727
      %v3758 = vadd.f32 %v3624, %v3746
      %v3759 = vadd.f32 %v3625, %v3710
      %v3760 = vadd.f32 %v3626, %v3729
      %v3761 = vadd.f32 %v3627, %v3748
      %s3762 = scalar_lea.vmem %s5, 96
      %v3763 = vld [vmem:[%s3762] sm:$0xf]
      %v3764 = vld [vmem:[%s3762 + $0x4] sm:$0xf]
      %v3765 = vld [vmem:[%s3762 + $0x8] sm:$0xf]
      %v3766 = vld [vmem:[%s3762 + $0xc] sm:$0xf]
      %v3771 = vunpack.c.l.b16 %v3763
      %v3772 = vunpack.c.l.b16 %v3764
      %v3773 = vunpack.c.l.b16 %v3765
      %v3774 = vunpack.c.l.b16 %v3766
      %v3775 = vpack.c.b16 %v3772, %v3771
      %v3776 = vpack.c.b16 %v3774, %v3773
      %3777 = vrot.lane.b32.xlu0 %v3529, 109
      %v3778 = vpop.permute.xlu0 %3777
      %3779 = vrot.lane.b32.xlu0 %v3530, 109
      %v3780 = vpop.permute.xlu0 %3779
      %3781 = vrot.lane.b32.xlu0 %v3531, 109
      %v3782 = vpop.permute.xlu0 %3781
      %3783 = vrot.lane.b32.xlu0 %v3532, 109
      %v3784 = vpop.permute.xlu0 %3783
      %3785 = vrot.lane.b32.xlu0 %v3533, 109
      %v3786 = vpop.permute.xlu0 %3785
      %3787 = vrot.lane.b32.xlu0 %v3534, 109
      %v3788 = vpop.permute.xlu0 %3787
      %3789 = vrot.lane.b32.xlu0 %v3535, 109
      %v3790 = vpop.permute.xlu0 %3789
      %3791 = vrot.lane.b32.xlu0 %v3536, 109
      %v3792 = vpop.permute.xlu0 %3791
      %3793 = vrot.lane.b32.xlu0 %v3537, 109
      %v3794 = vpop.permute.xlu0 %3793
      %3795 = vrot.lane.b32.xlu0 %v3538, 109
      %v3796 = vpop.permute.xlu0 %3795
      %3797 = vrot.lane.b32.xlu0 %v3539, 109
      %v3798 = vpop.permute.xlu0 %3797
      %3799 = vrot.lane.b32.xlu0 %v3540, 109
      %v3800 = vpop.permute.xlu0 %3799
      %v3801 = vsel %vm2129, %v3778, %v3780
      %v3802 = vsel %vm2129, %v3780, %v3782
      %v3803 = vsel %vm2129, %v3784, %v3786
      %v3804 = vsel %vm2129, %v3786, %v3788
      %v3805 = vsel %vm2129, %v3790, %v3792
      %v3806 = vsel %vm2129, %v3792, %v3794
      %v3807 = vsel %vm2129, %v3796, %v3798
      %v3808 = vsel %vm2129, %v3798, %v3800
      %v3822 = vsel %vm953, %v3775, 0
      %v3825 = vsel %vm953, %v3776, 0
      %3827 = vmatpush.bf16.msra.mxu0 0
      %3828 = vmatpush.bf16.msra.mxu0 0
      %3829 = vmatpush.bf16.msra.mxu0 0
      %3830 = vmatpush.bf16.msra.mxu0 0
      %3831 = vmatpush.bf16.msra.mxu0 %v3807
      %3832 = vmatpush.bf16.msra.mxu0 %v3805
      %3833 = vmatpush.bf16.msra.mxu0 %v3803
      %3834 = vmatpush.bf16.msra.mxu0 %v3801
      %3835 = vmatmul.bf16.gmra.mxu0 %v3822
      %v3836 = vpop.f32.mrf.mxu0
      %v3837 = vadd.f32 0.0, %v3836
      %v3838 = vpop.f32.mrf.mxu0
      %v3839 = vadd.f32 0.0, %v3838
      %3840 = vmatmul.bf16.gmra.mxu0 %v3825
      %v3841 = vpop.f32.mrf.mxu0
      %v3842 = vadd.f32 0.0, %v3841
      %v3843 = vpop.f32.mrf.mxu0
      %v3844 = vadd.f32 0.0, %v3843
      %3845 = vdwg.mxu0
      %3846 = vmatpush.bf16.msra.mxu0 0
      %3847 = vmatpush.bf16.msra.mxu0 0
      %3848 = vmatpush.bf16.msra.mxu0 0
      %3849 = vmatpush.bf16.msra.mxu0 0
      %3850 = vmatpush.bf16.msra.mxu0 %v3808
      %3851 = vmatpush.bf16.msra.mxu0 %v3806
      %3852 = vmatpush.bf16.msra.mxu0 %v3804
      %3853 = vmatpush.bf16.msra.mxu0 %v3802
      %3854 = vmatmul.bf16.gmra.mxu0 %v3822
      %v3855 = vpop.f32.mrf.mxu0
      %v3856 = vadd.f32 0.0, %v3855
      %v3857 = vpop.f32.mrf.mxu0
      %v3858 = vadd.f32 0.0, %v3857
      %3859 = vmatmul.bf16.gmra.mxu0 %v3825
      %v3860 = vpop.f32.mrf.mxu0
      %v3861 = vadd.f32 0.0, %v3860
      %v3862 = vpop.f32.mrf.mxu0
      %v3863 = vadd.f32 0.0, %v3862
      %3864 = vdwg.mxu0
      %3865 = vmatpush.bf16.msra.mxu0 0
      %3866 = vmatpush.bf16.msra.mxu0 0
      %3867 = vmatpush.bf16.msra.mxu0 0
      %3868 = vmatpush.bf16.msra.mxu0 0
      %3869 = vmatpush.bf16.msra.mxu0 %v3800
      %3870 = vmatpush.bf16.msra.mxu0 %v3794
      %3871 = vmatpush.bf16.msra.mxu0 %v3788
      %3872 = vmatpush.bf16.msra.mxu0 %v3782
      %3873 = vmatmul.bf16.gmra.mxu0 %v3822
      %v3874 = vpop.f32.mrf.mxu0
      %v3875 = vadd.f32 0.0, %v3874
      %v3876 = vpop.f32.mrf.mxu0
      %v3877 = vadd.f32 0.0, %v3876
      %3878 = vmatmul.bf16.gmra.mxu0 %v3825
      %v3879 = vpop.f32.mrf.mxu0
      %v3880 = vadd.f32 0.0, %v3879
      %v3881 = vpop.f32.mrf.mxu0
      %v3882 = vadd.f32 0.0, %v3881
      %3883 = vdwg.mxu0
      %v3884 = vadd.f32 %v3750, %v3837
      %v3885 = vadd.f32 %v3751, %v3856
      %v3886 = vadd.f32 %v3752, %v3875
      %v3887 = vadd.f32 %v3753, %v3839
      %v3888 = vadd.f32 %v3754, %v3858
      %v3889 = vadd.f32 %v3755, %v3877
      %v3890 = vadd.f32 %v3756, %v3842
      %v3891 = vadd.f32 %v3757, %v3861
      %v3892 = vadd.f32 %v3758, %v3880
      %v3893 = vadd.f32 %v3759, %v3844
      %v3894 = vadd.f32 %v3760, %v3863
      %v3895 = vadd.f32 %v3761, %v3882
      %s3896 = scalar_lea.vmem %s5, 112
      %v3897 = vld [vmem:[%s3896] sm:$0xf]
      %v3898 = vld [vmem:[%s3896 + $0x4] sm:$0xf]
      %v3899 = vld [vmem:[%s3896 + $0x8] sm:$0xf]
      %v3900 = vld [vmem:[%s3896 + $0xc] sm:$0xf]
      %v3905 = vunpack.c.l.b16 %v3897
      %v3906 = vunpack.c.l.b16 %v3898
      %v3907 = vunpack.c.l.b16 %v3899
      %v3908 = vunpack.c.l.b16 %v3900
      %v3909 = vpack.c.b16 %v3906, %v3905
      %v3910 = vpack.c.b16 %v3908, %v3907
      %3911 = vrot.lane.b32.xlu0 %v3529, 108
      %v3912 = vpop.permute.xlu0 %3911
      %3913 = vrot.lane.b32.xlu0 %v3530, 108
      %v3914 = vpop.permute.xlu0 %3913
      %3915 = vrot.lane.b32.xlu0 %v3531, 108
      %v3916 = vpop.permute.xlu0 %3915
      %3917 = vrot.lane.b32.xlu0 %v3532, 108
      %v3918 = vpop.permute.xlu0 %3917
      %3919 = vrot.lane.b32.xlu0 %v3533, 108
      %v3920 = vpop.permute.xlu0 %3919
      %3921 = vrot.lane.b32.xlu0 %v3534, 108
      %v3922 = vpop.permute.xlu0 %3921
      %3923 = vrot.lane.b32.xlu0 %v3535, 108
      %v3924 = vpop.permute.xlu0 %3923
      %3925 = vrot.lane.b32.xlu0 %v3536, 108
      %v3926 = vpop.permute.xlu0 %3925
      %3927 = vrot.lane.b32.xlu0 %v3537, 108
      %v3928 = vpop.permute.xlu0 %3927
      %3929 = vrot.lane.b32.xlu0 %v3538, 108
      %v3930 = vpop.permute.xlu0 %3929
      %3931 = vrot.lane.b32.xlu0 %v3539, 108
      %v3932 = vpop.permute.xlu0 %3931
      %3933 = vrot.lane.b32.xlu0 %v3540, 108
      %v3934 = vpop.permute.xlu0 %3933
      %v3935 = vsel %vm2326, %v3912, %v3914
      %v3936 = vsel %vm2326, %v3914, %v3916
      %v3937 = vsel %vm2326, %v3918, %v3920
      %v3938 = vsel %vm2326, %v3920, %v3922
      %v3939 = vsel %vm2326, %v3924, %v3926
      %v3940 = vsel %vm2326, %v3926, %v3928
      %v3941 = vsel %vm2326, %v3930, %v3932
      %v3942 = vsel %vm2326, %v3932, %v3934
      %v3956 = vsel %vm953, %v3909, 0
      %v3959 = vsel %vm953, %v3910, 0
      %3961 = vmatpush.bf16.msra.mxu0 0
      %3962 = vmatpush.bf16.msra.mxu0 0
      %3963 = vmatpush.bf16.msra.mxu0 0
      %3964 = vmatpush.bf16.msra.mxu0 0
      %3965 = vmatpush.bf16.msra.mxu0 %v3941
      %3966 = vmatpush.bf16.msra.mxu0 %v3939
      %3967 = vmatpush.bf16.msra.mxu0 %v3937
      %3968 = vmatpush.bf16.msra.mxu0 %v3935
      %3969 = vmatmul.bf16.gmra.mxu0 %v3956
      %v3970 = vpop.f32.mrf.mxu0
      %v3971 = vadd.f32 0.0, %v3970
      %v3972 = vpop.f32.mrf.mxu0
      %v3973 = vadd.f32 0.0, %v3972
      %3974 = vmatmul.bf16.gmra.mxu0 %v3959
      %v3975 = vpop.f32.mrf.mxu0
      %v3976 = vadd.f32 0.0, %v3975
      %v3977 = vpop.f32.mrf.mxu0
      %v3978 = vadd.f32 0.0, %v3977
      %3979 = vdwg.mxu0
      %3980 = vmatpush.bf16.msra.mxu0 0
      %3981 = vmatpush.bf16.msra.mxu0 0
      %3982 = vmatpush.bf16.msra.mxu0 0
      %3983 = vmatpush.bf16.msra.mxu0 0
      %3984 = vmatpush.bf16.msra.mxu0 %v3942
      %3985 = vmatpush.bf16.msra.mxu0 %v3940
      %3986 = vmatpush.bf16.msra.mxu0 %v3938
      %3987 = vmatpush.bf16.msra.mxu0 %v3936
      %3988 = vmatmul.bf16.gmra.mxu0 %v3956
      %v3989 = vpop.f32.mrf.mxu0
      %v3990 = vadd.f32 0.0, %v3989
      %v3991 = vpop.f32.mrf.mxu0
      %v3992 = vadd.f32 0.0, %v3991
      %3993 = vmatmul.bf16.gmra.mxu0 %v3959
      %v3994 = vpop.f32.mrf.mxu0
      %v3995 = vadd.f32 0.0, %v3994
      %v3996 = vpop.f32.mrf.mxu0
      %v3997 = vadd.f32 0.0, %v3996
      %3998 = vdwg.mxu0
      %3999 = vmatpush.bf16.msra.mxu0 0
      %4000 = vmatpush.bf16.msra.mxu0 0
      %4001 = vmatpush.bf16.msra.mxu0 0
      %4002 = vmatpush.bf16.msra.mxu0 0
      %4003 = vmatpush.bf16.msra.mxu0 %v3934
      %4004 = vmatpush.bf16.msra.mxu0 %v3928
      %4005 = vmatpush.bf16.msra.mxu0 %v3922
      %4006 = vmatpush.bf16.msra.mxu0 %v3916
      %4007 = vmatmul.bf16.gmra.mxu0 %v3956
      %v4008 = vpop.f32.mrf.mxu0
      %v4009 = vadd.f32 0.0, %v4008
      %v4010 = vpop.f32.mrf.mxu0
      %v4011 = vadd.f32 0.0, %v4010
      %4012 = vmatmul.bf16.gmra.mxu0 %v3959
      %v4013 = vpop.f32.mrf.mxu0
      %v4014 = vadd.f32 0.0, %v4013
      %v4015 = vpop.f32.mrf.mxu0
      %v4016 = vadd.f32 0.0, %v4015
      %4017 = vdwg.mxu0
      %v4018 = vadd.f32 %v3884, %v3971
      %v4019 = vadd.f32 %v3885, %v3990
      %v4020 = vadd.f32 %v3886, %v4009
      %v4021 = vadd.f32 %v3887, %v3973
      %v4022 = vadd.f32 %v3888, %v3992
      %v4023 = vadd.f32 %v3889, %v4011
      %v4024 = vadd.f32 %v3890, %v3976
      %v4025 = vadd.f32 %v3891, %v3995
      %v4026 = vadd.f32 %v3892, %v4014
      %v4027 = vadd.f32 %v3893, %v3978
      %v4028 = vadd.f32 %v3894, %v3997
      %v4029 = vadd.f32 %v3895, %v4016
      %s4030 = scalar_lea.vmem %s5, 128
      %v4031 = vld [vmem:[%s4030] sm:$0xf]
      %v4032 = vld [vmem:[%s4030 + $0x4] sm:$0xf]
      %v4033 = vld [vmem:[%s4030 + $0x8] sm:$0xf]
      %v4034 = vld [vmem:[%s4030 + $0xc] sm:$0xf]
      %v4039 = vunpack.c.l.b16 %v4031
      %v4040 = vunpack.c.l.b16 %v4032
      %v4041 = vunpack.c.l.b16 %v4033
      %v4042 = vunpack.c.l.b16 %v4034
      %v4043 = vpack.c.b16 %v4040, %v4039
      %v4044 = vpack.c.b16 %v4042, %v4041
      %4045 = vrot.lane.b32.xlu0 %v3529, 107
      %v4046 = vpop.permute.xlu0 %4045
      %4047 = vrot.lane.b32.xlu0 %v3530, 107
      %v4048 = vpop.permute.xlu0 %4047
      %4049 = vrot.lane.b32.xlu0 %v3531, 107
      %v4050 = vpop.permute.xlu0 %4049
      %4051 = vrot.lane.b32.xlu0 %v3532, 107
      %v4052 = vpop.permute.xlu0 %4051
      %4053 = vrot.lane.b32.xlu0 %v3533, 107
      %v4054 = vpop.permute.xlu0 %4053
      %4055 = vrot.lane.b32.xlu0 %v3534, 107
      %v4056 = vpop.permute.xlu0 %4055
      %4057 = vrot.lane.b32.xlu0 %v3535, 107
      %v4058 = vpop.permute.xlu0 %4057
      %4059 = vrot.lane.b32.xlu0 %v3536, 107
      %v4060 = vpop.permute.xlu0 %4059
      %4061 = vrot.lane.b32.xlu0 %v3537, 107
      %v4062 = vpop.permute.xlu0 %4061
      %4063 = vrot.lane.b32.xlu0 %v3538, 107
      %v4064 = vpop.permute.xlu0 %4063
      %4065 = vrot.lane.b32.xlu0 %v3539, 107
      %v4066 = vpop.permute.xlu0 %4065
      %4067 = vrot.lane.b32.xlu0 %v3540, 107
      %v4068 = vpop.permute.xlu0 %4067
      %v4069 = vsel %vm2523, %v4046, %v4048
      %v4070 = vsel %vm2523, %v4048, %v4050
      %v4071 = vsel %vm2523, %v4052, %v4054
      %v4072 = vsel %vm2523, %v4054, %v4056
      %v4073 = vsel %vm2523, %v4058, %v4060
      %v4074 = vsel %vm2523, %v4060, %v4062
      %v4075 = vsel %vm2523, %v4064, %v4066
      %v4076 = vsel %vm2523, %v4066, %v4068
      %v4090 = vsel %vm953, %v4043, 0
      %v4093 = vsel %vm953, %v4044, 0
      %4095 = vmatpush.bf16.msra.mxu0 0
      %4096 = vmatpush.bf16.msra.mxu0 0
      %4097 = vmatpush.bf16.msra.mxu0 0
      %4098 = vmatpush.bf16.msra.mxu0 0
      %4099 = vmatpush.bf16.msra.mxu0 %v4075
      %4100 = vmatpush.bf16.msra.mxu0 %v4073
      %4101 = vmatpush.bf16.msra.mxu0 %v4071
      %4102 = vmatpush.bf16.msra.mxu0 %v4069
      %4103 = vmatmul.bf16.gmra.mxu0 %v4090
      %v4104 = vpop.f32.mrf.mxu0
      %v4105 = vadd.f32 0.0, %v4104
      %v4106 = vpop.f32.mrf.mxu0
      %v4107 = vadd.f32 0.0, %v4106
      %4108 = vmatmul.bf16.gmra.mxu0 %v4093
      %v4109 = vpop.f32.mrf.mxu0
      %v4110 = vadd.f32 0.0, %v4109
      %v4111 = vpop.f32.mrf.mxu0
      %v4112 = vadd.f32 0.0, %v4111
      %4113 = vdwg.mxu0
      %4114 = vmatpush.bf16.msra.mxu0 0
      %4115 = vmatpush.bf16.msra.mxu0 0
      %4116 = vmatpush.bf16.msra.mxu0 0
      %4117 = vmatpush.bf16.msra.mxu0 0
      %4118 = vmatpush.bf16.msra.mxu0 %v4076
      %4119 = vmatpush.bf16.msra.mxu0 %v4074
      %4120 = vmatpush.bf16.msra.mxu0 %v4072
      %4121 = vmatpush.bf16.msra.mxu0 %v4070
      %4122 = vmatmul.bf16.gmra.mxu0 %v4090
      %v4123 = vpop.f32.mrf.mxu0
      %v4124 = vadd.f32 0.0, %v4123
      %v4125 = vpop.f32.mrf.mxu0
      %v4126 = vadd.f32 0.0, %v4125
      %4127 = vmatmul.bf16.gmra.mxu0 %v4093
      %v4128 = vpop.f32.mrf.mxu0
      %v4129 = vadd.f32 0.0, %v4128
      %v4130 = vpop.f32.mrf.mxu0
      %v4131 = vadd.f32 0.0, %v4130
      %4132 = vdwg.mxu0
      %4133 = vmatpush.bf16.msra.mxu0 0
      %4134 = vmatpush.bf16.msra.mxu0 0
      %4135 = vmatpush.bf16.msra.mxu0 0
      %4136 = vmatpush.bf16.msra.mxu0 0
      %4137 = vmatpush.bf16.msra.mxu0 %v4068
      %4138 = vmatpush.bf16.msra.mxu0 %v4062
      %4139 = vmatpush.bf16.msra.mxu0 %v4056
      %4140 = vmatpush.bf16.msra.mxu0 %v4050
      %4141 = vmatmul.bf16.gmra.mxu0 %v4090
      %v4142 = vpop.f32.mrf.mxu0
      %v4143 = vadd.f32 0.0, %v4142
      %v4144 = vpop.f32.mrf.mxu0
      %v4145 = vadd.f32 0.0, %v4144
      %4146 = vmatmul.bf16.gmra.mxu0 %v4093
      %v4147 = vpop.f32.mrf.mxu0
      %v4148 = vadd.f32 0.0, %v4147
      %v4149 = vpop.f32.mrf.mxu0
      %v4150 = vadd.f32 0.0, %v4149
      %4151 = vdwg.mxu0
      %v4152 = vadd.f32 %v4018, %v4105
      %v4153 = vadd.f32 %v4019, %v4124
      %v4154 = vadd.f32 %v4020, %v4143
      %v4155 = vadd.f32 %v4021, %v4107
      %v4156 = vadd.f32 %v4022, %v4126
      %v4157 = vadd.f32 %v4023, %v4145
      %v4158 = vadd.f32 %v4024, %v4110
      %v4159 = vadd.f32 %v4025, %v4129
      %v4160 = vadd.f32 %v4026, %v4148
      %v4161 = vadd.f32 %v4027, %v4112
      %v4162 = vadd.f32 %v4028, %v4131
      %v4163 = vadd.f32 %v4029, %v4150
      %v4164 = vld [vmem:[%s6] sm:$0xff]
      %v4165 = vld [vmem:[%s6 + $0x8] sm:$0xff]
      %v4166 = vld [vmem:[%s6 + $0x10] sm:$0xff]
      %v4167 = vld [vmem:[%s6 + $0x18] sm:$0xff]
      %4169 = vset.pattern.permute.xlu0 0
      %4170 = vperm.xlu0 %4169, %v4164
      %v4171 = vpop.permute.xlu0 %4170
      %4174 = vset.pattern.permute.xlu0 0
      %4175 = vperm.xlu0 %4174, %v4165
      %v4176 = vpop.permute.xlu0 %4175
      %4179 = vset.pattern.permute.xlu0 0
      %4180 = vperm.xlu0 %4179, %v4166
      %v4181 = vpop.permute.xlu0 %4180
      %4184 = vset.pattern.permute.xlu0 0
      %4185 = vperm.xlu0 %4184, %v4167
      %v4186 = vpop.permute.xlu0 %4185
      %v4188 = vadd.f32 %v4152, %v4171
      %v4189 = vadd.f32 %v4153, %v4171
      %v4190 = vadd.f32 %v4154, %v4171
      %v4191 = vadd.f32 %v4155, %v4176
      %v4192 = vadd.f32 %v4156, %v4176
      %v4193 = vadd.f32 %v4157, %v4176
      %v4194 = vadd.f32 %v4158, %v4181
      %v4195 = vadd.f32 %v4159, %v4181
      %v4196 = vadd.f32 %v4160, %v4181
      %v4197 = vadd.f32 %v4161, %v4186
      %v4198 = vadd.f32 %v4162, %v4186
      %v4199 = vadd.f32 %v4163, %v4186
      %v4200 = vmax.f32 %v4188, 0.0
      %v4201 = vmax.f32 %v4189, 0.0
      %v4202 = vmax.f32 %v4190, 0.0
      %v4203 = vmax.f32 %v4191, 0.0
      %v4204 = vmax.f32 %v4192, 0.0
      %v4205 = vmax.f32 %v4193, 0.0
      %v4206 = vmax.f32 %v4194, 0.0
      %v4207 = vmax.f32 %v4195, 0.0
      %v4208 = vmax.f32 %v4196, 0.0
      %v4209 = vmax.f32 %v4197, 0.0
      %v4210 = vmax.f32 %v4198, 0.0
      %v4211 = vmax.f32 %v4199, 0.0
      %v4212 = vmul.f32 %v4200, %v479
      %v4213 = vmul.f32 %v4201, %v480
      %v4214 = vmul.f32 %v4202, %v481
      %v4215 = vmul.f32 %v4203, %v479
      %v4216 = vmul.f32 %v4204, %v480
      %v4217 = vmul.f32 %v4205, %v481
      %v4218 = vmul.f32 %v4206, %v479
      %v4219 = vmul.f32 %v4207, %v480
      %v4220 = vmul.f32 %v4208, %v481
      %v4221 = vmul.f32 %v4209, %v479
      %v4222 = vmul.f32 %v4210, %v480
      %v4223 = vmul.f32 %v4211, %v481
      %v4224 = vpack.c.bf16 %v4213, %v4212
      %v4225 = vpack.c.bf16 %v4214, %v4214
      %v4226 = vpack.c.bf16 %v4216, %v4215
      %v4227 = vpack.c.bf16 %v4217, %v4217
      %v4228 = vpack.c.bf16 %v4219, %v4218
      %v4229 = vpack.c.bf16 %v4220, %v4220
      %v4230 = vpack.c.bf16 %v4222, %v4221
      %v4231 = vpack.c.bf16 %v4223, %v4223
      %4232 = vst [vmem:[#allocation2 + $0x4] sm:$0xff] %v4224
      %4233 = vst.msk [vmem:[#allocation2 + $0xc] sm:$0xf] %vm763, %v4225
      %4234 = vst [vmem:[#allocation2 + $0x14] sm:$0xff] %v4226
      %4235 = vst.msk [vmem:[#allocation2 + $0x1c] sm:$0xf] %vm763, %v4227
      %4236 = vst [vmem:[#allocation2 + $0x24] sm:$0xff] %v4228
      %4237 = vst.msk [vmem:[#allocation2 + $0x2c] sm:$0xf] %vm763, %v4229
      %4238 = vst [vmem:[#allocation2 + $0x34] sm:$0xff] %v4230
      %4239 = vst.msk [vmem:[#allocation2 + $0x3c] sm:$0xf] %vm763, %v4231
      %v4240 = vld [vmem:[#allocation2] sm:$0xff]
      %v4241 = vld [vmem:[#allocation2 + $0x8] sm:$0xff]
      %v4242 = vld [vmem:[#allocation2 + $0x10] sm:$0xff]
      %v4243 = vld [vmem:[#allocation2 + $0x18] sm:$0xff]
      %v4244 = vld [vmem:[#allocation2 + $0x20] sm:$0xff]
      %v4245 = vld [vmem:[#allocation2 + $0x28] sm:$0xff]
      %v4246 = vld [vmem:[#allocation2 + $0x30] sm:$0xff]
      %v4247 = vld [vmem:[#allocation2 + $0x38] sm:$0xff]
      %v4248 = vld [vmem:[%s7] sm:$0xf]
      %v4249 = vld [vmem:[%s7 + $0x4] sm:$0x1]
      %s4250 = scalar_lea.vmem %s7, 8
      %v4251 = vld [vmem:[%s4250] sm:$0xf]
      %v4252 = vld [vmem:[%s4250 + $0x4] sm:$0x1]
      %v4255 = vunpack.c.l.b16 %v4251
      %v4256 = vunpack.c.l.b16 %v4252
      %v4257 = vpack.c.b16 %v4256, %v4255
      %v4266 = vunpack.c.l.b16 %v4240
      %v4267 = vunpack.c.h.b16 %v4240
      %v4268 = vunpack.c.l.b16 %v4241
      %v4269 = vunpack.c.h.b16 %v4241
      %v4270 = vunpack.c.l.b16 %v4242
      %v4271 = vunpack.c.h.b16 %v4242
      %v4272 = vunpack.c.l.b16 %v4243
      %v4273 = vunpack.c.h.b16 %v4243
      %v4274 = vunpack.c.l.b16 %v4244
      %v4275 = vunpack.c.h.b16 %v4244
      %v4276 = vunpack.c.l.b16 %v4245
      %v4277 = vunpack.c.h.b16 %v4245
      %v4278 = vunpack.c.l.b16 %v4246
      %v4279 = vunpack.c.h.b16 %v4246
      %v4280 = vunpack.c.l.b16 %v4247
      %v4281 = vunpack.c.h.b16 %v4247
      %v4282 = vpack.c.b16 %v4270, %v4266
      %v4283 = vpack.c.b16 %v4271, %v4267
      %v4284 = vpack.c.b16 %v4272, %v4268
      %v4285 = vpack.c.b16 %v4273, %v4269
      %v4286 = vpack.c.b16 %v4278, %v4274
      %v4287 = vpack.c.b16 %v4279, %v4275
      %v4288 = vpack.c.b16 %v4280, %v4276
      %v4289 = vpack.c.b16 %v4281, %v4277
      %4290 = vrot.lane.b32.xlu0 %v4282, 20
      %v4291 = vpop.permute.xlu0 %4290
      %4292 = vrot.lane.b32.xlu0 %v4283, 20
      %v4293 = vpop.permute.xlu0 %4292
      %4294 = vrot.lane.b32.xlu0 %v4284, 20
      %v4295 = vpop.permute.xlu0 %4294
      %4296 = vrot.lane.b32.xlu0 %v4285, 20
      %v4297 = vpop.permute.xlu0 %4296
      %4298 = vrot.lane.b32.xlu0 %v4286, 20
      %v4299 = vpop.permute.xlu0 %4298
      %4300 = vrot.lane.b32.xlu0 %v4287, 20
      %v4301 = vpop.permute.xlu0 %4300
      %4302 = vrot.lane.b32.xlu0 %v4288, 20
      %v4303 = vpop.permute.xlu0 %4302
      %4304 = vrot.lane.b32.xlu0 %v4289, 20
      %v4305 = vpop.permute.xlu0 %4304
      %v4306 = vsel %vm928, %v4291, %v4293
      %v4307 = vsel %vm928, %v4293, %v4295
      %v4308 = vsel %vm928, %v4295, %v4297
      %v4309 = vsel %vm928, %v4299, %v4301
      %v4310 = vsel %vm928, %v4301, %v4303
      %v4311 = vsel %vm928, %v4303, %v4305
      %v4319 = vsel %vm598, %v4257, 0
      %4321 = vmatpush.bf16.msra.mxu0 0
      %4322 = vmatpush.bf16.msra.mxu0 0
      %4323 = vmatpush.bf16.msra.mxu0 0
      %4324 = vmatpush.bf16.msra.mxu0 0
      %4325 = vmatpush.bf16.msra.mxu0 0
      %4326 = vmatpush.bf16.msra.mxu0 0
      %4327 = vmatpush.bf16.msra.mxu0 %v4309
      %4328 = vmatpush.bf16.msra.mxu0 %v4306
      %4329 = vmatmul.bf16.gmra.mxu0 %v4319
      %v4330 = vpop.f32.mrf.mxu0
      %v4331 = vadd.f32 0.0, %v4330
      %v4332 = vpop.f32.mrf.mxu0
      %v4333 = vadd.f32 0.0, %v4332
      %4334 = vdwg.mxu0
      %4335 = vmatpush.bf16.msra.mxu0 0
      %4336 = vmatpush.bf16.msra.mxu0 0
      %4337 = vmatpush.bf16.msra.mxu0 0
      %4338 = vmatpush.bf16.msra.mxu0 0
      %4339 = vmatpush.bf16.msra.mxu0 0
      %4340 = vmatpush.bf16.msra.mxu0 0
      %4341 = vmatpush.bf16.msra.mxu0 %v4310
      %4342 = vmatpush.bf16.msra.mxu0 %v4307
      %4343 = vmatmul.bf16.gmra.mxu0 %v4319
      %v4344 = vpop.f32.mrf.mxu0
      %v4345 = vadd.f32 0.0, %v4344
      %v4346 = vpop.f32.mrf.mxu0
      %v4347 = vadd.f32 0.0, %v4346
      %4348 = vdwg.mxu0
      %4349 = vmatpush.bf16.msra.mxu0 0
      %4350 = vmatpush.bf16.msra.mxu0 0
      %4351 = vmatpush.bf16.msra.mxu0 0
      %4352 = vmatpush.bf16.msra.mxu0 0
      %4353 = vmatpush.bf16.msra.mxu0 0
      %4354 = vmatpush.bf16.msra.mxu0 0
      %4355 = vmatpush.bf16.msra.mxu0 %v4311
      %4356 = vmatpush.bf16.msra.mxu0 %v4308
      %4357 = vmatmul.bf16.gmra.mxu0 %v4319
      %v4358 = vpop.f32.mrf.mxu0
      %v4359 = vadd.f32 0.0, %v4358
      %v4360 = vpop.f32.mrf.mxu0
      %v4361 = vadd.f32 0.0, %v4360
      %4362 = vdwg.mxu0
      %v4365 = vunpack.c.l.b16 %v4248
      %v4366 = vunpack.c.l.b16 %v4249
      %v4367 = vpack.c.b16 %v4366, %v4365
      %4368 = vrot.lane.b32.xlu0 %v4282, 21
      %v4369 = vpop.permute.xlu0 %4368
      %4370 = vrot.lane.b32.xlu0 %v4283, 21
      %v4371 = vpop.permute.xlu0 %4370
      %4372 = vrot.lane.b32.xlu0 %v4284, 21
      %v4373 = vpop.permute.xlu0 %4372
      %4374 = vrot.lane.b32.xlu0 %v4285, 21
      %v4375 = vpop.permute.xlu0 %4374
      %4376 = vrot.lane.b32.xlu0 %v4286, 21
      %v4377 = vpop.permute.xlu0 %4376
      %4378 = vrot.lane.b32.xlu0 %v4287, 21
      %v4379 = vpop.permute.xlu0 %4378
      %4380 = vrot.lane.b32.xlu0 %v4288, 21
      %v4381 = vpop.permute.xlu0 %4380
      %4382 = vrot.lane.b32.xlu0 %v4289, 21
      %v4383 = vpop.permute.xlu0 %4382
      %v4384 = vsel %vm1105, %v4369, %v4371
      %v4385 = vsel %vm1105, %v4371, %v4373
      %v4386 = vsel %vm1105, %v4373, %v4375
      %v4387 = vsel %vm1105, %v4377, %v4379
      %v4388 = vsel %vm1105, %v4379, %v4381
      %v4389 = vsel %vm1105, %v4381, %v4383
      %v4397 = vsel %vm598, %v4367, 0
      %4399 = vmatpush.bf16.msra.mxu0 0
      %4400 = vmatpush.bf16.msra.mxu0 0
      %4401 = vmatpush.bf16.msra.mxu0 0
      %4402 = vmatpush.bf16.msra.mxu0 0
      %4403 = vmatpush.bf16.msra.mxu0 0
      %4404 = vmatpush.bf16.msra.mxu0 0
      %4405 = vmatpush.bf16.msra.mxu0 %v4387
      %4406 = vmatpush.bf16.msra.mxu0 %v4384
      %4407 = vmatmul.bf16.gmra.mxu0 %v4397
      %v4408 = vpop.f32.mrf.mxu0
      %v4409 = vadd.f32 %v4331, %v4408
      %v4410 = vpop.f32.mrf.mxu0
      %v4411 = vadd.f32 %v4333, %v4410
      %4412 = vdwg.mxu0
      %4413 = vmatpush.bf16.msra.mxu0 0
      %4414 = vmatpush.bf16.msra.mxu0 0
      %4415 = vmatpush.bf16.msra.mxu0 0
      %4416 = vmatpush.bf16.msra.mxu0 0
      %4417 = vmatpush.bf16.msra.mxu0 0
      %4418 = vmatpush.bf16.msra.mxu0 0
      %4419 = vmatpush.bf16.msra.mxu0 %v4388
      %4420 = vmatpush.bf16.msra.mxu0 %v4385
      %4421 = vmatmul.bf16.gmra.mxu0 %v4397
      %v4422 = vpop.f32.mrf.mxu0
      %v4423 = vadd.f32 %v4345, %v4422
      %v4424 = vpop.f32.mrf.mxu0
      %v4425 = vadd.f32 %v4347, %v4424
      %4426 = vdwg.mxu0
      %4427 = vmatpush.bf16.msra.mxu0 0
      %4428 = vmatpush.bf16.msra.mxu0 0
      %4429 = vmatpush.bf16.msra.mxu0 0
      %4430 = vmatpush.bf16.msra.mxu0 0
      %4431 = vmatpush.bf16.msra.mxu0 0
      %4432 = vmatpush.bf16.msra.mxu0 0
      %4433 = vmatpush.bf16.msra.mxu0 %v4389
      %4434 = vmatpush.bf16.msra.mxu0 %v4386
      %4435 = vmatmul.bf16.gmra.mxu0 %v4397
      %v4436 = vpop.f32.mrf.mxu0
      %v4437 = vadd.f32 %v4359, %v4436
      %v4438 = vpop.f32.mrf.mxu0
      %v4439 = vadd.f32 %v4361, %v4438
      %4440 = vdwg.mxu0
      %s4441 = scalar_lea.vmem %s7, 16
      %v4442 = vld [vmem:[%s4441] sm:$0xf]
      %v4443 = vld [vmem:[%s4441 + $0x4] sm:$0x1]
      %v4446 = vunpack.c.l.b16 %v4442
      %v4447 = vunpack.c.l.b16 %v4443
      %v4448 = vpack.c.b16 %v4447, %v4446
      %4449 = vrot.lane.b32.xlu0 %v4282, 19
      %v4450 = vpop.permute.xlu0 %4449
      %4451 = vrot.lane.b32.xlu0 %v4283, 19
      %v4452 = vpop.permute.xlu0 %4451
      %4453 = vrot.lane.b32.xlu0 %v4284, 19
      %v4454 = vpop.permute.xlu0 %4453
      %4455 = vrot.lane.b32.xlu0 %v4285, 19
      %v4456 = vpop.permute.xlu0 %4455
      %4457 = vrot.lane.b32.xlu0 %v4286, 19
      %v4458 = vpop.permute.xlu0 %4457
      %4459 = vrot.lane.b32.xlu0 %v4287, 19
      %v4460 = vpop.permute.xlu0 %4459
      %4461 = vrot.lane.b32.xlu0 %v4288, 19
      %v4462 = vpop.permute.xlu0 %4461
      %4463 = vrot.lane.b32.xlu0 %v4289, 19
      %v4464 = vpop.permute.xlu0 %4463
      %v4465 = vsel %vm1290, %v4450, %v4452
      %v4466 = vsel %vm1290, %v4452, %v4454
      %v4467 = vsel %vm1290, %v4454, %v4456
      %v4468 = vsel %vm1290, %v4458, %v4460
      %v4469 = vsel %vm1290, %v4460, %v4462
      %v4470 = vsel %vm1290, %v4462, %v4464
      %v4478 = vsel %vm598, %v4448, 0
      %4480 = vmatpush.bf16.msra.mxu0 0
      %4481 = vmatpush.bf16.msra.mxu0 0
      %4482 = vmatpush.bf16.msra.mxu0 0
      %4483 = vmatpush.bf16.msra.mxu0 0
      %4484 = vmatpush.bf16.msra.mxu0 0
      %4485 = vmatpush.bf16.msra.mxu0 0
      %4486 = vmatpush.bf16.msra.mxu0 %v4468
      %4487 = vmatpush.bf16.msra.mxu0 %v4465
      %4488 = vmatmul.bf16.gmra.mxu0 %v4478
      %v4489 = vpop.f32.mrf.mxu0
      %v4490 = vadd.f32 0.0, %v4489
      %v4491 = vpop.f32.mrf.mxu0
      %v4492 = vadd.f32 0.0, %v4491
      %4493 = vdwg.mxu0
      %4494 = vmatpush.bf16.msra.mxu0 0
      %4495 = vmatpush.bf16.msra.mxu0 0
      %4496 = vmatpush.bf16.msra.mxu0 0
      %4497 = vmatpush.bf16.msra.mxu0 0
      %4498 = vmatpush.bf16.msra.mxu0 0
      %4499 = vmatpush.bf16.msra.mxu0 0
      %4500 = vmatpush.bf16.msra.mxu0 %v4469
      %4501 = vmatpush.bf16.msra.mxu0 %v4466
      %4502 = vmatmul.bf16.gmra.mxu0 %v4478
      %v4503 = vpop.f32.mrf.mxu0
      %v4504 = vadd.f32 0.0, %v4503
      %v4505 = vpop.f32.mrf.mxu0
      %v4506 = vadd.f32 0.0, %v4505
      %4507 = vdwg.mxu0
      %4508 = vmatpush.bf16.msra.mxu0 0
      %4509 = vmatpush.bf16.msra.mxu0 0
      %4510 = vmatpush.bf16.msra.mxu0 0
      %4511 = vmatpush.bf16.msra.mxu0 0
      %4512 = vmatpush.bf16.msra.mxu0 0
      %4513 = vmatpush.bf16.msra.mxu0 0
      %4514 = vmatpush.bf16.msra.mxu0 %v4470
      %4515 = vmatpush.bf16.msra.mxu0 %v4467
      %4516 = vmatmul.bf16.gmra.mxu0 %v4478
      %v4517 = vpop.f32.mrf.mxu0
      %v4518 = vadd.f32 0.0, %v4517
      %v4519 = vpop.f32.mrf.mxu0
      %v4520 = vadd.f32 0.0, %v4519
      %4521 = vdwg.mxu0
      %v4522 = vadd.f32 %v4409, %v4490
      %v4523 = vadd.f32 %v4423, %v4504
      %v4524 = vadd.f32 %v4437, %v4518
      %v4525 = vadd.f32 %v4411, %v4492
      %v4526 = vadd.f32 %v4425, %v4506
      %v4527 = vadd.f32 %v4439, %v4520
      %s4528 = scalar_lea.vmem %s7, 24
      %v4529 = vld [vmem:[%s4528] sm:$0xf]
      %v4530 = vld [vmem:[%s4528 + $0x4] sm:$0x1]
      %v4533 = vunpack.c.l.b16 %v4529
      %v4534 = vunpack.c.l.b16 %v4530
      %v4535 = vpack.c.b16 %v4534, %v4533
      %4536 = vrot.lane.b32.xlu0 %v4282, 1
      %v4537 = vpop.permute.xlu0 %4536
      %4538 = vrot.lane.b32.xlu0 %v4283, 1
      %v4539 = vpop.permute.xlu0 %4538
      %4540 = vrot.lane.b32.xlu0 %v4284, 1
      %v4541 = vpop.permute.xlu0 %4540
      %4542 = vrot.lane.b32.xlu0 %v4285, 1
      %v4543 = vpop.permute.xlu0 %4542
      %4544 = vrot.lane.b32.xlu0 %v4286, 1
      %v4545 = vpop.permute.xlu0 %4544
      %4546 = vrot.lane.b32.xlu0 %v4287, 1
      %v4547 = vpop.permute.xlu0 %4546
      %4548 = vrot.lane.b32.xlu0 %v4288, 1
      %v4549 = vpop.permute.xlu0 %4548
      %4550 = vrot.lane.b32.xlu0 %v4289, 1
      %v4551 = vpop.permute.xlu0 %4550
      %v4552 = vsel %vm1499, %v4537, %v4539
      %v4553 = vsel %vm1499, %v4539, %v4541
      %v4554 = vsel %vm1499, %v4541, %v4543
      %v4555 = vsel %vm1499, %v4545, %v4547
      %v4556 = vsel %vm1499, %v4547, %v4549
      %v4557 = vsel %vm1499, %v4549, %v4551
      %v4565 = vsel %vm598, %v4535, 0
      %4567 = vmatpush.bf16.msra.mxu0 0
      %4568 = vmatpush.bf16.msra.mxu0 0
      %4569 = vmatpush.bf16.msra.mxu0 0
      %4570 = vmatpush.bf16.msra.mxu0 0
      %4571 = vmatpush.bf16.msra.mxu0 0
      %4572 = vmatpush.bf16.msra.mxu0 0
      %4573 = vmatpush.bf16.msra.mxu0 %v4555
      %4574 = vmatpush.bf16.msra.mxu0 %v4552
      %4575 = vmatmul.bf16.gmra.mxu0 %v4565
      %v4576 = vpop.f32.mrf.mxu0
      %v4577 = vadd.f32 0.0, %v4576
      %v4578 = vpop.f32.mrf.mxu0
      %v4579 = vadd.f32 0.0, %v4578
      %4580 = vdwg.mxu0
      %4581 = vmatpush.bf16.msra.mxu0 0
      %4582 = vmatpush.bf16.msra.mxu0 0
      %4583 = vmatpush.bf16.msra.mxu0 0
      %4584 = vmatpush.bf16.msra.mxu0 0
      %4585 = vmatpush.bf16.msra.mxu0 0
      %4586 = vmatpush.bf16.msra.mxu0 0
      %4587 = vmatpush.bf16.msra.mxu0 %v4556
      %4588 = vmatpush.bf16.msra.mxu0 %v4553
      %4589 = vmatmul.bf16.gmra.mxu0 %v4565
      %v4590 = vpop.f32.mrf.mxu0
      %v4591 = vadd.f32 0.0, %v4590
      %v4592 = vpop.f32.mrf.mxu0
      %v4593 = vadd.f32 0.0, %v4592
      %4594 = vdwg.mxu0
      %4595 = vmatpush.bf16.msra.mxu0 0
      %4596 = vmatpush.bf16.msra.mxu0 0
      %4597 = vmatpush.bf16.msra.mxu0 0
      %4598 = vmatpush.bf16.msra.mxu0 0
      %4599 = vmatpush.bf16.msra.mxu0 0
      %4600 = vmatpush.bf16.msra.mxu0 0
      %4601 = vmatpush.bf16.msra.mxu0 %v4557
      %4602 = vmatpush.bf16.msra.mxu0 %v4554
      %4603 = vmatmul.bf16.gmra.mxu0 %v4565
      %v4604 = vpop.f32.mrf.mxu0
      %v4605 = vadd.f32 0.0, %v4604
      %v4606 = vpop.f32.mrf.mxu0
      %v4607 = vadd.f32 0.0, %v4606
      %4608 = vdwg.mxu0
      %v4609 = vadd.f32 %v4522, %v4577
      %v4610 = vadd.f32 %v4523, %v4591
      %v4611 = vadd.f32 %v4524, %v4605
      %v4612 = vadd.f32 %v4525, %v4579
      %v4613 = vadd.f32 %v4526, %v4593
      %v4614 = vadd.f32 %v4527, %v4607
      %v4615 = vld [vmem:[#allocation2 + $0x4] sm:$0xff]
      %v4616 = vld [vmem:[#allocation2 + $0xc] sm:$0xf]
      %v4617 = vld [vmem:[#allocation2 + $0x14] sm:$0xff]
      %v4618 = vld [vmem:[#allocation2 + $0x1c] sm:$0xf]
      %v4619 = vld [vmem:[#allocation2 + $0x24] sm:$0xff]
      %v4620 = vld [vmem:[#allocation2 + $0x2c] sm:$0xf]
      %v4621 = vld [vmem:[#allocation2 + $0x34] sm:$0xff]
      %v4622 = vld [vmem:[#allocation2 + $0x3c] sm:$0xf]
      %s4623 = scalar_lea.vmem %s7, 32
      %v4624 = vld [vmem:[%s4623] sm:$0xf]
      %v4625 = vld [vmem:[%s4623 + $0x4] sm:$0x1]
      %v4628 = vunpack.c.l.b16 %v4624
      %v4629 = vunpack.c.l.b16 %v4625
      %v4630 = vpack.c.b16 %v4629, %v4628
      %v4639 = vunpack.c.l.b16 %v4615
      %v4640 = vunpack.c.h.b16 %v4615
      %v4641 = vunpack.c.l.b16 %v4616
      %v4642 = vunpack.c.l.b16 %v4617
      %v4643 = vunpack.c.h.b16 %v4617
      %v4644 = vunpack.c.l.b16 %v4618
      %v4645 = vunpack.c.l.b16 %v4619
      %v4646 = vunpack.c.h.b16 %v4619
      %v4647 = vunpack.c.l.b16 %v4620
      %v4648 = vunpack.c.l.b16 %v4621
      %v4649 = vunpack.c.h.b16 %v4621
      %v4650 = vunpack.c.l.b16 %v4622
      %v4651 = vpack.c.b16 %v4642, %v4639
      %v4652 = vpack.c.b16 %v4643, %v4640
      %v4653 = vpack.c.b16 %v4644, %v4641
      %v4654 = vpack.c.b16 %v4648, %v4645
      %v4655 = vpack.c.b16 %v4649, %v4646
      %v4656 = vpack.c.b16 %v4650, %v4647
      %v4664 = vsel %vm598, %v4630, 0
      %4666 = vmatpush.bf16.msra.mxu0 0
      %4667 = vmatpush.bf16.msra.mxu0 0
      %4668 = vmatpush.bf16.msra.mxu0 0
      %4669 = vmatpush.bf16.msra.mxu0 0
      %4670 = vmatpush.bf16.msra.mxu0 0
      %4671 = vmatpush.bf16.msra.mxu0 0
      %4672 = vmatpush.bf16.msra.mxu0 %v4654
      %4673 = vmatpush.bf16.msra.mxu0 %v4651
      %4674 = vmatmul.bf16.gmra.mxu0 %v4664
      %v4675 = vpop.f32.mrf.mxu0
      %v4676 = vadd.f32 0.0, %v4675
      %v4677 = vpop.f32.mrf.mxu0
      %v4678 = vadd.f32 0.0, %v4677
      %4679 = vdwg.mxu0
      %4680 = vmatpush.bf16.msra.mxu0 0
      %4681 = vmatpush.bf16.msra.mxu0 0
      %4682 = vmatpush.bf16.msra.mxu0 0
      %4683 = vmatpush.bf16.msra.mxu0 0
      %4684 = vmatpush.bf16.msra.mxu0 0
      %4685 = vmatpush.bf16.msra.mxu0 0
      %4686 = vmatpush.bf16.msra.mxu0 %v4655
      %4687 = vmatpush.bf16.msra.mxu0 %v4652
      %4688 = vmatmul.bf16.gmra.mxu0 %v4664
      %v4689 = vpop.f32.mrf.mxu0
      %v4690 = vadd.f32 0.0, %v4689
      %v4691 = vpop.f32.mrf.mxu0
      %v4692 = vadd.f32 0.0, %v4691
      %4693 = vdwg.mxu0
      %4694 = vmatpush.bf16.msra.mxu0 0
      %4695 = vmatpush.bf16.msra.mxu0 0
      %4696 = vmatpush.bf16.msra.mxu0 0
      %4697 = vmatpush.bf16.msra.mxu0 0
      %4698 = vmatpush.bf16.msra.mxu0 0
      %4699 = vmatpush.bf16.msra.mxu0 0
      %4700 = vmatpush.bf16.msra.mxu0 %v4656
      %4701 = vmatpush.bf16.msra.mxu0 %v4653
      %4702 = vmatmul.bf16.gmra.mxu0 %v4664
      %v4703 = vpop.f32.mrf.mxu0
      %v4704 = vadd.f32 0.0, %v4703
      %v4705 = vpop.f32.mrf.mxu0
      %v4706 = vadd.f32 0.0, %v4705
      %4707 = vdwg.mxu0
      %v4708 = vadd.f32 %v4609, %v4676
      %v4709 = vadd.f32 %v4610, %v4690
      %v4710 = vadd.f32 %v4611, %v4704
      %v4711 = vadd.f32 %v4612, %v4678
      %v4712 = vadd.f32 %v4613, %v4692
      %v4713 = vadd.f32 %v4614, %v4706
      %s4714 = scalar_lea.vmem %s7, 40
      %v4715 = vld [vmem:[%s4714] sm:$0xf]
      %v4716 = vld [vmem:[%s4714 + $0x4] sm:$0x1]
      %v4719 = vunpack.c.l.b16 %v4715
      %v4720 = vunpack.c.l.b16 %v4716
      %v4721 = vpack.c.b16 %v4720, %v4719
      %4722 = vrot.lane.b32.xlu0 %v4651, 127
      %v4723 = vpop.permute.xlu0 %4722
      %4724 = vrot.lane.b32.xlu0 %v4652, 127
      %v4725 = vpop.permute.xlu0 %4724
      %4726 = vrot.lane.b32.xlu0 %v4653, 127
      %v4727 = vpop.permute.xlu0 %4726
      %4728 = vrot.lane.b32.xlu0 %v4654, 127
      %v4729 = vpop.permute.xlu0 %4728
      %4730 = vrot.lane.b32.xlu0 %v4655, 127
      %v4731 = vpop.permute.xlu0 %4730
      %4732 = vrot.lane.b32.xlu0 %v4656, 127
      %v4733 = vpop.permute.xlu0 %4732
      %v4734 = vsel %vm1932, %v4723, %v4725
      %v4735 = vsel %vm1932, %v4725, %v4727
      %v4736 = vsel %vm1932, %v4729, %v4731
      %v4737 = vsel %vm1932, %v4731, %v4733
      %v4745 = vsel %vm598, %v4721, 0
      %4747 = vmatpush.bf16.msra.mxu0 0
      %4748 = vmatpush.bf16.msra.mxu0 0
      %4749 = vmatpush.bf16.msra.mxu0 0
      %4750 = vmatpush.bf16.msra.mxu0 0
      %4751 = vmatpush.bf16.msra.mxu0 0
      %4752 = vmatpush.bf16.msra.mxu0 0
      %4753 = vmatpush.bf16.msra.mxu0 %v4736
      %4754 = vmatpush.bf16.msra.mxu0 %v4734
      %4755 = vmatmul.bf16.gmra.mxu0 %v4745
      %v4756 = vpop.f32.mrf.mxu0
      %v4757 = vadd.f32 0.0, %v4756
      %v4758 = vpop.f32.mrf.mxu0
      %v4759 = vadd.f32 0.0, %v4758
      %4760 = vdwg.mxu0
      %4761 = vmatpush.bf16.msra.mxu0 0
      %4762 = vmatpush.bf16.msra.mxu0 0
      %4763 = vmatpush.bf16.msra.mxu0 0
      %4764 = vmatpush.bf16.msra.mxu0 0
      %4765 = vmatpush.bf16.msra.mxu0 0
      %4766 = vmatpush.bf16.msra.mxu0 0
      %4767 = vmatpush.bf16.msra.mxu0 %v4737
      %4768 = vmatpush.bf16.msra.mxu0 %v4735
      %4769 = vmatmul.bf16.gmra.mxu0 %v4745
      %v4770 = vpop.f32.mrf.mxu0
      %v4771 = vadd.f32 0.0, %v4770
      %v4772 = vpop.f32.mrf.mxu0
      %v4773 = vadd.f32 0.0, %v4772
      %4774 = vdwg.mxu0
      %4775 = vmatpush.bf16.msra.mxu0 0
      %4776 = vmatpush.bf16.msra.mxu0 0
      %4777 = vmatpush.bf16.msra.mxu0 0
      %4778 = vmatpush.bf16.msra.mxu0 0
      %4779 = vmatpush.bf16.msra.mxu0 0
      %4780 = vmatpush.bf16.msra.mxu0 0
      %4781 = vmatpush.bf16.msra.mxu0 %v4733
      %4782 = vmatpush.bf16.msra.mxu0 %v4727
      %4783 = vmatmul.bf16.gmra.mxu0 %v4745
      %v4784 = vpop.f32.mrf.mxu0
      %v4785 = vadd.f32 0.0, %v4784
      %v4786 = vpop.f32.mrf.mxu0
      %v4787 = vadd.f32 0.0, %v4786
      %4788 = vdwg.mxu0
      %v4789 = vadd.f32 %v4708, %v4757
      %v4790 = vadd.f32 %v4709, %v4771
      %v4791 = vadd.f32 %v4710, %v4785
      %v4792 = vadd.f32 %v4711, %v4759
      %v4793 = vadd.f32 %v4712, %v4773
      %v4794 = vadd.f32 %v4713, %v4787
      %s4795 = scalar_lea.vmem %s7, 48
      %v4796 = vld [vmem:[%s4795] sm:$0xf]
      %v4797 = vld [vmem:[%s4795 + $0x4] sm:$0x1]
      %v4800 = vunpack.c.l.b16 %v4796
      %v4801 = vunpack.c.l.b16 %v4797
      %v4802 = vpack.c.b16 %v4801, %v4800
      %4803 = vrot.lane.b32.xlu0 %v4651, 109
      %v4804 = vpop.permute.xlu0 %4803
      %4805 = vrot.lane.b32.xlu0 %v4652, 109
      %v4806 = vpop.permute.xlu0 %4805
      %4807 = vrot.lane.b32.xlu0 %v4653, 109
      %v4808 = vpop.permute.xlu0 %4807
      %4809 = vrot.lane.b32.xlu0 %v4654, 109
      %v4810 = vpop.permute.xlu0 %4809
      %4811 = vrot.lane.b32.xlu0 %v4655, 109
      %v4812 = vpop.permute.xlu0 %4811
      %4813 = vrot.lane.b32.xlu0 %v4656, 109
      %v4814 = vpop.permute.xlu0 %4813
      %v4815 = vsel %vm2129, %v4804, %v4806
      %v4816 = vsel %vm2129, %v4806, %v4808
      %v4817 = vsel %vm2129, %v4810, %v4812
      %v4818 = vsel %vm2129, %v4812, %v4814
      %v4826 = vsel %vm598, %v4802, 0
      %4828 = vmatpush.bf16.msra.mxu0 0
      %4829 = vmatpush.bf16.msra.mxu0 0
      %4830 = vmatpush.bf16.msra.mxu0 0
      %4831 = vmatpush.bf16.msra.mxu0 0
      %4832 = vmatpush.bf16.msra.mxu0 0
      %4833 = vmatpush.bf16.msra.mxu0 0
      %4834 = vmatpush.bf16.msra.mxu0 %v4817
      %4835 = vmatpush.bf16.msra.mxu0 %v4815
      %4836 = vmatmul.bf16.gmra.mxu0 %v4826
      %v4837 = vpop.f32.mrf.mxu0
      %v4838 = vadd.f32 0.0, %v4837
      %v4839 = vpop.f32.mrf.mxu0
      %v4840 = vadd.f32 0.0, %v4839
      %4841 = vdwg.mxu0
      %4842 = vmatpush.bf16.msra.mxu0 0
      %4843 = vmatpush.bf16.msra.mxu0 0
      %4844 = vmatpush.bf16.msra.mxu0 0
      %4845 = vmatpush.bf16.msra.mxu0 0
      %4846 = vmatpush.bf16.msra.mxu0 0
      %4847 = vmatpush.bf16.msra.mxu0 0
      %4848 = vmatpush.bf16.msra.mxu0 %v4818
      %4849 = vmatpush.bf16.msra.mxu0 %v4816
      %4850 = vmatmul.bf16.gmra.mxu0 %v4826
      %v4851 = vpop.f32.mrf.mxu0
      %v4852 = vadd.f32 0.0, %v4851
      %v4853 = vpop.f32.mrf.mxu0
      %v4854 = vadd.f32 0.0, %v4853
      %4855 = vdwg.mxu0
      %4856 = vmatpush.bf16.msra.mxu0 0
      %4857 = vmatpush.bf16.msra.mxu0 0
      %4858 = vmatpush.bf16.msra.mxu0 0
      %4859 = vmatpush.bf16.msra.mxu0 0
      %4860 = vmatpush.bf16.msra.mxu0 0
      %4861 = vmatpush.bf16.msra.mxu0 0
      %4862 = vmatpush.bf16.msra.mxu0 %v4814
      %4863 = vmatpush.bf16.msra.mxu0 %v4808
      %4864 = vmatmul.bf16.gmra.mxu0 %v4826
      %v4865 = vpop.f32.mrf.mxu0
      %v4866 = vadd.f32 0.0, %v4865
      %v4867 = vpop.f32.mrf.mxu0
      %v4868 = vadd.f32 0.0, %v4867
      %4869 = vdwg.mxu0
      %v4870 = vadd.f32 %v4789, %v4838
      %v4871 = vadd.f32 %v4790, %v4852
      %v4872 = vadd.f32 %v4791, %v4866
      %v4873 = vadd.f32 %v4792, %v4840
      %v4874 = vadd.f32 %v4793, %v4854
      %v4875 = vadd.f32 %v4794, %v4868
      %s4876 = scalar_lea.vmem %s7, 56
      %v4877 = vld [vmem:[%s4876] sm:$0xf]
      %v4878 = vld [vmem:[%s4876 + $0x4] sm:$0x1]
      %v4881 = vunpack.c.l.b16 %v4877
      %v4882 = vunpack.c.l.b16 %v4878
      %v4883 = vpack.c.b16 %v4882, %v4881
      %4884 = vrot.lane.b32.xlu0 %v4651, 108
      %v4885 = vpop.permute.xlu0 %4884
      %4886 = vrot.lane.b32.xlu0 %v4652, 108
      %v4887 = vpop.permute.xlu0 %4886
      %4888 = vrot.lane.b32.xlu0 %v4653, 108
      %v4889 = vpop.permute.xlu0 %4888
      %4890 = vrot.lane.b32.xlu0 %v4654, 108
      %v4891 = vpop.permute.xlu0 %4890
      %4892 = vrot.lane.b32.xlu0 %v4655, 108
      %v4893 = vpop.permute.xlu0 %4892
      %4894 = vrot.lane.b32.xlu0 %v4656, 108
      %v4895 = vpop.permute.xlu0 %4894
      %v4896 = vsel %vm2326, %v4885, %v4887
      %v4897 = vsel %vm2326, %v4887, %v4889
      %v4898 = vsel %vm2326, %v4891, %v4893
      %v4899 = vsel %vm2326, %v4893, %v4895
      %v4907 = vsel %vm598, %v4883, 0
      %4909 = vmatpush.bf16.msra.mxu0 0
      %4910 = vmatpush.bf16.msra.mxu0 0
      %4911 = vmatpush.bf16.msra.mxu0 0
      %4912 = vmatpush.bf16.msra.mxu0 0
      %4913 = vmatpush.bf16.msra.mxu0 0
      %4914 = vmatpush.bf16.msra.mxu0 0
      %4915 = vmatpush.bf16.msra.mxu0 %v4898
      %4916 = vmatpush.bf16.msra.mxu0 %v4896
      %4917 = vmatmul.bf16.gmra.mxu0 %v4907
      %v4918 = vpop.f32.mrf.mxu0
      %v4919 = vadd.f32 0.0, %v4918
      %v4920 = vpop.f32.mrf.mxu0
      %v4921 = vadd.f32 0.0, %v4920
      %4922 = vdwg.mxu0
      %4923 = vmatpush.bf16.msra.mxu0 0
      %4924 = vmatpush.bf16.msra.mxu0 0
      %4925 = vmatpush.bf16.msra.mxu0 0
      %4926 = vmatpush.bf16.msra.mxu0 0
      %4927 = vmatpush.bf16.msra.mxu0 0
      %4928 = vmatpush.bf16.msra.mxu0 0
      %4929 = vmatpush.bf16.msra.mxu0 %v4899
      %4930 = vmatpush.bf16.msra.mxu0 %v4897
      %4931 = vmatmul.bf16.gmra.mxu0 %v4907
      %v4932 = vpop.f32.mrf.mxu0
      %v4933 = vadd.f32 0.0, %v4932
      %v4934 = vpop.f32.mrf.mxu0
      %v4935 = vadd.f32 0.0, %v4934
      %4936 = vdwg.mxu0
      %4937 = vmatpush.bf16.msra.mxu0 0
      %4938 = vmatpush.bf16.msra.mxu0 0
      %4939 = vmatpush.bf16.msra.mxu0 0
      %4940 = vmatpush.bf16.msra.mxu0 0
      %4941 = vmatpush.bf16.msra.mxu0 0
      %4942 = vmatpush.bf16.msra.mxu0 0
      %4943 = vmatpush.bf16.msra.mxu0 %v4895
      %4944 = vmatpush.bf16.msra.mxu0 %v4889
      %4945 = vmatmul.bf16.gmra.mxu0 %v4907
      %v4946 = vpop.f32.mrf.mxu0
      %v4947 = vadd.f32 0.0, %v4946
      %v4948 = vpop.f32.mrf.mxu0
      %v4949 = vadd.f32 0.0, %v4948
      %4950 = vdwg.mxu0
      %v4951 = vadd.f32 %v4870, %v4919
      %v4952 = vadd.f32 %v4871, %v4933
      %v4953 = vadd.f32 %v4872, %v4947
      %v4954 = vadd.f32 %v4873, %v4921
      %v4955 = vadd.f32 %v4874, %v4935
      %v4956 = vadd.f32 %v4875, %v4949
      %s4957 = scalar_lea.vmem %s7, 64
      %v4958 = vld [vmem:[%s4957] sm:$0xf]
      %v4959 = vld [vmem:[%s4957 + $0x4] sm:$0x1]
      %v4962 = vunpack.c.l.b16 %v4958
      %v4963 = vunpack.c.l.b16 %v4959
      %v4964 = vpack.c.b16 %v4963, %v4962
      %4965 = vrot.lane.b32.xlu0 %v4651, 107
      %v4966 = vpop.permute.xlu0 %4965
      %4967 = vrot.lane.b32.xlu0 %v4652, 107
      %v4968 = vpop.permute.xlu0 %4967
      %4969 = vrot.lane.b32.xlu0 %v4653, 107
      %v4970 = vpop.permute.xlu0 %4969
      %4971 = vrot.lane.b32.xlu0 %v4654, 107
      %v4972 = vpop.permute.xlu0 %4971
      %4973 = vrot.lane.b32.xlu0 %v4655, 107
      %v4974 = vpop.permute.xlu0 %4973
      %4975 = vrot.lane.b32.xlu0 %v4656, 107
      %v4976 = vpop.permute.xlu0 %4975
      %v4977 = vsel %vm2523, %v4966, %v4968
      %v4978 = vsel %vm2523, %v4968, %v4970
      %v4979 = vsel %vm2523, %v4972, %v4974
      %v4980 = vsel %vm2523, %v4974, %v4976
      %v4988 = vsel %vm598, %v4964, 0
      %4990 = vmatpush.bf16.msra.mxu0 0
      %4991 = vmatpush.bf16.msra.mxu0 0
      %4992 = vmatpush.bf16.msra.mxu0 0
      %4993 = vmatpush.bf16.msra.mxu0 0
      %4994 = vmatpush.bf16.msra.mxu0 0
      %4995 = vmatpush.bf16.msra.mxu0 0
      %4996 = vmatpush.bf16.msra.mxu0 %v4979
      %4997 = vmatpush.bf16.msra.mxu0 %v4977
      %4998 = vmatmul.bf16.gmra.mxu0 %v4988
      %v4999 = vpop.f32.mrf.mxu0
      %v5000 = vadd.f32 0.0, %v4999
      %v5001 = vpop.f32.mrf.mxu0
      %v5002 = vadd.f32 0.0, %v5001
      %5003 = vdwg.mxu0
      %5004 = vmatpush.bf16.msra.mxu0 0
      %5005 = vmatpush.bf16.msra.mxu0 0
      %5006 = vmatpush.bf16.msra.mxu0 0
      %5007 = vmatpush.bf16.msra.mxu0 0
      %5008 = vmatpush.bf16.msra.mxu0 0
      %5009 = vmatpush.bf16.msra.mxu0 0
      %5010 = vmatpush.bf16.msra.mxu0 %v4980
      %5011 = vmatpush.bf16.msra.mxu0 %v4978
      %5012 = vmatmul.bf16.gmra.mxu0 %v4988
      %v5013 = vpop.f32.mrf.mxu0
      %v5014 = vadd.f32 0.0, %v5013
      %v5015 = vpop.f32.mrf.mxu0
      %v5016 = vadd.f32 0.0, %v5015
      %5017 = vdwg.mxu0
      %5018 = vmatpush.bf16.msra.mxu0 0
      %5019 = vmatpush.bf16.msra.mxu0 0
      %5020 = vmatpush.bf16.msra.mxu0 0
      %5021 = vmatpush.bf16.msra.mxu0 0
      %5022 = vmatpush.bf16.msra.mxu0 0
      %5023 = vmatpush.bf16.msra.mxu0 0
      %5024 = vmatpush.bf16.msra.mxu0 %v4976
      %5025 = vmatpush.bf16.msra.mxu0 %v4970
      %5026 = vmatmul.bf16.gmra.mxu0 %v4988
      %v5027 = vpop.f32.mrf.mxu0
      %v5028 = vadd.f32 0.0, %v5027
      %v5029 = vpop.f32.mrf.mxu0
      %v5030 = vadd.f32 0.0, %v5029
      %5031 = vdwg.mxu0
      %v5032 = vadd.f32 %v4951, %v5000
      %v5033 = vadd.f32 %v4952, %v5014
      %v5034 = vadd.f32 %v4953, %v5028
      %v5035 = vadd.f32 %v4954, %v5002
      %v5036 = vadd.f32 %v4955, %v5016
      %v5037 = vadd.f32 %v4956, %v5030
      %v5038 = vld [vmem:[%s8] sm:$0xff]
      %v5039 = vld [vmem:[%s8 + $0x8] sm:$0x1]
      %5041 = vset.pattern.permute.xlu0 0
      %5042 = vperm.xlu0 %5041, %v5038
      %v5043 = vpop.permute.xlu0 %5042
      %5046 = vset.pattern.permute.xlu0 0
      %5047 = vperm.xlu0 %5046, %v5039
      %v5048 = vpop.permute.xlu0 %5047
      %v5050 = vadd.f32 %v5032, %v5043
      %v5051 = vadd.f32 %v5033, %v5043
      %v5052 = vadd.f32 %v5034, %v5043
      %v5053 = vadd.f32 %v5035, %v5048
      %v5054 = vadd.f32 %v5036, %v5048
      %v5055 = vadd.f32 %v5037, %v5048
      %5056 = vst [vmem:[%s332] sm:$0xff] %v5050
      %5057 = vst [vmem:[%s332 + $0x8] sm:$0xff] %v5051
      %5058 = vst.msk [vmem:[%s332 + $0x10] sm:$0xff] %vm953, %v5052
      %5059 = vst [vmem:[%s332 + $0x18] sm:$0x1] %v5053
      %5060 = vst [vmem:[%s332 + $0x20] sm:$0x1] %v5054
      %vm5061 = vcmask 516096
      %5062 = vst.msk [vmem:[%s332 + $0x28] sm:$0x1] %vm5061, %v5055
      %p5063 = scmp.lt.s32.totalorder %s20, 1
      %s5064 = scalar_select %p5063, %s20, 1
      %s5065 = smul.addr %s5064, 6
      %s5066 = smul.addr %s5065, 8
      %s5067 = scalar_lea.vmem %s9, %s5066
      // Predicated region
      $region57: #{super_resolution_forward.1} parent=55 // pred_check
        %p5068 = pneg %p232
      $region58: #{super_resolution_forward.1} parent=55 // pred_check_branch
        %5070 = sbr.rel (%p5068) target = $region60
      $region59: #{super_resolution_forward.1} parent=55 // pred_region
        _
      $region60: #{super_resolution_forward.1} parent=55 // pred_fallthru
        _
    $region56: #{super_resolution_forward.1} parent=5 // pred_fallthru
      _
    %p5071 = scmp.le.s32.totalorder 2, %s15
    // Predicated region
    $region61: #{super_resolution_forward.1} parent=5 // pred_check
      %p5072 = pneg %p5071
    $region62: #{super_resolution_forward.1} parent=5 // pred_check_branch
      %5074 = sbr.rel (%p5072) target = $region64
    $region63: #{super_resolution_forward.1} parent=5 // pred_region
      %s5075 = ssub.s32 %s15, 2
      // Predicated region
      $region65: #{super_resolution_forward.1} parent=63 // pred_check
        %p5076 = pneg %p238
      $region66: #{super_resolution_forward.1} parent=63 // pred_check_branch
        %5078 = sbr.rel (%p5076) target = $region68
      $region67: #{super_resolution_forward.1} parent=63 // pred_region
        %p5079 = scmp.lt.s32.totalorder %s21, 1
        %s5080 = scalar_select %p5079, %s21, 1
        %s5081 = smul.addr %s5080, 6
        %s5082 = smul.addr %s5081, 8
        %s5083 = scalar_lea.vmem %s9, %s5082
      $region68: #{super_resolution_forward.1} parent=63 // pred_fallthru
        _
    $region64: #{super_resolution_forward.1} parent=5 // pred_fallthru
      _
  $region6: #{super_resolution_forward.1} parent=0 // loop_footer
    %s19 = sadd.s32 1, %s15
  $region7: #{super_resolution_forward.1} parent=0 // loop_footer_branch
    %14 = sbr.rel target = $region3
  $region8: #{super_resolution_forward.1} parent=0 // loop_exit
    _

</llo_original>
